<compile_context>
chip_gen: v5e
topology: v5e:2x2
jax: 0.10.0
libtpu: 0.0.40
codegen_flags: <defaults>
</compile_context>

<pallas_src>
import functools

import jax
import jax.numpy as jnp
from jax.experimental import pallas as pl
from jax.experimental.pallas import tpu as pltpu


def _round_up(x, m):
    return (x + m - 1) // m * m


def _double_conv_kernel(x_ref, w1_ref, b1_ref, w2_ref, b2_ref, mask_ref,
                        o_ref, mid_ref, *, H, W, mid_off):
    """Fused (conv3x3 + ReLU) x 2 for one image.

    x_ref:    ((H+3)*(W+2), C1) f32  flattened zero-padded input
    w1_ref:   (9, C1, C2)       bf16 taps ordered t = kh*3+kw, each (Cin, Cout)
    b1_ref:   (1, C2)           f32
    w2_ref:   (9, C2, C3)       bf16
    b2_ref:   (1, C3)           f32
    mask_ref: (H*(W+2), 1)      f32  1.0 on real pixels (w < W), else 0.0
    o_ref:    (H*(W+2), C3)     f32  output rows (pad columns dropped by wrapper)
    mid_ref:  (mid_rows, C2)    f32  scratch holding the padded conv1 activation
    """
    WP = W + 2
    M = H * WP
    C2 = w1_ref.shape[-1]
    C3 = w2_ref.shape[-1]

    # ---- conv1: 9 shifted-slice matmuls (bf16 x bf16 -> f32 accumulate) ----
    acc = jnp.zeros((M, C2), jnp.float32)
    for dy in range(3):
        for dx in range(3):
            off = dy * WP + dx
            lhs = x_ref[pl.ds(off, M), :].astype(jnp.bfloat16)
            acc = acc + jnp.dot(lhs, w1_ref[dy * 3 + dx],
                                preferred_element_type=jnp.float32)
    h = jnp.maximum(acc + b1_ref[...], 0.0)
    h = h * mask_ref[...]          # zero the rows that become pad columns

    # ---- park conv1 activation as a zero-padded image in VMEM --------------
    mid_ref[...] = jnp.zeros_like(mid_ref)
    mid_ref[pl.ds(mid_off, M), :] = h

    # ---- conv2 over the VMEM-resident intermediate --------------------------
    shift = mid_off - (WP + 1)     # mid row r <-> padded-activation flat row r - shift
    acc2 = jnp.zeros((M, C3), jnp.float32)
    for dy in range(3):
        for dx in range(3):
            off = dy * WP + dx + shift
            lhs = mid_ref[pl.ds(off, M), :].astype(jnp.bfloat16)
            acc2 = acc2 + jnp.dot(lhs, w2_ref[dy * 3 + dx],
                                  preferred_element_type=jnp.float32)
    o_ref[...] = jnp.maximum(acc2 + b2_ref[...], 0.0).astype(o_ref.dtype)


def double_conv_relu(x_nchw, w1, b1, w2, b2):
    """relu(conv2(relu(conv1(x)))) with 3x3 / stride 1 / pad 1 convs (NCHW)."""
    N, C1, H, W = x_nchw.shape
    C2 = w1.shape[0]
    C3 = w2.shape[0]
    assert w1.shape == (C2, C1, 3, 3) and w2.shape == (C3, C2, 3, 3)

    WP = W + 2
    M = H * WP                       # matmul rows per image (incl. pad columns)
    R = (H + 3) * WP                 # rows of the flattened padded input
    mid_off = _round_up(WP + 1, 8)   # sublane-aligned start of conv1 data in scratch
    mid_rows = _round_up(mid_off + M + WP + 1, 8)

    # NCHW -> NHWC, zero-pad (top 1, bottom 2, left 1, right 1), flatten rows.
    x_nhwc = jnp.transpose(x_nchw, (0, 2, 3, 1))
    x_pad = jnp.pad(x_nhwc, ((0, 0), (1, 2), (1, 1), (0, 0)))
    x_flat = x_pad.reshape(N, R, C1).astype(jnp.float32)

    # Weights as 9 taps of (Cin, Cout), stored in bf16 for the MXU.
    w1_t = jnp.transpose(w1, (2, 3, 1, 0)).reshape(9, C1, C2).astype(jnp.bfloat16)
    w2_t = jnp.transpose(w2, (2, 3, 1, 0)).reshape(9, C2, C3).astype(jnp.bfloat16)
    b1_r = b1.reshape(1, C2).astype(jnp.float32)
    b2_r = b2.reshape(1, C3).astype(jnp.float32)

    # 1.0 on rows that are real output pixels (w < W), 0.0 on pad columns.
    mask = (jnp.arange(M, dtype=jnp.int32) % WP < W)
    mask = mask.astype(jnp.float32).reshape(M, 1)

    kern = functools.partial(_double_conv_kernel, H=H, W=W, mid_off=mid_off)
    out_full = pl.pallas_call(
        kern,
        out_shape=jax.ShapeDtypeStruct((N, M, C3), jnp.float32),
        grid_spec=pltpu.PrefetchScalarGridSpec(
            num_scalar_prefetch=0,
            grid=(N,),
            in_specs=[
                pl.BlockSpec((None, R, C1), lambda n: (n, 0, 0)),
                pl.BlockSpec((9, C1, C2), lambda n: (0, 0, 0)),
                pl.BlockSpec((1, C2), lambda n: (0, 0)),
                pl.BlockSpec((9, C2, C3), lambda n: (0, 0, 0)),
                pl.BlockSpec((1, C3), lambda n: (0, 0)),
                pl.BlockSpec((M, 1), lambda n: (0, 0)),
            ],
            out_specs=pl.BlockSpec((None, M, C3), lambda n: (n, 0, 0)),
            scratch_shapes=[pltpu.VMEM((mid_rows, C2), jnp.float32)],
        ),
        compiler_params=pltpu.CompilerParams(
            dimension_semantics=("parallel",),
            vmem_limit_bytes=32 * 1024 * 1024,
        ),
    )(x_flat, w1_t, b1_r, w2_t, b2_r, mask)

    # Drop pad columns, restore NCHW.
    out = out_full.reshape(N, H, WP, C3)[:, :, :W, :]
    return jnp.transpose(out, (0, 3, 1, 2))


if __name__ == "__main__":
    key = jax.random.PRNGKey(0)
    kx, kw1, kb1, kw2, kb2 = jax.random.split(key, 5)

    # convolutio(ks=3, ch_in=4, ch_out=32) at small shapes.
    N, C_IN, C_OUT, H, W = 2, 4, 32, 16, 16

    x = jax.random.normal(kx, (N, C_IN, H, W), jnp.float32)
    w1 = jax.random.normal(kw1, (C_OUT, C_IN, 3, 3), jnp.float32) / (9 * C_IN) ** 0.5
    b1 = 0.05 * jax.random.normal(kb1, (C_OUT,), jnp.float32)
    w2 = jax.random.normal(kw2, (C_OUT, C_OUT, 3, 3), jnp.float32) / (9 * C_OUT) ** 0.5
    b2 = 0.05 * jax.random.normal(kb2, (C_OUT,), jnp.float32)

    fwd = jax.jit(double_conv_relu)
    out = jax.block_until_ready(fwd(x, w1, b1, w2, b2))

    # fp32 reference (lax conv == nn.Conv2d cross-correlation semantics).
    def ref_block(xx, w, b):
        y = jax.lax.conv_general_dilated(
            xx, w, window_strides=(1, 1), padding=((1, 1), (1, 1)),
            dimension_numbers=("NCHW", "OIHW", "NCHW"))
        return jnp.maximum(y + b[None, :, None, None], 0.0)

    ref = ref_block(ref_block(x, w1, b1), w2, b2)

    assert out.shape == (N, C_OUT, H, W), out.shape
    assert bool(jnp.all(jnp.isfinite(out)))
    max_err = float(jnp.max(jnp.abs(out - ref)))
    assert max_err < 0.1, f"max abs error vs reference: {max_err}"
    print("KERNEL_OK")
</pallas_src>

<mosaic_0001>
module attributes {stable_mosaic.version = 11 : i64} {
  func.func @_double_conv_kernel(%arg0: i32, %arg1: memref<1x342x4xf32, #tpu.memory_space<vmem>>, %arg2: memref<9x4x32xbf16, #tpu.memory_space<vmem>>, %arg3: memref<1x32xf32, #tpu.memory_space<vmem>>, %arg4: memref<9x32x32xbf16, #tpu.memory_space<vmem>>, %arg5: memref<1x32xf32, #tpu.memory_space<vmem>>, %arg6: memref<288x1xf32, #tpu.memory_space<vmem>>, %arg7: memref<1x288x32xf32, #tpu.memory_space<vmem>>, %arg8: memref<336x32xf32, #tpu.memory_space<vmem>>) attributes {dimension_semantics = [#tpu.dimension_semantics<parallel>], iteration_bounds = array<i64: 2>, scalar_prefetch = 0 : i64, scratch_operands = 1 : i64, tpu.core_type = #tpu.core_type<tc>, window_params = [{transform_indices = @transform_0, window_bounds = array<i64: 1, 342, 4>}, {pipeline_mode = #tpu.pipeline_mode<synchronous>, transform_indices = @transform_1, window_bounds = array<i64: 9, 4, 32>}, {pipeline_mode = #tpu.pipeline_mode<synchronous>, transform_indices = @transform_2, window_bounds = array<i64: 1, 32>}, {pipeline_mode = #tpu.pipeline_mode<synchronous>, transform_indices = @transform_3, window_bounds = array<i64: 9, 32, 32>}, {pipeline_mode = #tpu.pipeline_mode<synchronous>, transform_indices = @transform_4, window_bounds = array<i64: 1, 32>}, {pipeline_mode = #tpu.pipeline_mode<synchronous>, transform_indices = @transform_5, window_bounds = array<i64: 288, 1>}, {transform_indices = @transform_6, window_bounds = array<i64: 1, 288, 32>}]} {
    %cst = arith.constant 0.000000e+00 : f32
    %0 = vector.broadcast %cst : f32 to vector<288x32xf32>
    %c0 = arith.constant 0 : index
    %c0_0 = arith.constant 0 : index
    %c0_1 = arith.constant 0 : index
    %1 = vector.load %arg1[%c0, %c0_0, %c0_1] : memref<1x342x4xf32, #tpu.memory_space<vmem>>, vector<1x288x4xf32>
    %2 = vector.shape_cast %1 : vector<1x288x4xf32> to vector<288x4xf32>
    %3 = arith.truncf %2 : vector<288x4xf32> to vector<288x4xbf16>
    %c0_2 = arith.constant 0 : index
    %c0_3 = arith.constant 0 : index
    %c0_4 = arith.constant 0 : index
    %4 = vector.load %arg2[%c0_2, %c0_3, %c0_4] : memref<9x4x32xbf16, #tpu.memory_space<vmem>>, vector<1x4x32xbf16>
    %5 = vector.shape_cast %4 : vector<1x4x32xbf16> to vector<4x32xbf16>
    %cst_5 = arith.constant dense<0.000000e+00> : vector<288x32xf32>
    %6 = tpu.matmul %3, %5, %cst_5 {dimension_numbers = #tpu.dot_dimension_numbers<[1], [0], [0], [1], [0, 0, 1, 1], [], []>} : vector<288x4xbf16>, vector<4x32xbf16>, vector<288x32xf32> -> vector<288x32xf32>
    %7 = arith.addf %0, %6 : vector<288x32xf32>
    %c0_6 = arith.constant 0 : index
    %c1 = arith.constant 1 : index
    %c0_7 = arith.constant 0 : index
    %8 = vector.load %arg1[%c0_6, %c1, %c0_7] : memref<1x342x4xf32, #tpu.memory_space<vmem>>, vector<1x288x4xf32>
    %9 = vector.shape_cast %8 : vector<1x288x4xf32> to vector<288x4xf32>
    %10 = arith.truncf %9 : vector<288x4xf32> to vector<288x4xbf16>
    %c1_8 = arith.constant 1 : index
    %c0_9 = arith.constant 0 : index
    %c0_10 = arith.constant 0 : index
    %11 = vector.load %arg2[%c1_8, %c0_9, %c0_10] : memref<9x4x32xbf16, #tpu.memory_space<vmem>>, vector<1x4x32xbf16>
    %12 = vector.shape_cast %11 : vector<1x4x32xbf16> to vector<4x32xbf16>
    %cst_11 = arith.constant dense<0.000000e+00> : vector<288x32xf32>
    %13 = tpu.matmul %10, %12, %cst_11 {dimension_numbers = #tpu.dot_dimension_numbers<[1], [0], [0], [1], [0, 0, 1, 1], [], []>} : vector<288x4xbf16>, vector<4x32xbf16>, vector<288x32xf32> -> vector<288x32xf32>
    %14 = arith.addf %7, %13 : vector<288x32xf32>
    %c0_12 = arith.constant 0 : index
    %c2 = arith.constant 2 : index
    %c0_13 = arith.constant 0 : index
    %15 = vector.load %arg1[%c0_12, %c2, %c0_13] : memref<1x342x4xf32, #tpu.memory_space<vmem>>, vector<1x288x4xf32>
    %16 = vector.shape_cast %15 : vector<1x288x4xf32> to vector<288x4xf32>
    %17 = arith.truncf %16 : vector<288x4xf32> to vector<288x4xbf16>
    %c2_14 = arith.constant 2 : index
    %c0_15 = arith.constant 0 : index
    %c0_16 = arith.constant 0 : index
    %18 = vector.load %arg2[%c2_14, %c0_15, %c0_16] : memref<9x4x32xbf16, #tpu.memory_space<vmem>>, vector<1x4x32xbf16>
    %19 = vector.shape_cast %18 : vector<1x4x32xbf16> to vector<4x32xbf16>
    %cst_17 = arith.constant dense<0.000000e+00> : vector<288x32xf32>
    %20 = tpu.matmul %17, %19, %cst_17 {dimension_numbers = #tpu.dot_dimension_numbers<[1], [0], [0], [1], [0, 0, 1, 1], [], []>} : vector<288x4xbf16>, vector<4x32xbf16>, vector<288x32xf32> -> vector<288x32xf32>
    %21 = arith.addf %14, %20 : vector<288x32xf32>
    %c0_18 = arith.constant 0 : index
    %c18 = arith.constant 18 : index
    %c0_19 = arith.constant 0 : index
    %22 = vector.load %arg1[%c0_18, %c18, %c0_19] : memref<1x342x4xf32, #tpu.memory_space<vmem>>, vector<1x288x4xf32>
    %23 = vector.shape_cast %22 : vector<1x288x4xf32> to vector<288x4xf32>
    %24 = arith.truncf %23 : vector<288x4xf32> to vector<288x4xbf16>
    %c3 = arith.constant 3 : index
    %c0_20 = arith.constant 0 : index
    %c0_21 = arith.constant 0 : index
    %25 = vector.load %arg2[%c3, %c0_20, %c0_21] : memref<9x4x32xbf16, #tpu.memory_space<vmem>>, vector<1x4x32xbf16>
    %26 = vector.shape_cast %25 : vector<1x4x32xbf16> to vector<4x32xbf16>
    %cst_22 = arith.constant dense<0.000000e+00> : vector<288x32xf32>
    %27 = tpu.matmul %24, %26, %cst_22 {dimension_numbers = #tpu.dot_dimension_numbers<[1], [0], [0], [1], [0, 0, 1, 1], [], []>} : vector<288x4xbf16>, vector<4x32xbf16>, vector<288x32xf32> -> vector<288x32xf32>
    %28 = arith.addf %21, %27 : vector<288x32xf32>
    %c0_23 = arith.constant 0 : index
    %c19 = arith.constant 19 : index
    %c0_24 = arith.constant 0 : index
    %29 = vector.load %arg1[%c0_23, %c19, %c0_24] : memref<1x342x4xf32, #tpu.memory_space<vmem>>, vector<1x288x4xf32>
    %30 = vector.shape_cast %29 : vector<1x288x4xf32> to vector<288x4xf32>
    %31 = arith.truncf %30 : vector<288x4xf32> to vector<288x4xbf16>
    %c4 = arith.constant 4 : index
    %c0_25 = arith.constant 0 : index
    %c0_26 = arith.constant 0 : index
    %32 = vector.load %arg2[%c4, %c0_25, %c0_26] : memref<9x4x32xbf16, #tpu.memory_space<vmem>>, vector<1x4x32xbf16>
    %33 = vector.shape_cast %32 : vector<1x4x32xbf16> to vector<4x32xbf16>
    %cst_27 = arith.constant dense<0.000000e+00> : vector<288x32xf32>
    %34 = tpu.matmul %31, %33, %cst_27 {dimension_numbers = #tpu.dot_dimension_numbers<[1], [0], [0], [1], [0, 0, 1, 1], [], []>} : vector<288x4xbf16>, vector<4x32xbf16>, vector<288x32xf32> -> vector<288x32xf32>
    %35 = arith.addf %28, %34 : vector<288x32xf32>
    %c0_28 = arith.constant 0 : index
    %c20 = arith.constant 20 : index
    %c0_29 = arith.constant 0 : index
    %36 = vector.load %arg1[%c0_28, %c20, %c0_29] : memref<1x342x4xf32, #tpu.memory_space<vmem>>, vector<1x288x4xf32>
    %37 = vector.shape_cast %36 : vector<1x288x4xf32> to vector<288x4xf32>
    %38 = arith.truncf %37 : vector<288x4xf32> to vector<288x4xbf16>
    %c5 = arith.constant 5 : index
    %c0_30 = arith.constant 0 : index
    %c0_31 = arith.constant 0 : index
    %39 = vector.load %arg2[%c5, %c0_30, %c0_31] : memref<9x4x32xbf16, #tpu.memory_space<vmem>>, vector<1x4x32xbf16>
    %40 = vector.shape_cast %39 : vector<1x4x32xbf16> to vector<4x32xbf16>
    %cst_32 = arith.constant dense<0.000000e+00> : vector<288x32xf32>
    %41 = tpu.matmul %38, %40, %cst_32 {dimension_numbers = #tpu.dot_dimension_numbers<[1], [0], [0], [1], [0, 0, 1, 1], [], []>} : vector<288x4xbf16>, vector<4x32xbf16>, vector<288x32xf32> -> vector<288x32xf32>
    %42 = arith.addf %35, %41 : vector<288x32xf32>
    %c0_33 = arith.constant 0 : index
    %c36 = arith.constant 36 : index
    %c0_34 = arith.constant 0 : index
    %43 = vector.load %arg1[%c0_33, %c36, %c0_34] : memref<1x342x4xf32, #tpu.memory_space<vmem>>, vector<1x288x4xf32>
    %44 = vector.shape_cast %43 : vector<1x288x4xf32> to vector<288x4xf32>
    %45 = arith.truncf %44 : vector<288x4xf32> to vector<288x4xbf16>
    %c6 = arith.constant 6 : index
    %c0_35 = arith.constant 0 : index
    %c0_36 = arith.constant 0 : index
    %46 = vector.load %arg2[%c6, %c0_35, %c0_36] : memref<9x4x32xbf16, #tpu.memory_space<vmem>>, vector<1x4x32xbf16>
    %47 = vector.shape_cast %46 : vector<1x4x32xbf16> to vector<4x32xbf16>
    %cst_37 = arith.constant dense<0.000000e+00> : vector<288x32xf32>
    %48 = tpu.matmul %45, %47, %cst_37 {dimension_numbers = #tpu.dot_dimension_numbers<[1], [0], [0], [1], [0, 0, 1, 1], [], []>} : vector<288x4xbf16>, vector<4x32xbf16>, vector<288x32xf32> -> vector<288x32xf32>
    %49 = arith.addf %42, %48 : vector<288x32xf32>
    %c0_38 = arith.constant 0 : index
    %c37 = arith.constant 37 : index
    %c0_39 = arith.constant 0 : index
    %50 = vector.load %arg1[%c0_38, %c37, %c0_39] : memref<1x342x4xf32, #tpu.memory_space<vmem>>, vector<1x288x4xf32>
    %51 = vector.shape_cast %50 : vector<1x288x4xf32> to vector<288x4xf32>
    %52 = arith.truncf %51 : vector<288x4xf32> to vector<288x4xbf16>
    %c7 = arith.constant 7 : index
    %c0_40 = arith.constant 0 : index
    %c0_41 = arith.constant 0 : index
    %53 = vector.load %arg2[%c7, %c0_40, %c0_41] : memref<9x4x32xbf16, #tpu.memory_space<vmem>>, vector<1x4x32xbf16>
    %54 = vector.shape_cast %53 : vector<1x4x32xbf16> to vector<4x32xbf16>
    %cst_42 = arith.constant dense<0.000000e+00> : vector<288x32xf32>
    %55 = tpu.matmul %52, %54, %cst_42 {dimension_numbers = #tpu.dot_dimension_numbers<[1], [0], [0], [1], [0, 0, 1, 1], [], []>} : vector<288x4xbf16>, vector<4x32xbf16>, vector<288x32xf32> -> vector<288x32xf32>
    %56 = arith.addf %49, %55 : vector<288x32xf32>
    %c0_43 = arith.constant 0 : index
    %c38 = arith.constant 38 : index
    %c0_44 = arith.constant 0 : index
    %57 = vector.load %arg1[%c0_43, %c38, %c0_44] : memref<1x342x4xf32, #tpu.memory_space<vmem>>, vector<1x288x4xf32>
    %58 = vector.shape_cast %57 : vector<1x288x4xf32> to vector<288x4xf32>
    %59 = arith.truncf %58 : vector<288x4xf32> to vector<288x4xbf16>
    %c8 = arith.constant 8 : index
    %c0_45 = arith.constant 0 : index
    %c0_46 = arith.constant 0 : index
    %60 = vector.load %arg2[%c8, %c0_45, %c0_46] : memref<9x4x32xbf16, #tpu.memory_space<vmem>>, vector<1x4x32xbf16>
    %61 = vector.shape_cast %60 : vector<1x4x32xbf16> to vector<4x32xbf16>
    %cst_47 = arith.constant dense<0.000000e+00> : vector<288x32xf32>
    %62 = tpu.matmul %59, %61, %cst_47 {dimension_numbers = #tpu.dot_dimension_numbers<[1], [0], [0], [1], [0, 0, 1, 1], [], []>} : vector<288x4xbf16>, vector<4x32xbf16>, vector<288x32xf32> -> vector<288x32xf32>
    %63 = arith.addf %56, %62 : vector<288x32xf32>
    %c0_48 = arith.constant 0 : index
    %c0_49 = arith.constant 0 : index
    %64 = vector.load %arg3[%c0_48, %c0_49] : memref<1x32xf32, #tpu.memory_space<vmem>>, vector<1x32xf32>
    %65 = vector.broadcast %64 : vector<1x32xf32> to vector<288x32xf32>
    %66 = arith.addf %63, %65 : vector<288x32xf32>
    %cst_50 = arith.constant 0.000000e+00 : f32
    %67 = vector.broadcast %cst_50 : f32 to vector<288x32xf32>
    %68 = arith.maximumf %66, %67 : vector<288x32xf32>
    %c0_51 = arith.constant 0 : index
    %c0_52 = arith.constant 0 : index
    %69 = vector.load %arg6[%c0_51, %c0_52] : memref<288x1xf32, #tpu.memory_space<vmem>>, vector<288x1xf32>
    %70 = vector.broadcast %69 : vector<288x1xf32> to vector<288x32xf32>
    %71 = arith.mulf %68, %70 : vector<288x32xf32>
    %cst_53 = arith.constant 0.000000e+00 : f32
    %72 = vector.broadcast %cst_53 : f32 to vector<336x32xf32>
    %c0_54 = arith.constant 0 : index
    %c0_55 = arith.constant 0 : index
    %73 = vector.load %arg8[%c0_54, %c0_55] : memref<336x32xf32, #tpu.memory_space<vmem>>, vector<336x32xf32>
    tpu.vector_store %arg8[%c0_54, %c0_55], %72 {strides = array<i32>} : memref<336x32xf32, #tpu.memory_space<vmem>>, vector<336x32xf32>,
    %c24 = arith.constant 24 : index
    %c0_56 = arith.constant 0 : index
    %74 = vector.load %arg8[%c24, %c0_56] : memref<336x32xf32, #tpu.memory_space<vmem>>, vector<288x32xf32>
    tpu.vector_store %arg8[%c24, %c0_56], %71 {strides = array<i32>} : memref<336x32xf32, #tpu.memory_space<vmem>>, vector<288x32xf32>,
    %cst_57 = arith.constant 0.000000e+00 : f32
    %75 = vector.broadcast %cst_57 : f32 to vector<288x32xf32>
    %c5_58 = arith.constant 5 : index
    %c0_59 = arith.constant 0 : index
    %76 = vector.load %arg8[%c5_58, %c0_59] : memref<336x32xf32, #tpu.memory_space<vmem>>, vector<288x32xf32>
    %77 = arith.truncf %76 : vector<288x32xf32> to vector<288x32xbf16>
    %c0_60 = arith.constant 0 : index
    %c0_61 = arith.constant 0 : index
    %c0_62 = arith.constant 0 : index
    %78 = vector.load %arg4[%c0_60, %c0_61, %c0_62] : memref<9x32x32xbf16, #tpu.memory_space<vmem>>, vector<1x32x32xbf16>
    %79 = vector.shape_cast %78 : vector<1x32x32xbf16> to vector<32x32xbf16>
    %cst_63 = arith.constant dense<0.000000e+00> : vector<288x32xf32>
    %80 = tpu.matmul %77, %79, %cst_63 {dimension_numbers = #tpu.dot_dimension_numbers<[1], [0], [0], [1], [0, 0, 1, 1], [], []>} : vector<288x32xbf16>, vector<32x32xbf16>, vector<288x32xf32> -> vector<288x32xf32>
    %81 = arith.addf %75, %80 : vector<288x32xf32>
    %c6_64 = arith.constant 6 : index
    %c0_65 = arith.constant 0 : index
    %82 = vector.load %arg8[%c6_64, %c0_65] : memref<336x32xf32, #tpu.memory_space<vmem>>, vector<288x32xf32>
    %83 = arith.truncf %82 : vector<288x32xf32> to vector<288x32xbf16>
    %c1_66 = arith.constant 1 : index
    %c0_67 = arith.constant 0 : index
    %c0_68 = arith.constant 0 : index
    %84 = vector.load %arg4[%c1_66, %c0_67, %c0_68] : memref<9x32x32xbf16, #tpu.memory_space<vmem>>, vector<1x32x32xbf16>
    %85 = vector.shape_cast %84 : vector<1x32x32xbf16> to vector<32x32xbf16>
    %cst_69 = arith.constant dense<0.000000e+00> : vector<288x32xf32>
    %86 = tpu.matmul %83, %85, %cst_69 {dimension_numbers = #tpu.dot_dimension_numbers<[1], [0], [0], [1], [0, 0, 1, 1], [], []>} : vector<288x32xbf16>, vector<32x32xbf16>, vector<288x32xf32> -> vector<288x32xf32>
    %87 = arith.addf %81, %86 : vector<288x32xf32>
    %c7_70 = arith.constant 7 : index
    %c0_71 = arith.constant 0 : index
    %88 = vector.load %arg8[%c7_70, %c0_71] : memref<336x32xf32, #tpu.memory_space<vmem>>, vector<288x32xf32>
    %89 = arith.truncf %88 : vector<288x32xf32> to vector<288x32xbf16>
    %c2_72 = arith.constant 2 : index
    %c0_73 = arith.constant 0 : index
    %c0_74 = arith.constant 0 : index
    %90 = vector.load %arg4[%c2_72, %c0_73, %c0_74] : memref<9x32x32xbf16, #tpu.memory_space<vmem>>, vector<1x32x32xbf16>
    %91 = vector.shape_cast %90 : vector<1x32x32xbf16> to vector<32x32xbf16>
    %cst_75 = arith.constant dense<0.000000e+00> : vector<288x32xf32>
    %92 = tpu.matmul %89, %91, %cst_75 {dimension_numbers = #tpu.dot_dimension_numbers<[1], [0], [0], [1], [0, 0, 1, 1], [], []>} : vector<288x32xbf16>, vector<32x32xbf16>, vector<288x32xf32> -> vector<288x32xf32>
    %93 = arith.addf %87, %92 : vector<288x32xf32>
    %c23 = arith.constant 23 : index
    %c0_76 = arith.constant 0 : index
    %94 = vector.load %arg8[%c23, %c0_76] : memref<336x32xf32, #tpu.memory_space<vmem>>, vector<288x32xf32>
    %95 = arith.truncf %94 : vector<288x32xf32> to vector<288x32xbf16>
    %c3_77 = arith.constant 3 : index
    %c0_78 = arith.constant 0 : index
    %c0_79 = arith.constant 0 : index
    %96 = vector.load %arg4[%c3_77, %c0_78, %c0_79] : memref<9x32x32xbf16, #tpu.memory_space<vmem>>, vector<1x32x32xbf16>
    %97 = vector.shape_cast %96 : vector<1x32x32xbf16> to vector<32x32xbf16>
    %cst_80 = arith.constant dense<0.000000e+00> : vector<288x32xf32>
    %98 = tpu.matmul %95, %97, %cst_80 {dimension_numbers = #tpu.dot_dimension_numbers<[1], [0], [0], [1], [0, 0, 1, 1], [], []>} : vector<288x32xbf16>, vector<32x32xbf16>, vector<288x32xf32> -> vector<288x32xf32>
    %99 = arith.addf %93, %98 : vector<288x32xf32>
    %c24_81 = arith.constant 24 : index
    %c0_82 = arith.constant 0 : index
    %100 = vector.load %arg8[%c24_81, %c0_82] : memref<336x32xf32, #tpu.memory_space<vmem>>, vector<288x32xf32>
    %101 = arith.truncf %100 : vector<288x32xf32> to vector<288x32xbf16>
    %c4_83 = arith.constant 4 : index
    %c0_84 = arith.constant 0 : index
    %c0_85 = arith.constant 0 : index
    %102 = vector.load %arg4[%c4_83, %c0_84, %c0_85] : memref<9x32x32xbf16, #tpu.memory_space<vmem>>, vector<1x32x32xbf16>
    %103 = vector.shape_cast %102 : vector<1x32x32xbf16> to vector<32x32xbf16>
    %cst_86 = arith.constant dense<0.000000e+00> : vector<288x32xf32>
    %104 = tpu.matmul %101, %103, %cst_86 {dimension_numbers = #tpu.dot_dimension_numbers<[1], [0], [0], [1], [0, 0, 1, 1], [], []>} : vector<288x32xbf16>, vector<32x32xbf16>, vector<288x32xf32> -> vector<288x32xf32>
    %105 = arith.addf %99, %104 : vector<288x32xf32>
    %c25 = arith.constant 25 : index
    %c0_87 = arith.constant 0 : index
    %106 = vector.load %arg8[%c25, %c0_87] : memref<336x32xf32, #tpu.memory_space<vmem>>, vector<288x32xf32>
    %107 = arith.truncf %106 : vector<288x32xf32> to vector<288x32xbf16>
    %c5_88 = arith.constant 5 : index
    %c0_89 = arith.constant 0 : index
    %c0_90 = arith.constant 0 : index
    %108 = vector.load %arg4[%c5_88, %c0_89, %c0_90] : memref<9x32x32xbf16, #tpu.memory_space<vmem>>, vector<1x32x32xbf16>
    %109 = vector.shape_cast %108 : vector<1x32x32xbf16> to vector<32x32xbf16>
    %cst_91 = arith.constant dense<0.000000e+00> : vector<288x32xf32>
    %110 = tpu.matmul %107, %109, %cst_91 {dimension_numbers = #tpu.dot_dimension_numbers<[1], [0], [0], [1], [0, 0, 1, 1], [], []>} : vector<288x32xbf16>, vector<32x32xbf16>, vector<288x32xf32> -> vector<288x32xf32>
    %111 = arith.addf %105, %110 : vector<288x32xf32>
    %c41 = arith.constant 41 : index
    %c0_92 = arith.constant 0 : index
    %112 = vector.load %arg8[%c41, %c0_92] : memref<336x32xf32, #tpu.memory_space<vmem>>, vector<288x32xf32>
    %113 = arith.truncf %112 : vector<288x32xf32> to vector<288x32xbf16>
    %c6_93 = arith.constant 6 : index
    %c0_94 = arith.constant 0 : index
    %c0_95 = arith.constant 0 : index
    %114 = vector.load %arg4[%c6_93, %c0_94, %c0_95] : memref<9x32x32xbf16, #tpu.memory_space<vmem>>, vector<1x32x32xbf16>
    %115 = vector.shape_cast %114 : vector<1x32x32xbf16> to vector<32x32xbf16>
    %cst_96 = arith.constant dense<0.000000e+00> : vector<288x32xf32>
    %116 = tpu.matmul %113, %115, %cst_96 {dimension_numbers = #tpu.dot_dimension_numbers<[1], [0], [0], [1], [0, 0, 1, 1], [], []>} : vector<288x32xbf16>, vector<32x32xbf16>, vector<288x32xf32> -> vector<288x32xf32>
    %117 = arith.addf %111, %116 : vector<288x32xf32>
    %c42 = arith.constant 42 : index
    %c0_97 = arith.constant 0 : index
    %118 = vector.load %arg8[%c42, %c0_97] : memref<336x32xf32, #tpu.memory_space<vmem>>, vector<288x32xf32>
    %119 = arith.truncf %118 : vector<288x32xf32> to vector<288x32xbf16>
    %c7_98 = arith.constant 7 : index
    %c0_99 = arith.constant 0 : index
    %c0_100 = arith.constant 0 : index
    %120 = vector.load %arg4[%c7_98, %c0_99, %c0_100] : memref<9x32x32xbf16, #tpu.memory_space<vmem>>, vector<1x32x32xbf16>
    %121 = vector.shape_cast %120 : vector<1x32x32xbf16> to vector<32x32xbf16>
    %cst_101 = arith.constant dense<0.000000e+00> : vector<288x32xf32>
    %122 = tpu.matmul %119, %121, %cst_101 {dimension_numbers = #tpu.dot_dimension_numbers<[1], [0], [0], [1], [0, 0, 1, 1], [], []>} : vector<288x32xbf16>, vector<32x32xbf16>, vector<288x32xf32> -> vector<288x32xf32>
    %123 = arith.addf %117, %122 : vector<288x32xf32>
    %c43 = arith.constant 43 : index
    %c0_102 = arith.constant 0 : index
    %124 = vector.load %arg8[%c43, %c0_102] : memref<336x32xf32, #tpu.memory_space<vmem>>, vector<288x32xf32>
    %125 = arith.truncf %124 : vector<288x32xf32> to vector<288x32xbf16>
    %c8_103 = arith.constant 8 : index
    %c0_104 = arith.constant 0 : index
    %c0_105 = arith.constant 0 : index
    %126 = vector.load %arg4[%c8_103, %c0_104, %c0_105] : memref<9x32x32xbf16, #tpu.memory_space<vmem>>, vector<1x32x32xbf16>
    %127 = vector.shape_cast %126 : vector<1x32x32xbf16> to vector<32x32xbf16>
    %cst_106 = arith.constant dense<0.000000e+00> : vector<288x32xf32>
    %128 = tpu.matmul %125, %127, %cst_106 {dimension_numbers = #tpu.dot_dimension_numbers<[1], [0], [0], [1], [0, 0, 1, 1], [], []>} : vector<288x32xbf16>, vector<32x32xbf16>, vector<288x32xf32> -> vector<288x32xf32>
    %129 = arith.addf %123, %128 : vector<288x32xf32>
    %c0_107 = arith.constant 0 : index
    %c0_108 = arith.constant 0 : index
    %130 = vector.load %arg5[%c0_107, %c0_108] : memref<1x32xf32, #tpu.memory_space<vmem>>, vector<1x32xf32>
    %131 = vector.broadcast %130 : vector<1x32xf32> to vector<288x32xf32>
    %132 = arith.addf %129, %131 : vector<288x32xf32>
    %cst_109 = arith.constant 0.000000e+00 : f32
    %133 = vector.broadcast %cst_109 : f32 to vector<288x32xf32>
    %134 = arith.maximumf %132, %133 : vector<288x32xf32>
    %c0_110 = arith.constant 0 : index
    %c0_111 = arith.constant 0 : index
    %c0_112 = arith.constant 0 : index
    %135 = vector.load %arg7[%c0_110, %c0_111, %c0_112] : memref<1x288x32xf32, #tpu.memory_space<vmem>>, vector<1x288x32xf32>
    %136 = vector.shape_cast %135 : vector<1x288x32xf32> to vector<288x32xf32>
    %137 = vector.shape_cast %134 : vector<288x32xf32> to vector<1x288x32xf32>
    tpu.vector_store %arg7[%c0_110, %c0_111, %c0_112], %137 {strides = array<i32>} : memref<1x288x32xf32, #tpu.memory_space<vmem>>, vector<1x288x32xf32>,
    return
  }
  func.func @transform_0(%arg0: i32) -> (i32, i32, i32) {
    %c0_i32 = arith.constant 0 : i32
    %c0_i32_0 = arith.constant 0 : i32
    %c0_i32_1 = arith.constant 0 : i32
    return %arg0, %c0_i32, %c0_i32_0 : i32, i32, i32
  }
  func.func @transform_1(%arg0: i32) -> (i32, i32, i32) {
    %c0_i32 = arith.constant 0 : i32
    %c0_i32_0 = arith.constant 0 : i32
    %c0_i32_1 = arith.constant 0 : i32
    %c0_i32_2 = arith.constant 0 : i32
    return %c0_i32, %c0_i32_0, %c0_i32_1 : i32, i32, i32
  }
  func.func @transform_2(%arg0: i32) -> (i32, i32) {
    %c0_i32 = arith.constant 0 : i32
    %c0_i32_0 = arith.constant 0 : i32
    %c0_i32_1 = arith.constant 0 : i32
    return %c0_i32, %c0_i32_0 : i32, i32
  }
  func.func @transform_3(%arg0: i32) -> (i32, i32, i32) {
    %c0_i32 = arith.constant 0 : i32
    %c0_i32_0 = arith.constant 0 : i32
    %c0_i32_1 = arith.constant 0 : i32
    %c0_i32_2 = arith.constant 0 : i32
    return %c0_i32, %c0_i32_0, %c0_i32_1 : i32, i32, i32
  }
  func.func @transform_4(%arg0: i32) -> (i32, i32) {
    %c0_i32 = arith.constant 0 : i32
    %c0_i32_0 = arith.constant 0 : i32
    %c0_i32_1 = arith.constant 0 : i32
    return %c0_i32, %c0_i32_0 : i32, i32
  }
  func.func @transform_5(%arg0: i32) -> (i32, i32) {
    %c0_i32 = arith.constant 0 : i32
    %c0_i32_0 = arith.constant 0 : i32
    %c0_i32_1 = arith.constant 0 : i32
    return %c0_i32, %c0_i32_0 : i32, i32
  }
  func.func @transform_6(%arg0: i32) -> (i32, i32, i32) {
    %c0_i32 = arith.constant 0 : i32
    %c0_i32_0 = arith.constant 0 : i32
    %c0_i32_1 = arith.constant 0 : i32
    return %arg0, %c0_i32, %c0_i32_0 : i32, i32, i32
  }
}

</mosaic_0001>

<llo_original>
// kernel: double_conv_relu.1
$region0: #{double_conv_relu.1}
  #allocation0 [shape = 'u32[]', space=smem, size = 0x4, offset = 0x4, fixed_abs, tag = 'smem constant byte address 0x4 - core index']
  #allocation1 [shape = 'u32[72,128]{1,0:T(1,128)}', space=vmem, size = 0x9000, scoped, tag = 'internal scratch']
  #allocation2 [shape = 'f32[336,32]{1,0:T(8,128)}', space=vmem, size = 0x2a000, scoped, tag = 'scratch operand']
  %s0 = inlined_call_operand.vmem [shape: f32[2,342,4], index: 0, kind: input, shape index: {}]
  %s1 = inlined_call_operand.vmem [shape: bf16[9,4,32], index: 1, kind: input, shape index: {}]
  %s2 = inlined_call_operand.vmem [shape: f32[1,32], index: 2, kind: input, shape index: {}]
  %s3 = inlined_call_operand.vmem [shape: bf16[9,32,32], index: 3, kind: input, shape index: {}]
  %s4 = inlined_call_operand.vmem [shape: f32[1,32], index: 4, kind: input, shape index: {}]
  %s5 = inlined_call_operand.vmem [shape: f32[288,1], index: 5, kind: input, shape index: {}]
  %s6 = inlined_call_operand.vmem [shape: f32[2,288,32], index: 6, kind: output, shape index: {}]
  %s7 = sld [smem:[#allocation0]]
  $region57: #{double_conv_relu.1} parent=0
    _
  %s9 = ssub.s32 1, %s7
  %s10 = scalar_select 0, %s9, %s7
  loop: start=0, step=1, limit=4
  $region2: #{double_conv_relu.1} parent=0 // loop_pre_header
    _
  $region3: #{double_conv_relu.1} parent=0 // loop_header
    %s12 = sphi 0, %s16
    %p13 = scmp.ge.s32.totalorder %s12, 4
    %s22 = sphi 0, %s24
    %s25 = sphi 0, %s22
    %s26 = sphi 0, %s25
    %s42 = sphi 0, %s26
    %s46 = sphi 0, %s46
    %s48 = sphi 0, %s46
    %s49 = sphi 0, %s48
    %s63 = sphi 0, %s49
    %s67 = sphi 0, %s67
    %s69 = sphi 0, %s67
    %s70 = sphi 0, %s69
    %s84 = sphi 0, %s70
    %s88 = sphi 0, %s88
    %s90 = sphi 0, %s88
    %s91 = sphi 0, %s90
    %s105 = sphi 0, %s91
    %s109 = sphi 0, %s109
    %s111 = sphi 0, %s109
    %s112 = sphi 0, %s111
    %s126 = sphi 0, %s112
    %s130 = sphi 0, %s130
    %s132 = sphi 0, %s130
    %s133 = sphi 0, %s132
    %s147 = sphi 0, %s133
    %s153 = sphi 0, %s155
    %s156 = sphi 0, %s153
    %s157 = sphi 0, %s156
    %s173 = sphi 0, %s157
  $region4: #{double_conv_relu.1} parent=0 // loop_header_branch
    %15 = sbr.rel (%p13) target = $region8
  $region5: #{double_conv_relu.1} parent=0 // loop_body
    %s17 = ssub.s32 %s12, 1
    %s18 = ssub.s32 %s12, 2
    %s19 = sadd.s32 %s12, 1
    %s20 = ssub.s32 %s12, %s19
    %p21 = scmp.eq.s32.totalorder %s20, 0
    %s23 = sadd.s32 %s22, 1
    %s24 = scalar_select %p21, %s22, %s23
    %p27 = pneg %p21
    %p28 = scmp.eq.s32.totalorder %s12, 1
    %p29 = por %p27, %p28
    %p30 = scmp.ne.s32.totalorder %s22, %s25
    %p31 = scmp.eq.s32.totalorder %s12, 0
    %p32 = por %p30, %p31
    %p33 = scmp.ne.s32.totalorder %s22, %s25
    %p34 = scmp.eq.s32.totalorder %s17, 1
    %p35 = por %p33, %p34
    %p36 = scmp.ne.s32.totalorder %s25, %s26
    %p37 = scmp.eq.s32.totalorder %s17, 0
    %p38 = por %p36, %p37
    %p39 = scmp.ne.s32.totalorder %s25, %s26
    %p40 = scmp.eq.s32.totalorder %s18, 1
    %p41 = por %p39, %p40
    %p43 = scmp.ne.s32.totalorder %s26, %s42
    %p44 = scmp.eq.s32.totalorder %s18, 0
    %p45 = por %p43, %p44
    %s47 = sadd.s32 %s46, 1
    %p50 = scmp.eq.s32.totalorder %s12, 1
    %p51 = scmp.ne.s32.totalorder %s46, %s48
    %p52 = scmp.eq.s32.totalorder %s12, 0
    %p53 = por %p51, %p52
    %p54 = scmp.ne.s32.totalorder %s46, %s48
    %p55 = scmp.eq.s32.totalorder %s17, 1
    %p56 = por %p54, %p55
    %p57 = scmp.ne.s32.totalorder %s48, %s49
    %p58 = scmp.eq.s32.totalorder %s17, 0
    %p59 = por %p57, %p58
    %p60 = scmp.ne.s32.totalorder %s48, %s49
    %p61 = scmp.eq.s32.totalorder %s18, 1
    %p62 = por %p60, %p61
    %p64 = scmp.ne.s32.totalorder %s49, %s63
    %p65 = scmp.eq.s32.totalorder %s18, 0
    %p66 = por %p64, %p65
    %s68 = sadd.s32 %s67, 1
    %p71 = scmp.eq.s32.totalorder %s12, 1
    %p72 = scmp.ne.s32.totalorder %s67, %s69
    %p73 = scmp.eq.s32.totalorder %s12, 0
    %p74 = por %p72, %p73
    %p75 = scmp.ne.s32.totalorder %s67, %s69
    %p76 = scmp.eq.s32.totalorder %s17, 1
    %p77 = por %p75, %p76
    %p78 = scmp.ne.s32.totalorder %s69, %s70
    %p79 = scmp.eq.s32.totalorder %s17, 0
    %p80 = por %p78, %p79
    %p81 = scmp.ne.s32.totalorder %s69, %s70
    %p82 = scmp.eq.s32.totalorder %s18, 1
    %p83 = por %p81, %p82
    %p85 = scmp.ne.s32.totalorder %s70, %s84
    %p86 = scmp.eq.s32.totalorder %s18, 0
    %p87 = por %p85, %p86
    %s89 = sadd.s32 %s88, 1
    %p92 = scmp.eq.s32.totalorder %s12, 1
    %p93 = scmp.ne.s32.totalorder %s88, %s90
    %p94 = scmp.eq.s32.totalorder %s12, 0
    %p95 = por %p93, %p94
    %p96 = scmp.ne.s32.totalorder %s88, %s90
    %p97 = scmp.eq.s32.totalorder %s17, 1
    %p98 = por %p96, %p97
    %p99 = scmp.ne.s32.totalorder %s90, %s91
    %p100 = scmp.eq.s32.totalorder %s17, 0
    %p101 = por %p99, %p100
    %p102 = scmp.ne.s32.totalorder %s90, %s91
    %p103 = scmp.eq.s32.totalorder %s18, 1
    %p104 = por %p102, %p103
    %p106 = scmp.ne.s32.totalorder %s91, %s105
    %p107 = scmp.eq.s32.totalorder %s18, 0
    %p108 = por %p106, %p107
    %s110 = sadd.s32 %s109, 1
    %p113 = scmp.eq.s32.totalorder %s12, 1
    %p114 = scmp.ne.s32.totalorder %s109, %s111
    %p115 = scmp.eq.s32.totalorder %s12, 0
    %p116 = por %p114, %p115
    %p117 = scmp.ne.s32.totalorder %s109, %s111
    %p118 = scmp.eq.s32.totalorder %s17, 1
    %p119 = por %p117, %p118
    %p120 = scmp.ne.s32.totalorder %s111, %s112
    %p121 = scmp.eq.s32.totalorder %s17, 0
    %p122 = por %p120, %p121
    %p123 = scmp.ne.s32.totalorder %s111, %s112
    %p124 = scmp.eq.s32.totalorder %s18, 1
    %p125 = por %p123, %p124
    %p127 = scmp.ne.s32.totalorder %s112, %s126
    %p128 = scmp.eq.s32.totalorder %s18, 0
    %p129 = por %p127, %p128
    %s131 = sadd.s32 %s130, 1
    %p134 = scmp.eq.s32.totalorder %s12, 1
    %p135 = scmp.ne.s32.totalorder %s130, %s132
    %p136 = scmp.eq.s32.totalorder %s12, 0
    %p137 = por %p135, %p136
    %p138 = scmp.ne.s32.totalorder %s130, %s132
    %p139 = scmp.eq.s32.totalorder %s17, 1
    %p140 = por %p138, %p139
    %p141 = scmp.ne.s32.totalorder %s132, %s133
    %p142 = scmp.eq.s32.totalorder %s17, 0
    %p143 = por %p141, %p142
    %p144 = scmp.ne.s32.totalorder %s132, %s133
    %p145 = scmp.eq.s32.totalorder %s18, 1
    %p146 = por %p144, %p145
    %p148 = scmp.ne.s32.totalorder %s133, %s147
    %p149 = scmp.eq.s32.totalorder %s18, 0
    %p150 = por %p148, %p149
    %s151 = ssub.s32 %s12, %s19
    %p152 = scmp.eq.s32.totalorder %s151, 0
    %s154 = sadd.s32 %s153, 1
    %s155 = scalar_select %p152, %s153, %s154
    %p158 = pneg %p152
    %p159 = scmp.eq.s32.totalorder %s12, 1
    %p160 = por %p158, %p159
    %p161 = scmp.ne.s32.totalorder %s153, %s156
    %p162 = scmp.eq.s32.totalorder %s12, 0
    %p163 = por %p161, %p162
    %p164 = scmp.ne.s32.totalorder %s153, %s156
    %p165 = scmp.eq.s32.totalorder %s17, 1
    %p166 = por %p164, %p165
    %p167 = scmp.ne.s32.totalorder %s156, %s157
    %p168 = scmp.eq.s32.totalorder %s17, 0
    %p169 = por %p167, %p168
    %p170 = scmp.ne.s32.totalorder %s156, %s157
    %p171 = scmp.eq.s32.totalorder %s18, 1
    %p172 = por %p170, %p171
    %p174 = scmp.ne.s32.totalorder %s157, %s173
    %p175 = scmp.eq.s32.totalorder %s18, 0
    %p176 = por %p174, %p175
    %p177 = scmp.le.s32.totalorder 1, %s12
    %p178 = scmp.lt.s32.totalorder %s12, 3
    %p179 = pnand %p177, %p178
    %p180 = pneg %p179
    // Predicated region
    $region9: #{double_conv_relu.1} parent=5 // pred_check
      _
    $region10: #{double_conv_relu.1} parent=5 // pred_check_branch
      %182 = sbr.rel (%p179) target = $region12
    $region11: #{double_conv_relu.1} parent=5 // pred_region
      %s183 = ssub.s32 %s12, 1
      // Predicated region
      $region13: #{double_conv_relu.1} parent=11 // pred_check
        %p184 = pneg %p59
      $region14: #{double_conv_relu.1} parent=11 // pred_check_branch
        %186 = sbr.rel (%p184) target = $region16
      $region15: #{double_conv_relu.1} parent=11 // pred_region
        _
      $region16: #{double_conv_relu.1} parent=11 // pred_fallthru
        _
      // Predicated region
      $region17: #{double_conv_relu.1} parent=11 // pred_check
        %p187 = pneg %p80
      $region18: #{double_conv_relu.1} parent=11 // pred_check_branch
        %189 = sbr.rel (%p187) target = $region20
      $region19: #{double_conv_relu.1} parent=11 // pred_region
        _
      $region20: #{double_conv_relu.1} parent=11 // pred_fallthru
        _
      // Predicated region
      $region21: #{double_conv_relu.1} parent=11 // pred_check
        %p190 = pneg %p101
      $region22: #{double_conv_relu.1} parent=11 // pred_check_branch
        %192 = sbr.rel (%p190) target = $region24
      $region23: #{double_conv_relu.1} parent=11 // pred_region
        _
      $region24: #{double_conv_relu.1} parent=11 // pred_fallthru
        _
      // Predicated region
      $region25: #{double_conv_relu.1} parent=11 // pred_check
        %p193 = pneg %p122
      $region26: #{double_conv_relu.1} parent=11 // pred_check_branch
        %195 = sbr.rel (%p193) target = $region28
      $region27: #{double_conv_relu.1} parent=11 // pred_region
        _
      $region28: #{double_conv_relu.1} parent=11 // pred_fallthru
        _
      // Predicated region
      $region29: #{double_conv_relu.1} parent=11 // pred_check
        %p196 = pneg %p143
      $region30: #{double_conv_relu.1} parent=11 // pred_check_branch
        %198 = sbr.rel (%p196) target = $region32
      $region31: #{double_conv_relu.1} parent=11 // pred_region
        _
      $region32: #{double_conv_relu.1} parent=11 // pred_fallthru
        _
    $region12: #{double_conv_relu.1} parent=5 // pred_fallthru
      _
    %p199 = scmp.lt.s32.totalorder %s12, 2
    // Predicated region
    $region33: #{double_conv_relu.1} parent=5 // pred_check
      %p200 = pneg %p199
    $region34: #{double_conv_relu.1} parent=5 // pred_check_branch
      %202 = sbr.rel (%p200) target = $region36
    $region35: #{double_conv_relu.1} parent=5 // pred_region
      // Predicated region
      $region37: #{double_conv_relu.1} parent=35 // pred_check
        %p203 = pneg %p32
      $region38: #{double_conv_relu.1} parent=35 // pred_check_branch
        %205 = sbr.rel (%p203) target = $region40
      $region39: #{double_conv_relu.1} parent=35 // pred_region
        %p206 = scmp.lt.s32.totalorder %s12, 1
        %s207 = scalar_select %p206, %s12, 1
        %s208 = smul.addr %s207, 43
        %s209 = smul.addr %s208, 8
        %s210 = scalar_lea.vmem %s0, %s209
      $region40: #{double_conv_relu.1} parent=35 // pred_fallthru
        _
    $region36: #{double_conv_relu.1} parent=5 // pred_fallthru
      _
    %p211 = scmp.le.s32.totalorder 1, %s12
    %p212 = scmp.lt.s32.totalorder %s12, 3
    %p213 = pnand %p211, %p212
    %p214 = pneg %p213
    // Predicated region
    $region41: #{double_conv_relu.1} parent=5 // pred_check
      _
    $region42: #{double_conv_relu.1} parent=5 // pred_check_branch
      %216 = sbr.rel (%p213) target = $region44
    $region43: #{double_conv_relu.1} parent=5 // pred_region
      %s217 = ssub.s32 %s12, 1
      %p218 = scmp.lt.s32.totalorder %s17, 1
      %s219 = scalar_select %p218, %s17, 1
      %s220 = smul.addr %s219, 43
      %s221 = smul.addr %s220, 8
      %s222 = scalar_lea.vmem %s0, %s221
      %p223 = pneg %p38
      %p224 = pneg %p35
      %p225 = pneg %p59
      %p226 = pneg %p56
      %p227 = pneg %p80
      %p228 = pneg %p77
      %p229 = pneg %p101
      %p230 = pneg %p98
      %p231 = pneg %p122
      %p232 = pneg %p119
      %p233 = pneg %p143
      %p234 = pneg %p140
      %p235 = pneg %p169
      %p236 = pneg %p166
      %p237 = scmp.lt.s32.totalorder %s17, 1
      %s238 = scalar_select %p237, %s17, 1
      %s239 = smul.addr %s238, 36
      %s240 = smul.addr %s239, 8
      %s241 = scalar_lea.vmem %s6, %s240
      %p242 = scmp.lt.s32.totalorder %s17, 1
      %s243 = scalar_select %p242, %s17, 1
      %s244 = smul.addr %s243, 43
      %s245 = smul.addr %s244, 8
      %s246 = scalar_lea.vmem %s0, %s245
      %p247 = scmp.lt.s32.totalorder %s17, 1
      %s248 = scalar_select %p247, %s17, 1
      %s249 = smul.addr %s248, 36
      %s250 = smul.addr %s249, 8
      %s251 = scalar_lea.vmem %s6, %s250
      %v253 = vld [vmem:[%s246] sm:$0xff]
      %v254 = vld [vmem:[%s246 + $0x8] sm:$0xff]
      %v255 = vld [vmem:[%s246 + $0x10] sm:$0xff]
      %v256 = vld [vmem:[%s246 + $0x18] sm:$0xff]
      %v257 = vld [vmem:[%s246 + $0x20] sm:$0xff]
      %v258 = vld [vmem:[%s246 + $0x28] sm:$0xff]
      %v259 = vld [vmem:[%s246 + $0x30] sm:$0xff]
      %v260 = vld [vmem:[%s246 + $0x38] sm:$0xff]
      %v261 = vld [vmem:[%s246 + $0x40] sm:$0xff]
      %v262 = vld [vmem:[%s246 + $0x48] sm:$0xff]
      %v263 = vld [vmem:[%s246 + $0x50] sm:$0xff]
      %v264 = vld [vmem:[%s246 + $0x58] sm:$0xff]
      %v265 = vld [vmem:[%s246 + $0x60] sm:$0xff]
      %v266 = vld [vmem:[%s246 + $0x68] sm:$0xff]
      %v267 = vld [vmem:[%s246 + $0x70] sm:$0xff]
      %v268 = vld [vmem:[%s246 + $0x78] sm:$0xff]
      %v269 = vld [vmem:[%s246 + $0x80] sm:$0xff]
      %v270 = vld [vmem:[%s246 + $0x88] sm:$0xff]
      %v271 = vld [vmem:[%s246 + $0x90] sm:$0xff]
      %v272 = vld [vmem:[%s246 + $0x98] sm:$0xff]
      %v273 = vld [vmem:[%s246 + $0xa0] sm:$0xff]
      %v274 = vld [vmem:[%s246 + $0xa8] sm:$0xff]
      %v275 = vld [vmem:[%s246 + $0xb0] sm:$0xff]
      %v276 = vld [vmem:[%s246 + $0xb8] sm:$0xff]
      %v277 = vld [vmem:[%s246 + $0xc0] sm:$0xff]
      %v278 = vld [vmem:[%s246 + $0xc8] sm:$0xff]
      %v279 = vld [vmem:[%s246 + $0xd0] sm:$0xff]
      %v280 = vld [vmem:[%s246 + $0xd8] sm:$0xff]
      %v281 = vld [vmem:[%s246 + $0xe0] sm:$0xff]
      %v282 = vld [vmem:[%s246 + $0xe8] sm:$0xff]
      %v283 = vld [vmem:[%s246 + $0xf0] sm:$0xff]
      %v284 = vld [vmem:[%s246 + $0xf8] sm:$0xff]
      %v285 = vld [vmem:[%s246 + $0x100] sm:$0xff]
      %v286 = vld [vmem:[%s246 + $0x108] sm:$0xff]
      %v287 = vld [vmem:[%s246 + $0x110] sm:$0xff]
      %v288 = vld [vmem:[%s246 + $0x118] sm:$0xff]
      %v289 = vpack.c.bf16 %v254, %v253
      %v290 = vpack.c.bf16 %v256, %v255
      %v291 = vpack.c.bf16 %v258, %v257
      %v292 = vpack.c.bf16 %v260, %v259
      %v293 = vpack.c.bf16 %v262, %v261
      %v294 = vpack.c.bf16 %v264, %v263
      %v295 = vpack.c.bf16 %v266, %v265
      %v296 = vpack.c.bf16 %v268, %v267
      %v297 = vpack.c.bf16 %v270, %v269
      %v298 = vpack.c.bf16 %v272, %v271
      %v299 = vpack.c.bf16 %v274, %v273
      %v300 = vpack.c.bf16 %v276, %v275
      %v301 = vpack.c.bf16 %v278, %v277
      %v302 = vpack.c.bf16 %v280, %v279
      %v303 = vpack.c.bf16 %v282, %v281
      %v304 = vpack.c.bf16 %v284, %v283
      %v305 = vpack.c.bf16 %v286, %v285
      %v306 = vpack.c.bf16 %v288, %v287
      %v307 = vld [vmem:[%s1] sm:$0x3]
      %v308 = vld [vmem:[%s246 + $0x1] sm:$0xff]
      %v309 = vld [vmem:[%s246 + $0x9] sm:$0xff]
      %v310 = vld [vmem:[%s246 + $0x11] sm:$0xff]
      %v311 = vld [vmem:[%s246 + $0x19] sm:$0xff]
      %v312 = vld [vmem:[%s246 + $0x21] sm:$0xff]
      %v313 = vld [vmem:[%s246 + $0x29] sm:$0xff]
      %v314 = vld [vmem:[%s246 + $0x31] sm:$0xff]
      %v315 = vld [vmem:[%s246 + $0x39] sm:$0xff]
      %v316 = vld [vmem:[%s246 + $0x41] sm:$0xff]
      %v317 = vld [vmem:[%s246 + $0x49] sm:$0xff]
      %v318 = vld [vmem:[%s246 + $0x51] sm:$0xff]
      %v319 = vld [vmem:[%s246 + $0x59] sm:$0xff]
      %v320 = vld [vmem:[%s246 + $0x61] sm:$0xff]
      %v321 = vld [vmem:[%s246 + $0x69] sm:$0xff]
      %v322 = vld [vmem:[%s246 + $0x71] sm:$0xff]
      %v323 = vld [vmem:[%s246 + $0x79] sm:$0xff]
      %v324 = vld [vmem:[%s246 + $0x81] sm:$0xff]
      %v325 = vld [vmem:[%s246 + $0x89] sm:$0xff]
      %v326 = vld [vmem:[%s246 + $0x91] sm:$0xff]
      %v327 = vld [vmem:[%s246 + $0x99] sm:$0xff]
      %v328 = vld [vmem:[%s246 + $0xa1] sm:$0xff]
      %v329 = vld [vmem:[%s246 + $0xa9] sm:$0xff]
      %v330 = vld [vmem:[%s246 + $0xb1] sm:$0xff]
      %v331 = vld [vmem:[%s246 + $0xb9] sm:$0xff]
      %v332 = vld [vmem:[%s246 + $0xc1] sm:$0xff]
      %v333 = vld [vmem:[%s246 + $0xc9] sm:$0xff]
      %v334 = vld [vmem:[%s246 + $0xd1] sm:$0xff]
      %v335 = vld [vmem:[%s246 + $0xd9] sm:$0xff]
      %v336 = vld [vmem:[%s246 + $0xe1] sm:$0xff]
      %v337 = vld [vmem:[%s246 + $0xe9] sm:$0xff]
      %v338 = vld [vmem:[%s246 + $0xf1] sm:$0xff]
      %v339 = vld [vmem:[%s246 + $0xf9] sm:$0xff]
      %v340 = vld [vmem:[%s246 + $0x101] sm:$0xff]
      %v341 = vld [vmem:[%s246 + $0x109] sm:$0xff]
      %v342 = vld [vmem:[%s246 + $0x111] sm:$0xff]
      %v343 = vld [vmem:[%s246 + $0x119] sm:$0xff]
      %v344 = vpack.c.bf16 %v309, %v308
      %v345 = vpack.c.bf16 %v311, %v310
      %v346 = vpack.c.bf16 %v313, %v312
      %v347 = vpack.c.bf16 %v315, %v314
      %v348 = vpack.c.bf16 %v317, %v316
      %v349 = vpack.c.bf16 %v319, %v318
      %v350 = vpack.c.bf16 %v321, %v320
      %v351 = vpack.c.bf16 %v323, %v322
      %v352 = vpack.c.bf16 %v325, %v324
      %v353 = vpack.c.bf16 %v327, %v326
      %v354 = vpack.c.bf16 %v329, %v328
      %v355 = vpack.c.bf16 %v331, %v330
      %v356 = vpack.c.bf16 %v333, %v332
      %v357 = vpack.c.bf16 %v335, %v334
      %v358 = vpack.c.bf16 %v337, %v336
      %v359 = vpack.c.bf16 %v339, %v338
      %v360 = vpack.c.bf16 %v341, %v340
      %v361 = vpack.c.bf16 %v343, %v342
      %s362 = scalar_lea.vmem %s1, 2
      %v363 = vld [vmem:[%s362] sm:$0x3]
      %vm364 = vcmask 31744
      %v366 = vsel %vm364, %v344, 0
      %v369 = vsel %vm364, %v345, 0
      %v372 = vsel %vm364, %v346, 0
      %v375 = vsel %vm364, %v347, 0
      %v378 = vsel %vm364, %v348, 0
      %v381 = vsel %vm364, %v349, 0
      %v384 = vsel %vm364, %v350, 0
      %v387 = vsel %vm364, %v351, 0
      %v390 = vsel %vm364, %v352, 0
      %v393 = vsel %vm364, %v353, 0
      %v396 = vsel %vm364, %v354, 0
      %v399 = vsel %vm364, %v355, 0
      %v402 = vsel %vm364, %v356, 0
      %v405 = vsel %vm364, %v357, 0
      %v408 = vsel %vm364, %v358, 0
      %v411 = vsel %vm364, %v359, 0
      %v414 = vsel %vm364, %v360, 0
      %v417 = vsel %vm364, %v361, 0
      %vm419 = vcmask 1041408
      %v421 = vsel %vm419, %v363, 0
      %423 = vmatpush.bf16.msra.mxu0 0
      %424 = vmatpush.bf16.msra.mxu0 0
      %425 = vmatpush.bf16.msra.mxu0 0
      %426 = vmatpush.bf16.msra.mxu0 0
      %427 = vmatpush.bf16.msra.mxu0 0
      %428 = vmatpush.bf16.msra.mxu0 0
      %429 = vmatpush.bf16.msra.mxu0 0
      %430 = vmatpush.bf16.msra.mxu0 %v421
      %431 = vmatmul.bf16.gmra.mxu0 %v366
      %v432 = vpop.f32.mrf.mxu0
      %v433 = vadd.f32 0.0, %v432
      %v434 = vpop.f32.mrf.mxu0
      %v435 = vadd.f32 0.0, %v434
      %436 = vmatmul.bf16.gmra.mxu0 %v369
      %v437 = vpop.f32.mrf.mxu0
      %v438 = vadd.f32 0.0, %v437
      %v439 = vpop.f32.mrf.mxu0
      %v440 = vadd.f32 0.0, %v439
      %441 = vmatmul.bf16.gmra.mxu0 %v372
      %v442 = vpop.f32.mrf.mxu0
      %v443 = vadd.f32 0.0, %v442
      %v444 = vpop.f32.mrf.mxu0
      %v445 = vadd.f32 0.0, %v444
      %446 = vmatmul.bf16.gmra.mxu0 %v375
      %v447 = vpop.f32.mrf.mxu0
      %v448 = vadd.f32 0.0, %v447
      %v449 = vpop.f32.mrf.mxu0
      %v450 = vadd.f32 0.0, %v449
      %451 = vmatmul.bf16.gmra.mxu0 %v378
      %v452 = vpop.f32.mrf.mxu0
      %v453 = vadd.f32 0.0, %v452
      %v454 = vpop.f32.mrf.mxu0
      %v455 = vadd.f32 0.0, %v454
      %456 = vmatmul.bf16.gmra.mxu0 %v381
      %v457 = vpop.f32.mrf.mxu0
      %v458 = vadd.f32 0.0, %v457
      %v459 = vpop.f32.mrf.mxu0
      %v460 = vadd.f32 0.0, %v459
      %461 = vmatmul.bf16.gmra.mxu0 %v384
      %v462 = vpop.f32.mrf.mxu0
      %v463 = vadd.f32 0.0, %v462
      %v464 = vpop.f32.mrf.mxu0
      %v465 = vadd.f32 0.0, %v464
      %466 = vmatmul.bf16.gmra.mxu0 %v387
      %v467 = vpop.f32.mrf.mxu0
      %v468 = vadd.f32 0.0, %v467
      %v469 = vpop.f32.mrf.mxu0
      %v470 = vadd.f32 0.0, %v469
      %471 = vmatmul.bf16.gmra.mxu0 %v390
      %v472 = vpop.f32.mrf.mxu0
      %v473 = vadd.f32 0.0, %v472
      %v474 = vpop.f32.mrf.mxu0
      %v475 = vadd.f32 0.0, %v474
      %476 = vmatmul.bf16.gmra.mxu0 %v393
      %v477 = vpop.f32.mrf.mxu0
      %v478 = vadd.f32 0.0, %v477
      %v479 = vpop.f32.mrf.mxu0
      %v480 = vadd.f32 0.0, %v479
      %481 = vmatmul.bf16.gmra.mxu0 %v396
      %v482 = vpop.f32.mrf.mxu0
      %v483 = vadd.f32 0.0, %v482
      %v484 = vpop.f32.mrf.mxu0
      %v485 = vadd.f32 0.0, %v484
      %486 = vmatmul.bf16.gmra.mxu0 %v399
      %v487 = vpop.f32.mrf.mxu0
      %v488 = vadd.f32 0.0, %v487
      %v489 = vpop.f32.mrf.mxu0
      %v490 = vadd.f32 0.0, %v489
      %491 = vmatmul.bf16.gmra.mxu0 %v402
      %v492 = vpop.f32.mrf.mxu0
      %v493 = vadd.f32 0.0, %v492
      %v494 = vpop.f32.mrf.mxu0
      %v495 = vadd.f32 0.0, %v494
      %496 = vmatmul.bf16.gmra.mxu0 %v405
      %v497 = vpop.f32.mrf.mxu0
      %v498 = vadd.f32 0.0, %v497
      %v499 = vpop.f32.mrf.mxu0
      %v500 = vadd.f32 0.0, %v499
      %501 = vmatmul.bf16.gmra.mxu0 %v408
      %v502 = vpop.f32.mrf.mxu0
      %v503 = vadd.f32 0.0, %v502
      %v504 = vpop.f32.mrf.mxu0
      %v505 = vadd.f32 0.0, %v504
      %506 = vmatmul.bf16.gmra.mxu0 %v411
      %v507 = vpop.f32.mrf.mxu0
      %v508 = vadd.f32 0.0, %v507
      %v509 = vpop.f32.mrf.mxu0
      %v510 = vadd.f32 0.0, %v509
      %511 = vmatmul.bf16.gmra.mxu0 %v414
      %v512 = vpop.f32.mrf.mxu0
      %v513 = vadd.f32 0.0, %v512
      %v514 = vpop.f32.mrf.mxu0
      %v515 = vadd.f32 0.0, %v514
      %516 = vmatmul.bf16.gmra.mxu0 %v417
      %v517 = vpop.f32.mrf.mxu0
      %v518 = vadd.f32 0.0, %v517
      %v519 = vpop.f32.mrf.mxu0
      %v520 = vadd.f32 0.0, %v519
      %521 = vdwg.mxu0
      %v523 = vsel %vm364, %v289, 0
      %v526 = vsel %vm364, %v290, 0
      %v529 = vsel %vm364, %v291, 0
      %v532 = vsel %vm364, %v292, 0
      %v535 = vsel %vm364, %v293, 0
      %v538 = vsel %vm364, %v294, 0
      %v541 = vsel %vm364, %v295, 0
      %v544 = vsel %vm364, %v296, 0
      %v547 = vsel %vm364, %v297, 0
      %v550 = vsel %vm364, %v298, 0
      %v553 = vsel %vm364, %v299, 0
      %v556 = vsel %vm364, %v300, 0
      %v559 = vsel %vm364, %v301, 0
      %v562 = vsel %vm364, %v302, 0
      %v565 = vsel %vm364, %v303, 0
      %v568 = vsel %vm364, %v304, 0
      %v571 = vsel %vm364, %v305, 0
      %v574 = vsel %vm364, %v306, 0
      %v577 = vsel %vm419, %v307, 0
      %579 = vmatpush.bf16.msra.mxu0 0
      %580 = vmatpush.bf16.msra.mxu0 0
      %581 = vmatpush.bf16.msra.mxu0 0
      %582 = vmatpush.bf16.msra.mxu0 0
      %583 = vmatpush.bf16.msra.mxu0 0
      %584 = vmatpush.bf16.msra.mxu0 0
      %585 = vmatpush.bf16.msra.mxu0 0
      %586 = vmatpush.bf16.msra.mxu0 %v577
      %587 = vmatmul.bf16.gmra.mxu0 %v523
      %v588 = vpop.f32.mrf.mxu0
      %v589 = vadd.f32 %v433, %v588
      %v590 = vpop.f32.mrf.mxu0
      %v591 = vadd.f32 %v435, %v590
      %592 = vmatmul.bf16.gmra.mxu0 %v526
      %v593 = vpop.f32.mrf.mxu0
      %v594 = vadd.f32 %v438, %v593
      %v595 = vpop.f32.mrf.mxu0
      %v596 = vadd.f32 %v440, %v595
      %597 = vmatmul.bf16.gmra.mxu0 %v529
      %v598 = vpop.f32.mrf.mxu0
      %v599 = vadd.f32 %v443, %v598
      %v600 = vpop.f32.mrf.mxu0
      %v601 = vadd.f32 %v445, %v600
      %602 = vmatmul.bf16.gmra.mxu0 %v532
      %v603 = vpop.f32.mrf.mxu0
      %v604 = vadd.f32 %v448, %v603
      %v605 = vpop.f32.mrf.mxu0
      %v606 = vadd.f32 %v450, %v605
      %607 = vmatmul.bf16.gmra.mxu0 %v535
      %v608 = vpop.f32.mrf.mxu0
      %v609 = vadd.f32 %v453, %v608
      %v610 = vpop.f32.mrf.mxu0
      %v611 = vadd.f32 %v455, %v610
      %612 = vmatmul.bf16.gmra.mxu0 %v538
      %v613 = vpop.f32.mrf.mxu0
      %v614 = vadd.f32 %v458, %v613
      %v615 = vpop.f32.mrf.mxu0
      %v616 = vadd.f32 %v460, %v615
      %617 = vmatmul.bf16.gmra.mxu0 %v541
      %v618 = vpop.f32.mrf.mxu0
      %v619 = vadd.f32 %v463, %v618
      %v620 = vpop.f32.mrf.mxu0
      %v621 = vadd.f32 %v465, %v620
      %622 = vmatmul.bf16.gmra.mxu0 %v544
      %v623 = vpop.f32.mrf.mxu0
      %v624 = vadd.f32 %v468, %v623
      %v625 = vpop.f32.mrf.mxu0
      %v626 = vadd.f32 %v470, %v625
      %627 = vmatmul.bf16.gmra.mxu0 %v547
      %v628 = vpop.f32.mrf.mxu0
      %v629 = vadd.f32 %v473, %v628
      %v630 = vpop.f32.mrf.mxu0
      %v631 = vadd.f32 %v475, %v630
      %632 = vmatmul.bf16.gmra.mxu0 %v550
      %v633 = vpop.f32.mrf.mxu0
      %v634 = vadd.f32 %v478, %v633
      %v635 = vpop.f32.mrf.mxu0
      %v636 = vadd.f32 %v480, %v635
      %637 = vmatmul.bf16.gmra.mxu0 %v553
      %v638 = vpop.f32.mrf.mxu0
      %v639 = vadd.f32 %v483, %v638
      %v640 = vpop.f32.mrf.mxu0
      %v641 = vadd.f32 %v485, %v640
      %642 = vmatmul.bf16.gmra.mxu0 %v556
      %v643 = vpop.f32.mrf.mxu0
      %v644 = vadd.f32 %v488, %v643
      %v645 = vpop.f32.mrf.mxu0
      %v646 = vadd.f32 %v490, %v645
      %647 = vmatmul.bf16.gmra.mxu0 %v559
      %v648 = vpop.f32.mrf.mxu0
      %v649 = vadd.f32 %v493, %v648
      %v650 = vpop.f32.mrf.mxu0
      %v651 = vadd.f32 %v495, %v650
      %652 = vmatmul.bf16.gmra.mxu0 %v562
      %v653 = vpop.f32.mrf.mxu0
      %v654 = vadd.f32 %v498, %v653
      %v655 = vpop.f32.mrf.mxu0
      %v656 = vadd.f32 %v500, %v655
      %657 = vmatmul.bf16.gmra.mxu0 %v565
      %v658 = vpop.f32.mrf.mxu0
      %v659 = vadd.f32 %v503, %v658
      %v660 = vpop.f32.mrf.mxu0
      %v661 = vadd.f32 %v505, %v660
      %662 = vmatmul.bf16.gmra.mxu0 %v568
      %v663 = vpop.f32.mrf.mxu0
      %v664 = vadd.f32 %v508, %v663
      %v665 = vpop.f32.mrf.mxu0
      %v666 = vadd.f32 %v510, %v665
      %667 = vmatmul.bf16.gmra.mxu0 %v571
      %v668 = vpop.f32.mrf.mxu0
      %v669 = vadd.f32 %v513, %v668
      %v670 = vpop.f32.mrf.mxu0
      %v671 = vadd.f32 %v515, %v670
      %672 = vmatmul.bf16.gmra.mxu0 %v574
      %v673 = vpop.f32.mrf.mxu0
      %v674 = vadd.f32 %v518, %v673
      %v675 = vpop.f32.mrf.mxu0
      %v676 = vadd.f32 %v520, %v675
      %677 = vdwg.mxu0
      %v678 = vld [vmem:[%s246 + $0x2] sm:$0xff]
      %v679 = vld [vmem:[%s246 + $0xa] sm:$0xff]
      %v680 = vld [vmem:[%s246 + $0x12] sm:$0xff]
      %v681 = vld [vmem:[%s246 + $0x1a] sm:$0xff]
      %v682 = vld [vmem:[%s246 + $0x22] sm:$0xff]
      %v683 = vld [vmem:[%s246 + $0x2a] sm:$0xff]
      %v684 = vld [vmem:[%s246 + $0x32] sm:$0xff]
      %v685 = vld [vmem:[%s246 + $0x3a] sm:$0xff]
      %v686 = vld [vmem:[%s246 + $0x42] sm:$0xff]
      %v687 = vld [vmem:[%s246 + $0x4a] sm:$0xff]
      %v688 = vld [vmem:[%s246 + $0x52] sm:$0xff]
      %v689 = vld [vmem:[%s246 + $0x5a] sm:$0xff]
      %v690 = vld [vmem:[%s246 + $0x62] sm:$0xff]
      %v691 = vld [vmem:[%s246 + $0x6a] sm:$0xff]
      %v692 = vld [vmem:[%s246 + $0x72] sm:$0xff]
      %v693 = vld [vmem:[%s246 + $0x7a] sm:$0xff]
      %v694 = vld [vmem:[%s246 + $0x82] sm:$0xff]
      %v695 = vld [vmem:[%s246 + $0x8a] sm:$0xff]
      %v696 = vld [vmem:[%s246 + $0x92] sm:$0xff]
      %v697 = vld [vmem:[%s246 + $0x9a] sm:$0xff]
      %v698 = vld [vmem:[%s246 + $0xa2] sm:$0xff]
      %v699 = vld [vmem:[%s246 + $0xaa] sm:$0xff]
      %v700 = vld [vmem:[%s246 + $0xb2] sm:$0xff]
      %v701 = vld [vmem:[%s246 + $0xba] sm:$0xff]
      %v702 = vld [vmem:[%s246 + $0xc2] sm:$0xff]
      %v703 = vld [vmem:[%s246 + $0xca] sm:$0xff]
      %v704 = vld [vmem:[%s246 + $0xd2] sm:$0xff]
      %v705 = vld [vmem:[%s246 + $0xda] sm:$0xff]
      %v706 = vld [vmem:[%s246 + $0xe2] sm:$0xff]
      %v707 = vld [vmem:[%s246 + $0xea] sm:$0xff]
      %v708 = vld [vmem:[%s246 + $0xf2] sm:$0xff]
      %v709 = vld [vmem:[%s246 + $0xfa] sm:$0xff]
      %v710 = vld [vmem:[%s246 + $0x102] sm:$0xff]
      %v711 = vld [vmem:[%s246 + $0x10a] sm:$0xff]
      %v712 = vld [vmem:[%s246 + $0x112] sm:$0xff]
      %v713 = vld [vmem:[%s246 + $0x11a] sm:$0xff]
      %v714 = vpack.c.bf16 %v679, %v678
      %v715 = vpack.c.bf16 %v681, %v680
      %v716 = vpack.c.bf16 %v683, %v682
      %v717 = vpack.c.bf16 %v685, %v684
      %v718 = vpack.c.bf16 %v687, %v686
      %v719 = vpack.c.bf16 %v689, %v688
      %v720 = vpack.c.bf16 %v691, %v690
      %v721 = vpack.c.bf16 %v693, %v692
      %v722 = vpack.c.bf16 %v695, %v694
      %v723 = vpack.c.bf16 %v697, %v696
      %v724 = vpack.c.bf16 %v699, %v698
      %v725 = vpack.c.bf16 %v701, %v700
      %v726 = vpack.c.bf16 %v703, %v702
      %v727 = vpack.c.bf16 %v705, %v704
      %v728 = vpack.c.bf16 %v707, %v706
      %v729 = vpack.c.bf16 %v709, %v708
      %v730 = vpack.c.bf16 %v711, %v710
      %v731 = vpack.c.bf16 %v713, %v712
      %s732 = scalar_lea.vmem %s1, 4
      %v733 = vld [vmem:[%s732] sm:$0x3]
      %v735 = vsel %vm364, %v714, 0
      %v738 = vsel %vm364, %v715, 0
      %v741 = vsel %vm364, %v716, 0
      %v744 = vsel %vm364, %v717, 0
      %v747 = vsel %vm364, %v718, 0
      %v750 = vsel %vm364, %v719, 0
      %v753 = vsel %vm364, %v720, 0
      %v756 = vsel %vm364, %v721, 0
      %v759 = vsel %vm364, %v722, 0
      %v762 = vsel %vm364, %v723, 0
      %v765 = vsel %vm364, %v724, 0
      %v768 = vsel %vm364, %v725, 0
      %v771 = vsel %vm364, %v726, 0
      %v774 = vsel %vm364, %v727, 0
      %v777 = vsel %vm364, %v728, 0
      %v780 = vsel %vm364, %v729, 0
      %v783 = vsel %vm364, %v730, 0
      %v786 = vsel %vm364, %v731, 0
      %v789 = vsel %vm419, %v733, 0
      %791 = vmatpush.bf16.msra.mxu0 0
      %792 = vmatpush.bf16.msra.mxu0 0
      %793 = vmatpush.bf16.msra.mxu0 0
      %794 = vmatpush.bf16.msra.mxu0 0
      %795 = vmatpush.bf16.msra.mxu0 0
      %796 = vmatpush.bf16.msra.mxu0 0
      %797 = vmatpush.bf16.msra.mxu0 0
      %798 = vmatpush.bf16.msra.mxu0 %v789
      %799 = vmatmul.bf16.gmra.mxu0 %v735
      %v800 = vpop.f32.mrf.mxu0
      %v801 = vadd.f32 0.0, %v800
      %v802 = vpop.f32.mrf.mxu0
      %v803 = vadd.f32 0.0, %v802
      %804 = vmatmul.bf16.gmra.mxu0 %v738
      %v805 = vpop.f32.mrf.mxu0
      %v806 = vadd.f32 0.0, %v805
      %v807 = vpop.f32.mrf.mxu0
      %v808 = vadd.f32 0.0, %v807
      %809 = vmatmul.bf16.gmra.mxu0 %v741
      %v810 = vpop.f32.mrf.mxu0
      %v811 = vadd.f32 0.0, %v810
      %v812 = vpop.f32.mrf.mxu0
      %v813 = vadd.f32 0.0, %v812
      %814 = vmatmul.bf16.gmra.mxu0 %v744
      %v815 = vpop.f32.mrf.mxu0
      %v816 = vadd.f32 0.0, %v815
      %v817 = vpop.f32.mrf.mxu0
      %v818 = vadd.f32 0.0, %v817
      %819 = vmatmul.bf16.gmra.mxu0 %v747
      %v820 = vpop.f32.mrf.mxu0
      %v821 = vadd.f32 0.0, %v820
      %v822 = vpop.f32.mrf.mxu0
      %v823 = vadd.f32 0.0, %v822
      %824 = vmatmul.bf16.gmra.mxu0 %v750
      %v825 = vpop.f32.mrf.mxu0
      %v826 = vadd.f32 0.0, %v825
      %v827 = vpop.f32.mrf.mxu0
      %v828 = vadd.f32 0.0, %v827
      %829 = vmatmul.bf16.gmra.mxu0 %v753
      %v830 = vpop.f32.mrf.mxu0
      %v831 = vadd.f32 0.0, %v830
      %v832 = vpop.f32.mrf.mxu0
      %v833 = vadd.f32 0.0, %v832
      %834 = vmatmul.bf16.gmra.mxu0 %v756
      %v835 = vpop.f32.mrf.mxu0
      %v836 = vadd.f32 0.0, %v835
      %v837 = vpop.f32.mrf.mxu0
      %v838 = vadd.f32 0.0, %v837
      %839 = vmatmul.bf16.gmra.mxu0 %v759
      %v840 = vpop.f32.mrf.mxu0
      %v841 = vadd.f32 0.0, %v840
      %v842 = vpop.f32.mrf.mxu0
      %v843 = vadd.f32 0.0, %v842
      %844 = vmatmul.bf16.gmra.mxu0 %v762
      %v845 = vpop.f32.mrf.mxu0
      %v846 = vadd.f32 0.0, %v845
      %v847 = vpop.f32.mrf.mxu0
      %v848 = vadd.f32 0.0, %v847
      %849 = vmatmul.bf16.gmra.mxu0 %v765
      %v850 = vpop.f32.mrf.mxu0
      %v851 = vadd.f32 0.0, %v850
      %v852 = vpop.f32.mrf.mxu0
      %v853 = vadd.f32 0.0, %v852
      %854 = vmatmul.bf16.gmra.mxu0 %v768
      %v855 = vpop.f32.mrf.mxu0
      %v856 = vadd.f32 0.0, %v855
      %v857 = vpop.f32.mrf.mxu0
      %v858 = vadd.f32 0.0, %v857
      %859 = vmatmul.bf16.gmra.mxu0 %v771
      %v860 = vpop.f32.mrf.mxu0
      %v861 = vadd.f32 0.0, %v860
      %v862 = vpop.f32.mrf.mxu0
      %v863 = vadd.f32 0.0, %v862
      %864 = vmatmul.bf16.gmra.mxu0 %v774
      %v865 = vpop.f32.mrf.mxu0
      %v866 = vadd.f32 0.0, %v865
      %v867 = vpop.f32.mrf.mxu0
      %v868 = vadd.f32 0.0, %v867
      %869 = vmatmul.bf16.gmra.mxu0 %v777
      %v870 = vpop.f32.mrf.mxu0
      %v871 = vadd.f32 0.0, %v870
      %v872 = vpop.f32.mrf.mxu0
      %v873 = vadd.f32 0.0, %v872
      %874 = vmatmul.bf16.gmra.mxu0 %v780
      %v875 = vpop.f32.mrf.mxu0
      %v876 = vadd.f32 0.0, %v875
      %v877 = vpop.f32.mrf.mxu0
      %v878 = vadd.f32 0.0, %v877
      %879 = vmatmul.bf16.gmra.mxu0 %v783
      %v880 = vpop.f32.mrf.mxu0
      %v881 = vadd.f32 0.0, %v880
      %v882 = vpop.f32.mrf.mxu0
      %v883 = vadd.f32 0.0, %v882
      %884 = vmatmul.bf16.gmra.mxu0 %v786
      %v885 = vpop.f32.mrf.mxu0
      %v886 = vadd.f32 0.0, %v885
      %v887 = vpop.f32.mrf.mxu0
      %v888 = vadd.f32 0.0, %v887
      %889 = vdwg.mxu0
      %v890 = vadd.f32 %v589, %v801
      %v891 = vadd.f32 %v591, %v803
      %v892 = vadd.f32 %v594, %v806
      %v893 = vadd.f32 %v596, %v808
      %v894 = vadd.f32 %v599, %v811
      %v895 = vadd.f32 %v601, %v813
      %v896 = vadd.f32 %v604, %v816
      %v897 = vadd.f32 %v606, %v818
      %v898 = vadd.f32 %v609, %v821
      %v899 = vadd.f32 %v611, %v823
      %v900 = vadd.f32 %v614, %v826
      %v901 = vadd.f32 %v616, %v828
      %v902 = vadd.f32 %v619, %v831
      %v903 = vadd.f32 %v621, %v833
      %v904 = vadd.f32 %v624, %v836
      %v905 = vadd.f32 %v626, %v838
      %v906 = vadd.f32 %v629, %v841
      %v907 = vadd.f32 %v631, %v843
      %v908 = vadd.f32 %v634, %v846
      %v909 = vadd.f32 %v636, %v848
      %v910 = vadd.f32 %v639, %v851
      %v911 = vadd.f32 %v641, %v853
      %v912 = vadd.f32 %v644, %v856
      %v913 = vadd.f32 %v646, %v858
      %v914 = vadd.f32 %v649, %v861
      %v915 = vadd.f32 %v651, %v863
      %v916 = vadd.f32 %v654, %v866
      %v917 = vadd.f32 %v656, %v868
      %v918 = vadd.f32 %v659, %v871
      %v919 = vadd.f32 %v661, %v873
      %v920 = vadd.f32 %v664, %v876
      %v921 = vadd.f32 %v666, %v878
      %v922 = vadd.f32 %v669, %v881
      %v923 = vadd.f32 %v671, %v883
      %v924 = vadd.f32 %v674, %v886
      %v925 = vadd.f32 %v676, %v888
      %v926 = vld [vmem:[%s246 + $0x12] sm:$0xff]
      %v927 = vld [vmem:[%s246 + $0x1a] sm:$0xff]
      %v928 = vld [vmem:[%s246 + $0x22] sm:$0xff]
      %v929 = vld [vmem:[%s246 + $0x2a] sm:$0xff]
      %v930 = vld [vmem:[%s246 + $0x32] sm:$0xff]
      %v931 = vld [vmem:[%s246 + $0x3a] sm:$0xff]
      %v932 = vld [vmem:[%s246 + $0x42] sm:$0xff]
      %v933 = vld [vmem:[%s246 + $0x4a] sm:$0xff]
      %v934 = vld [vmem:[%s246 + $0x52] sm:$0xff]
      %v935 = vld [vmem:[%s246 + $0x5a] sm:$0xff]
      %v936 = vld [vmem:[%s246 + $0x62] sm:$0xff]
      %v937 = vld [vmem:[%s246 + $0x6a] sm:$0xff]
      %v938 = vld [vmem:[%s246 + $0x72] sm:$0xff]
      %v939 = vld [vmem:[%s246 + $0x7a] sm:$0xff]
      %v940 = vld [vmem:[%s246 + $0x82] sm:$0xff]
      %v941 = vld [vmem:[%s246 + $0x8a] sm:$0xff]
      %v942 = vld [vmem:[%s246 + $0x92] sm:$0xff]
      %v943 = vld [vmem:[%s246 + $0x9a] sm:$0xff]
      %v944 = vld [vmem:[%s246 + $0xa2] sm:$0xff]
      %v945 = vld [vmem:[%s246 + $0xaa] sm:$0xff]
      %v946 = vld [vmem:[%s246 + $0xb2] sm:$0xff]
      %v947 = vld [vmem:[%s246 + $0xba] sm:$0xff]
      %v948 = vld [vmem:[%s246 + $0xc2] sm:$0xff]
      %v949 = vld [vmem:[%s246 + $0xca] sm:$0xff]
      %v950 = vld [vmem:[%s246 + $0xd2] sm:$0xff]
      %v951 = vld [vmem:[%s246 + $0xda] sm:$0xff]
      %v952 = vld [vmem:[%s246 + $0xe2] sm:$0xff]
      %v953 = vld [vmem:[%s246 + $0xea] sm:$0xff]
      %v954 = vld [vmem:[%s246 + $0xf2] sm:$0xff]
      %v955 = vld [vmem:[%s246 + $0xfa] sm:$0xff]
      %v956 = vld [vmem:[%s246 + $0x102] sm:$0xff]
      %v957 = vld [vmem:[%s246 + $0x10a] sm:$0xff]
      %v958 = vld [vmem:[%s246 + $0x112] sm:$0xff]
      %v959 = vld [vmem:[%s246 + $0x11a] sm:$0xff]
      %v960 = vld [vmem:[%s246 + $0x122] sm:$0xff]
      %v961 = vld [vmem:[%s246 + $0x12a] sm:$0xff]
      %v962 = vpack.c.bf16 %v927, %v926
      %v963 = vpack.c.bf16 %v929, %v928
      %v964 = vpack.c.bf16 %v931, %v930
      %v965 = vpack.c.bf16 %v933, %v932
      %v966 = vpack.c.bf16 %v935, %v934
      %v967 = vpack.c.bf16 %v937, %v936
      %v968 = vpack.c.bf16 %v939, %v938
      %v969 = vpack.c.bf16 %v941, %v940
      %v970 = vpack.c.bf16 %v943, %v942
      %v971 = vpack.c.bf16 %v945, %v944
      %v972 = vpack.c.bf16 %v947, %v946
      %v973 = vpack.c.bf16 %v949, %v948
      %v974 = vpack.c.bf16 %v951, %v950
      %v975 = vpack.c.bf16 %v953, %v952
      %v976 = vpack.c.bf16 %v955, %v954
      %v977 = vpack.c.bf16 %v957, %v956
      %v978 = vpack.c.bf16 %v959, %v958
      %v979 = vpack.c.bf16 %v961, %v960
      %s980 = scalar_lea.vmem %s1, 6
      %v981 = vld [vmem:[%s980] sm:$0x3]
      %v983 = vsel %vm364, %v962, 0
      %v986 = vsel %vm364, %v963, 0
      %v989 = vsel %vm364, %v964, 0
      %v992 = vsel %vm364, %v965, 0
      %v995 = vsel %vm364, %v966, 0
      %v998 = vsel %vm364, %v967, 0
      %v1001 = vsel %vm364, %v968, 0
      %v1004 = vsel %vm364, %v969, 0
      %v1007 = vsel %vm364, %v970, 0
      %v1010 = vsel %vm364, %v971, 0
      %v1013 = vsel %vm364, %v972, 0
      %v1016 = vsel %vm364, %v973, 0
      %v1019 = vsel %vm364, %v974, 0
      %v1022 = vsel %vm364, %v975, 0
      %v1025 = vsel %vm364, %v976, 0
      %v1028 = vsel %vm364, %v977, 0
      %v1031 = vsel %vm364, %v978, 0
      %v1034 = vsel %vm364, %v979, 0
      %v1037 = vsel %vm419, %v981, 0
      %1039 = vmatpush.bf16.msra.mxu0 0
      %1040 = vmatpush.bf16.msra.mxu0 0
      %1041 = vmatpush.bf16.msra.mxu0 0
      %1042 = vmatpush.bf16.msra.mxu0 0
      %1043 = vmatpush.bf16.msra.mxu0 0
      %1044 = vmatpush.bf16.msra.mxu0 0
      %1045 = vmatpush.bf16.msra.mxu0 0
      %1046 = vmatpush.bf16.msra.mxu0 %v1037
      %1047 = vmatmul.bf16.gmra.mxu0 %v983
      %v1048 = vpop.f32.mrf.mxu0
      %v1049 = vadd.f32 0.0, %v1048
      %v1050 = vpop.f32.mrf.mxu0
      %v1051 = vadd.f32 0.0, %v1050
      %1052 = vmatmul.bf16.gmra.mxu0 %v986
      %v1053 = vpop.f32.mrf.mxu0
      %v1054 = vadd.f32 0.0, %v1053
      %v1055 = vpop.f32.mrf.mxu0
      %v1056 = vadd.f32 0.0, %v1055
      %1057 = vmatmul.bf16.gmra.mxu0 %v989
      %v1058 = vpop.f32.mrf.mxu0
      %v1059 = vadd.f32 0.0, %v1058
      %v1060 = vpop.f32.mrf.mxu0
      %v1061 = vadd.f32 0.0, %v1060
      %1062 = vmatmul.bf16.gmra.mxu0 %v992
      %v1063 = vpop.f32.mrf.mxu0
      %v1064 = vadd.f32 0.0, %v1063
      %v1065 = vpop.f32.mrf.mxu0
      %v1066 = vadd.f32 0.0, %v1065
      %1067 = vmatmul.bf16.gmra.mxu0 %v995
      %v1068 = vpop.f32.mrf.mxu0
      %v1069 = vadd.f32 0.0, %v1068
      %v1070 = vpop.f32.mrf.mxu0
      %v1071 = vadd.f32 0.0, %v1070
      %1072 = vmatmul.bf16.gmra.mxu0 %v998
      %v1073 = vpop.f32.mrf.mxu0
      %v1074 = vadd.f32 0.0, %v1073
      %v1075 = vpop.f32.mrf.mxu0
      %v1076 = vadd.f32 0.0, %v1075
      %1077 = vmatmul.bf16.gmra.mxu0 %v1001
      %v1078 = vpop.f32.mrf.mxu0
      %v1079 = vadd.f32 0.0, %v1078
      %v1080 = vpop.f32.mrf.mxu0
      %v1081 = vadd.f32 0.0, %v1080
      %1082 = vmatmul.bf16.gmra.mxu0 %v1004
      %v1083 = vpop.f32.mrf.mxu0
      %v1084 = vadd.f32 0.0, %v1083
      %v1085 = vpop.f32.mrf.mxu0
      %v1086 = vadd.f32 0.0, %v1085
      %1087 = vmatmul.bf16.gmra.mxu0 %v1007
      %v1088 = vpop.f32.mrf.mxu0
      %v1089 = vadd.f32 0.0, %v1088
      %v1090 = vpop.f32.mrf.mxu0
      %v1091 = vadd.f32 0.0, %v1090
      %1092 = vmatmul.bf16.gmra.mxu0 %v1010
      %v1093 = vpop.f32.mrf.mxu0
      %v1094 = vadd.f32 0.0, %v1093
      %v1095 = vpop.f32.mrf.mxu0
      %v1096 = vadd.f32 0.0, %v1095
      %1097 = vmatmul.bf16.gmra.mxu0 %v1013
      %v1098 = vpop.f32.mrf.mxu0
      %v1099 = vadd.f32 0.0, %v1098
      %v1100 = vpop.f32.mrf.mxu0
      %v1101 = vadd.f32 0.0, %v1100
      %1102 = vmatmul.bf16.gmra.mxu0 %v1016
      %v1103 = vpop.f32.mrf.mxu0
      %v1104 = vadd.f32 0.0, %v1103
      %v1105 = vpop.f32.mrf.mxu0
      %v1106 = vadd.f32 0.0, %v1105
      %1107 = vmatmul.bf16.gmra.mxu0 %v1019
      %v1108 = vpop.f32.mrf.mxu0
      %v1109 = vadd.f32 0.0, %v1108
      %v1110 = vpop.f32.mrf.mxu0
      %v1111 = vadd.f32 0.0, %v1110
      %1112 = vmatmul.bf16.gmra.mxu0 %v1022
      %v1113 = vpop.f32.mrf.mxu0
      %v1114 = vadd.f32 0.0, %v1113
      %v1115 = vpop.f32.mrf.mxu0
      %v1116 = vadd.f32 0.0, %v1115
      %1117 = vmatmul.bf16.gmra.mxu0 %v1025
      %v1118 = vpop.f32.mrf.mxu0
      %v1119 = vadd.f32 0.0, %v1118
      %v1120 = vpop.f32.mrf.mxu0
      %v1121 = vadd.f32 0.0, %v1120
      %1122 = vmatmul.bf16.gmra.mxu0 %v1028
      %v1123 = vpop.f32.mrf.mxu0
      %v1124 = vadd.f32 0.0, %v1123
      %v1125 = vpop.f32.mrf.mxu0
      %v1126 = vadd.f32 0.0, %v1125
      %1127 = vmatmul.bf16.gmra.mxu0 %v1031
      %v1128 = vpop.f32.mrf.mxu0
      %v1129 = vadd.f32 0.0, %v1128
      %v1130 = vpop.f32.mrf.mxu0
      %v1131 = vadd.f32 0.0, %v1130
      %1132 = vmatmul.bf16.gmra.mxu0 %v1034
      %v1133 = vpop.f32.mrf.mxu0
      %v1134 = vadd.f32 0.0, %v1133
      %v1135 = vpop.f32.mrf.mxu0
      %v1136 = vadd.f32 0.0, %v1135
      %1137 = vdwg.mxu0
      %v1138 = vadd.f32 %v890, %v1049
      %v1139 = vadd.f32 %v891, %v1051
      %v1140 = vadd.f32 %v892, %v1054
      %v1141 = vadd.f32 %v893, %v1056
      %v1142 = vadd.f32 %v894, %v1059
      %v1143 = vadd.f32 %v895, %v1061
      %v1144 = vadd.f32 %v896, %v1064
      %v1145 = vadd.f32 %v897, %v1066
      %v1146 = vadd.f32 %v898, %v1069
      %v1147 = vadd.f32 %v899, %v1071
      %v1148 = vadd.f32 %v900, %v1074
      %v1149 = vadd.f32 %v901, %v1076
      %v1150 = vadd.f32 %v902, %v1079
      %v1151 = vadd.f32 %v903, %v1081
      %v1152 = vadd.f32 %v904, %v1084
      %v1153 = vadd.f32 %v905, %v1086
      %v1154 = vadd.f32 %v906, %v1089
      %v1155 = vadd.f32 %v907, %v1091
      %v1156 = vadd.f32 %v908, %v1094
      %v1157 = vadd.f32 %v909, %v1096
      %v1158 = vadd.f32 %v910, %v1099
      %v1159 = vadd.f32 %v911, %v1101
      %v1160 = vadd.f32 %v912, %v1104
      %v1161 = vadd.f32 %v913, %v1106
      %v1162 = vadd.f32 %v914, %v1109
      %v1163 = vadd.f32 %v915, %v1111
      %v1164 = vadd.f32 %v916, %v1114
      %v1165 = vadd.f32 %v917, %v1116
      %v1166 = vadd.f32 %v918, %v1119
      %v1167 = vadd.f32 %v919, %v1121
      %v1168 = vadd.f32 %v920, %v1124
      %v1169 = vadd.f32 %v921, %v1126
      %v1170 = vadd.f32 %v922, %v1129
      %v1171 = vadd.f32 %v923, %v1131
      %v1172 = vadd.f32 %v924, %v1134
      %v1173 = vadd.f32 %v925, %v1136
      %v1174 = vld [vmem:[%s246 + $0x13] sm:$0xff]
      %v1175 = vld [vmem:[%s246 + $0x1b] sm:$0xff]
      %v1176 = vld [vmem:[%s246 + $0x23] sm:$0xff]
      %v1177 = vld [vmem:[%s246 + $0x2b] sm:$0xff]
      %v1178 = vld [vmem:[%s246 + $0x33] sm:$0xff]
      %v1179 = vld [vmem:[%s246 + $0x3b] sm:$0xff]
      %v1180 = vld [vmem:[%s246 + $0x43] sm:$0xff]
      %v1181 = vld [vmem:[%s246 + $0x4b] sm:$0xff]
      %v1182 = vld [vmem:[%s246 + $0x53] sm:$0xff]
      %v1183 = vld [vmem:[%s246 + $0x5b] sm:$0xff]
      %v1184 = vld [vmem:[%s246 + $0x63] sm:$0xff]
      %v1185 = vld [vmem:[%s246 + $0x6b] sm:$0xff]
      %v1186 = vld [vmem:[%s246 + $0x73] sm:$0xff]
      %v1187 = vld [vmem:[%s246 + $0x7b] sm:$0xff]
      %v1188 = vld [vmem:[%s246 + $0x83] sm:$0xff]
      %v1189 = vld [vmem:[%s246 + $0x8b] sm:$0xff]
      %v1190 = vld [vmem:[%s246 + $0x93] sm:$0xff]
      %v1191 = vld [vmem:[%s246 + $0x9b] sm:$0xff]
      %v1192 = vld [vmem:[%s246 + $0xa3] sm:$0xff]
      %v1193 = vld [vmem:[%s246 + $0xab] sm:$0xff]
      %v1194 = vld [vmem:[%s246 + $0xb3] sm:$0xff]
      %v1195 = vld [vmem:[%s246 + $0xbb] sm:$0xff]
      %v1196 = vld [vmem:[%s246 + $0xc3] sm:$0xff]
      %v1197 = vld [vmem:[%s246 + $0xcb] sm:$0xff]
      %v1198 = vld [vmem:[%s246 + $0xd3] sm:$0xff]
      %v1199 = vld [vmem:[%s246 + $0xdb] sm:$0xff]
      %v1200 = vld [vmem:[%s246 + $0xe3] sm:$0xff]
      %v1201 = vld [vmem:[%s246 + $0xeb] sm:$0xff]
      %v1202 = vld [vmem:[%s246 + $0xf3] sm:$0xff]
      %v1203 = vld [vmem:[%s246 + $0xfb] sm:$0xff]
      %v1204 = vld [vmem:[%s246 + $0x103] sm:$0xff]
      %v1205 = vld [vmem:[%s246 + $0x10b] sm:$0xff]
      %v1206 = vld [vmem:[%s246 + $0x113] sm:$0xff]
      %v1207 = vld [vmem:[%s246 + $0x11b] sm:$0xff]
      %v1208 = vld [vmem:[%s246 + $0x123] sm:$0xff]
      %v1209 = vld [vmem:[%s246 + $0x12b] sm:$0xff]
      %v1210 = vpack.c.bf16 %v1175, %v1174
      %v1211 = vpack.c.bf16 %v1177, %v1176
      %v1212 = vpack.c.bf16 %v1179, %v1178
      %v1213 = vpack.c.bf16 %v1181, %v1180
      %v1214 = vpack.c.bf16 %v1183, %v1182
      %v1215 = vpack.c.bf16 %v1185, %v1184
      %v1216 = vpack.c.bf16 %v1187, %v1186
      %v1217 = vpack.c.bf16 %v1189, %v1188
      %v1218 = vpack.c.bf16 %v1191, %v1190
      %v1219 = vpack.c.bf16 %v1193, %v1192
      %v1220 = vpack.c.bf16 %v1195, %v1194
      %v1221 = vpack.c.bf16 %v1197, %v1196
      %v1222 = vpack.c.bf16 %v1199, %v1198
      %v1223 = vpack.c.bf16 %v1201, %v1200
      %v1224 = vpack.c.bf16 %v1203, %v1202
      %v1225 = vpack.c.bf16 %v1205, %v1204
      %v1226 = vpack.c.bf16 %v1207, %v1206
      %v1227 = vpack.c.bf16 %v1209, %v1208
      %s1228 = scalar_lea.vmem %s1, 8
      %v1229 = vld [vmem:[%s1228] sm:$0x3]
      %v1231 = vsel %vm364, %v1210, 0
      %v1234 = vsel %vm364, %v1211, 0
      %v1237 = vsel %vm364, %v1212, 0
      %v1240 = vsel %vm364, %v1213, 0
      %v1243 = vsel %vm364, %v1214, 0
      %v1246 = vsel %vm364, %v1215, 0
      %v1249 = vsel %vm364, %v1216, 0
      %v1252 = vsel %vm364, %v1217, 0
      %v1255 = vsel %vm364, %v1218, 0
      %v1258 = vsel %vm364, %v1219, 0
      %v1261 = vsel %vm364, %v1220, 0
      %v1264 = vsel %vm364, %v1221, 0
      %v1267 = vsel %vm364, %v1222, 0
      %v1270 = vsel %vm364, %v1223, 0
      %v1273 = vsel %vm364, %v1224, 0
      %v1276 = vsel %vm364, %v1225, 0
      %v1279 = vsel %vm364, %v1226, 0
      %v1282 = vsel %vm364, %v1227, 0
      %v1285 = vsel %vm419, %v1229, 0
      %1287 = vmatpush.bf16.msra.mxu0 0
      %1288 = vmatpush.bf16.msra.mxu0 0
      %1289 = vmatpush.bf16.msra.mxu0 0
      %1290 = vmatpush.bf16.msra.mxu0 0
      %1291 = vmatpush.bf16.msra.mxu0 0
      %1292 = vmatpush.bf16.msra.mxu0 0
      %1293 = vmatpush.bf16.msra.mxu0 0
      %1294 = vmatpush.bf16.msra.mxu0 %v1285
      %1295 = vmatmul.bf16.gmra.mxu0 %v1231
      %v1296 = vpop.f32.mrf.mxu0
      %v1297 = vadd.f32 0.0, %v1296
      %v1298 = vpop.f32.mrf.mxu0
      %v1299 = vadd.f32 0.0, %v1298
      %1300 = vmatmul.bf16.gmra.mxu0 %v1234
      %v1301 = vpop.f32.mrf.mxu0
      %v1302 = vadd.f32 0.0, %v1301
      %v1303 = vpop.f32.mrf.mxu0
      %v1304 = vadd.f32 0.0, %v1303
      %1305 = vmatmul.bf16.gmra.mxu0 %v1237
      %v1306 = vpop.f32.mrf.mxu0
      %v1307 = vadd.f32 0.0, %v1306
      %v1308 = vpop.f32.mrf.mxu0
      %v1309 = vadd.f32 0.0, %v1308
      %1310 = vmatmul.bf16.gmra.mxu0 %v1240
      %v1311 = vpop.f32.mrf.mxu0
      %v1312 = vadd.f32 0.0, %v1311
      %v1313 = vpop.f32.mrf.mxu0
      %v1314 = vadd.f32 0.0, %v1313
      %1315 = vmatmul.bf16.gmra.mxu0 %v1243
      %v1316 = vpop.f32.mrf.mxu0
      %v1317 = vadd.f32 0.0, %v1316
      %v1318 = vpop.f32.mrf.mxu0
      %v1319 = vadd.f32 0.0, %v1318
      %1320 = vmatmul.bf16.gmra.mxu0 %v1246
      %v1321 = vpop.f32.mrf.mxu0
      %v1322 = vadd.f32 0.0, %v1321
      %v1323 = vpop.f32.mrf.mxu0
      %v1324 = vadd.f32 0.0, %v1323
      %1325 = vmatmul.bf16.gmra.mxu0 %v1249
      %v1326 = vpop.f32.mrf.mxu0
      %v1327 = vadd.f32 0.0, %v1326
      %v1328 = vpop.f32.mrf.mxu0
      %v1329 = vadd.f32 0.0, %v1328
      %1330 = vmatmul.bf16.gmra.mxu0 %v1252
      %v1331 = vpop.f32.mrf.mxu0
      %v1332 = vadd.f32 0.0, %v1331
      %v1333 = vpop.f32.mrf.mxu0
      %v1334 = vadd.f32 0.0, %v1333
      %1335 = vmatmul.bf16.gmra.mxu0 %v1255
      %v1336 = vpop.f32.mrf.mxu0
      %v1337 = vadd.f32 0.0, %v1336
      %v1338 = vpop.f32.mrf.mxu0
      %v1339 = vadd.f32 0.0, %v1338
      %1340 = vmatmul.bf16.gmra.mxu0 %v1258
      %v1341 = vpop.f32.mrf.mxu0
      %v1342 = vadd.f32 0.0, %v1341
      %v1343 = vpop.f32.mrf.mxu0
      %v1344 = vadd.f32 0.0, %v1343
      %1345 = vmatmul.bf16.gmra.mxu0 %v1261
      %v1346 = vpop.f32.mrf.mxu0
      %v1347 = vadd.f32 0.0, %v1346
      %v1348 = vpop.f32.mrf.mxu0
      %v1349 = vadd.f32 0.0, %v1348
      %1350 = vmatmul.bf16.gmra.mxu0 %v1264
      %v1351 = vpop.f32.mrf.mxu0
      %v1352 = vadd.f32 0.0, %v1351
      %v1353 = vpop.f32.mrf.mxu0
      %v1354 = vadd.f32 0.0, %v1353
      %1355 = vmatmul.bf16.gmra.mxu0 %v1267
      %v1356 = vpop.f32.mrf.mxu0
      %v1357 = vadd.f32 0.0, %v1356
      %v1358 = vpop.f32.mrf.mxu0
      %v1359 = vadd.f32 0.0, %v1358
      %1360 = vmatmul.bf16.gmra.mxu0 %v1270
      %v1361 = vpop.f32.mrf.mxu0
      %v1362 = vadd.f32 0.0, %v1361
      %v1363 = vpop.f32.mrf.mxu0
      %v1364 = vadd.f32 0.0, %v1363
      %1365 = vmatmul.bf16.gmra.mxu0 %v1273
      %v1366 = vpop.f32.mrf.mxu0
      %v1367 = vadd.f32 0.0, %v1366
      %v1368 = vpop.f32.mrf.mxu0
      %v1369 = vadd.f32 0.0, %v1368
      %1370 = vmatmul.bf16.gmra.mxu0 %v1276
      %v1371 = vpop.f32.mrf.mxu0
      %v1372 = vadd.f32 0.0, %v1371
      %v1373 = vpop.f32.mrf.mxu0
      %v1374 = vadd.f32 0.0, %v1373
      %1375 = vmatmul.bf16.gmra.mxu0 %v1279
      %v1376 = vpop.f32.mrf.mxu0
      %v1377 = vadd.f32 0.0, %v1376
      %v1378 = vpop.f32.mrf.mxu0
      %v1379 = vadd.f32 0.0, %v1378
      %1380 = vmatmul.bf16.gmra.mxu0 %v1282
      %v1381 = vpop.f32.mrf.mxu0
      %v1382 = vadd.f32 0.0, %v1381
      %v1383 = vpop.f32.mrf.mxu0
      %v1384 = vadd.f32 0.0, %v1383
      %1385 = vdwg.mxu0
      %v1386 = vadd.f32 %v1138, %v1297
      %v1387 = vadd.f32 %v1139, %v1299
      %v1388 = vadd.f32 %v1140, %v1302
      %v1389 = vadd.f32 %v1141, %v1304
      %v1390 = vadd.f32 %v1142, %v1307
      %v1391 = vadd.f32 %v1143, %v1309
      %v1392 = vadd.f32 %v1144, %v1312
      %v1393 = vadd.f32 %v1145, %v1314
      %v1394 = vadd.f32 %v1146, %v1317
      %v1395 = vadd.f32 %v1147, %v1319
      %v1396 = vadd.f32 %v1148, %v1322
      %v1397 = vadd.f32 %v1149, %v1324
      %v1398 = vadd.f32 %v1150, %v1327
      %v1399 = vadd.f32 %v1151, %v1329
      %v1400 = vadd.f32 %v1152, %v1332
      %v1401 = vadd.f32 %v1153, %v1334
      %v1402 = vadd.f32 %v1154, %v1337
      %v1403 = vadd.f32 %v1155, %v1339
      %v1404 = vadd.f32 %v1156, %v1342
      %v1405 = vadd.f32 %v1157, %v1344
      %v1406 = vadd.f32 %v1158, %v1347
      %v1407 = vadd.f32 %v1159, %v1349
      %v1408 = vadd.f32 %v1160, %v1352
      %v1409 = vadd.f32 %v1161, %v1354
      %v1410 = vadd.f32 %v1162, %v1357
      %v1411 = vadd.f32 %v1163, %v1359
      %v1412 = vadd.f32 %v1164, %v1362
      %v1413 = vadd.f32 %v1165, %v1364
      %v1414 = vadd.f32 %v1166, %v1367
      %v1415 = vadd.f32 %v1167, %v1369
      %v1416 = vadd.f32 %v1168, %v1372
      %v1417 = vadd.f32 %v1169, %v1374
      %v1418 = vadd.f32 %v1170, %v1377
      %v1419 = vadd.f32 %v1171, %v1379
      %v1420 = vadd.f32 %v1172, %v1382
      %v1421 = vadd.f32 %v1173, %v1384
      %v1422 = vld [vmem:[%s246 + $0x14] sm:$0xff]
      %v1423 = vld [vmem:[%s246 + $0x1c] sm:$0xff]
      %v1424 = vld [vmem:[%s246 + $0x24] sm:$0xff]
      %v1425 = vld [vmem:[%s246 + $0x2c] sm:$0xff]
      %v1426 = vld [vmem:[%s246 + $0x34] sm:$0xff]
      %v1427 = vld [vmem:[%s246 + $0x3c] sm:$0xff]
      %v1428 = vld [vmem:[%s246 + $0x44] sm:$0xff]
      %v1429 = vld [vmem:[%s246 + $0x4c] sm:$0xff]
      %v1430 = vld [vmem:[%s246 + $0x54] sm:$0xff]
      %v1431 = vld [vmem:[%s246 + $0x5c] sm:$0xff]
      %v1432 = vld [vmem:[%s246 + $0x64] sm:$0xff]
      %v1433 = vld [vmem:[%s246 + $0x6c] sm:$0xff]
      %v1434 = vld [vmem:[%s246 + $0x74] sm:$0xff]
      %v1435 = vld [vmem:[%s246 + $0x7c] sm:$0xff]
      %v1436 = vld [vmem:[%s246 + $0x84] sm:$0xff]
      %v1437 = vld [vmem:[%s246 + $0x8c] sm:$0xff]
      %v1438 = vld [vmem:[%s246 + $0x94] sm:$0xff]
      %v1439 = vld [vmem:[%s246 + $0x9c] sm:$0xff]
      %v1440 = vld [vmem:[%s246 + $0xa4] sm:$0xff]
      %v1441 = vld [vmem:[%s246 + $0xac] sm:$0xff]
      %v1442 = vld [vmem:[%s246 + $0xb4] sm:$0xff]
      %v1443 = vld [vmem:[%s246 + $0xbc] sm:$0xff]
      %v1444 = vld [vmem:[%s246 + $0xc4] sm:$0xff]
      %v1445 = vld [vmem:[%s246 + $0xcc] sm:$0xff]
      %v1446 = vld [vmem:[%s246 + $0xd4] sm:$0xff]
      %v1447 = vld [vmem:[%s246 + $0xdc] sm:$0xff]
      %v1448 = vld [vmem:[%s246 + $0xe4] sm:$0xff]
      %v1449 = vld [vmem:[%s246 + $0xec] sm:$0xff]
      %v1450 = vld [vmem:[%s246 + $0xf4] sm:$0xff]
      %v1451 = vld [vmem:[%s246 + $0xfc] sm:$0xff]
      %v1452 = vld [vmem:[%s246 + $0x104] sm:$0xff]
      %v1453 = vld [vmem:[%s246 + $0x10c] sm:$0xff]
      %v1454 = vld [vmem:[%s246 + $0x114] sm:$0xff]
      %v1455 = vld [vmem:[%s246 + $0x11c] sm:$0xff]
      %v1456 = vld [vmem:[%s246 + $0x124] sm:$0xff]
      %v1457 = vld [vmem:[%s246 + $0x12c] sm:$0xff]
      %v1458 = vpack.c.bf16 %v1423, %v1422
      %v1459 = vpack.c.bf16 %v1425, %v1424
      %v1460 = vpack.c.bf16 %v1427, %v1426
      %v1461 = vpack.c.bf16 %v1429, %v1428
      %v1462 = vpack.c.bf16 %v1431, %v1430
      %v1463 = vpack.c.bf16 %v1433, %v1432
      %v1464 = vpack.c.bf16 %v1435, %v1434
      %v1465 = vpack.c.bf16 %v1437, %v1436
      %v1466 = vpack.c.bf16 %v1439, %v1438
      %v1467 = vpack.c.bf16 %v1441, %v1440
      %v1468 = vpack.c.bf16 %v1443, %v1442
      %v1469 = vpack.c.bf16 %v1445, %v1444
      %v1470 = vpack.c.bf16 %v1447, %v1446
      %v1471 = vpack.c.bf16 %v1449, %v1448
      %v1472 = vpack.c.bf16 %v1451, %v1450
      %v1473 = vpack.c.bf16 %v1453, %v1452
      %v1474 = vpack.c.bf16 %v1455, %v1454
      %v1475 = vpack.c.bf16 %v1457, %v1456
      %s1476 = scalar_lea.vmem %s1, 10
      %v1477 = vld [vmem:[%s1476] sm:$0x3]
      %v1479 = vsel %vm364, %v1458, 0
      %v1482 = vsel %vm364, %v1459, 0
      %v1485 = vsel %vm364, %v1460, 0
      %v1488 = vsel %vm364, %v1461, 0
      %v1491 = vsel %vm364, %v1462, 0
      %v1494 = vsel %vm364, %v1463, 0
      %v1497 = vsel %vm364, %v1464, 0
      %v1500 = vsel %vm364, %v1465, 0
      %v1503 = vsel %vm364, %v1466, 0
      %v1506 = vsel %vm364, %v1467, 0
      %v1509 = vsel %vm364, %v1468, 0
      %v1512 = vsel %vm364, %v1469, 0
      %v1515 = vsel %vm364, %v1470, 0
      %v1518 = vsel %vm364, %v1471, 0
      %v1521 = vsel %vm364, %v1472, 0
      %v1524 = vsel %vm364, %v1473, 0
      %v1527 = vsel %vm364, %v1474, 0
      %v1530 = vsel %vm364, %v1475, 0
      %v1533 = vsel %vm419, %v1477, 0
      %1535 = vmatpush.bf16.msra.mxu0 0
      %1536 = vmatpush.bf16.msra.mxu0 0
      %1537 = vmatpush.bf16.msra.mxu0 0
      %1538 = vmatpush.bf16.msra.mxu0 0
      %1539 = vmatpush.bf16.msra.mxu0 0
      %1540 = vmatpush.bf16.msra.mxu0 0
      %1541 = vmatpush.bf16.msra.mxu0 0
      %1542 = vmatpush.bf16.msra.mxu0 %v1533
      %1543 = vmatmul.bf16.gmra.mxu0 %v1479
      %v1544 = vpop.f32.mrf.mxu0
      %v1545 = vadd.f32 0.0, %v1544
      %v1546 = vpop.f32.mrf.mxu0
      %v1547 = vadd.f32 0.0, %v1546
      %1548 = vmatmul.bf16.gmra.mxu0 %v1482
      %v1549 = vpop.f32.mrf.mxu0
      %v1550 = vadd.f32 0.0, %v1549
      %v1551 = vpop.f32.mrf.mxu0
      %v1552 = vadd.f32 0.0, %v1551
      %1553 = vmatmul.bf16.gmra.mxu0 %v1485
      %v1554 = vpop.f32.mrf.mxu0
      %v1555 = vadd.f32 0.0, %v1554
      %v1556 = vpop.f32.mrf.mxu0
      %v1557 = vadd.f32 0.0, %v1556
      %1558 = vmatmul.bf16.gmra.mxu0 %v1488
      %v1559 = vpop.f32.mrf.mxu0
      %v1560 = vadd.f32 0.0, %v1559
      %v1561 = vpop.f32.mrf.mxu0
      %v1562 = vadd.f32 0.0, %v1561
      %1563 = vmatmul.bf16.gmra.mxu0 %v1491
      %v1564 = vpop.f32.mrf.mxu0
      %v1565 = vadd.f32 0.0, %v1564
      %v1566 = vpop.f32.mrf.mxu0
      %v1567 = vadd.f32 0.0, %v1566
      %1568 = vmatmul.bf16.gmra.mxu0 %v1494
      %v1569 = vpop.f32.mrf.mxu0
      %v1570 = vadd.f32 0.0, %v1569
      %v1571 = vpop.f32.mrf.mxu0
      %v1572 = vadd.f32 0.0, %v1571
      %1573 = vmatmul.bf16.gmra.mxu0 %v1497
      %v1574 = vpop.f32.mrf.mxu0
      %v1575 = vadd.f32 0.0, %v1574
      %v1576 = vpop.f32.mrf.mxu0
      %v1577 = vadd.f32 0.0, %v1576
      %1578 = vmatmul.bf16.gmra.mxu0 %v1500
      %v1579 = vpop.f32.mrf.mxu0
      %v1580 = vadd.f32 0.0, %v1579
      %v1581 = vpop.f32.mrf.mxu0
      %v1582 = vadd.f32 0.0, %v1581
      %1583 = vmatmul.bf16.gmra.mxu0 %v1503
      %v1584 = vpop.f32.mrf.mxu0
      %v1585 = vadd.f32 0.0, %v1584
      %v1586 = vpop.f32.mrf.mxu0
      %v1587 = vadd.f32 0.0, %v1586
      %1588 = vmatmul.bf16.gmra.mxu0 %v1506
      %v1589 = vpop.f32.mrf.mxu0
      %v1590 = vadd.f32 0.0, %v1589
      %v1591 = vpop.f32.mrf.mxu0
      %v1592 = vadd.f32 0.0, %v1591
      %1593 = vmatmul.bf16.gmra.mxu0 %v1509
      %v1594 = vpop.f32.mrf.mxu0
      %v1595 = vadd.f32 0.0, %v1594
      %v1596 = vpop.f32.mrf.mxu0
      %v1597 = vadd.f32 0.0, %v1596
      %1598 = vmatmul.bf16.gmra.mxu0 %v1512
      %v1599 = vpop.f32.mrf.mxu0
      %v1600 = vadd.f32 0.0, %v1599
      %v1601 = vpop.f32.mrf.mxu0
      %v1602 = vadd.f32 0.0, %v1601
      %1603 = vmatmul.bf16.gmra.mxu0 %v1515
      %v1604 = vpop.f32.mrf.mxu0
      %v1605 = vadd.f32 0.0, %v1604
      %v1606 = vpop.f32.mrf.mxu0
      %v1607 = vadd.f32 0.0, %v1606
      %1608 = vmatmul.bf16.gmra.mxu0 %v1518
      %v1609 = vpop.f32.mrf.mxu0
      %v1610 = vadd.f32 0.0, %v1609
      %v1611 = vpop.f32.mrf.mxu0
      %v1612 = vadd.f32 0.0, %v1611
      %1613 = vmatmul.bf16.gmra.mxu0 %v1521
      %v1614 = vpop.f32.mrf.mxu0
      %v1615 = vadd.f32 0.0, %v1614
      %v1616 = vpop.f32.mrf.mxu0
      %v1617 = vadd.f32 0.0, %v1616
      %1618 = vmatmul.bf16.gmra.mxu0 %v1524
      %v1619 = vpop.f32.mrf.mxu0
      %v1620 = vadd.f32 0.0, %v1619
      %v1621 = vpop.f32.mrf.mxu0
      %v1622 = vadd.f32 0.0, %v1621
      %1623 = vmatmul.bf16.gmra.mxu0 %v1527
      %v1624 = vpop.f32.mrf.mxu0
      %v1625 = vadd.f32 0.0, %v1624
      %v1626 = vpop.f32.mrf.mxu0
      %v1627 = vadd.f32 0.0, %v1626
      %1628 = vmatmul.bf16.gmra.mxu0 %v1530
      %v1629 = vpop.f32.mrf.mxu0
      %v1630 = vadd.f32 0.0, %v1629
      %v1631 = vpop.f32.mrf.mxu0
      %v1632 = vadd.f32 0.0, %v1631
      %1633 = vdwg.mxu0
      %v1634 = vadd.f32 %v1386, %v1545
      %v1635 = vadd.f32 %v1387, %v1547
      %v1636 = vadd.f32 %v1388, %v1550
      %v1637 = vadd.f32 %v1389, %v1552
      %v1638 = vadd.f32 %v1390, %v1555
      %v1639 = vadd.f32 %v1391, %v1557
      %v1640 = vadd.f32 %v1392, %v1560
      %v1641 = vadd.f32 %v1393, %v1562
      %v1642 = vadd.f32 %v1394, %v1565
      %v1643 = vadd.f32 %v1395, %v1567
      %v1644 = vadd.f32 %v1396, %v1570
      %v1645 = vadd.f32 %v1397, %v1572
      %v1646 = vadd.f32 %v1398, %v1575
      %v1647 = vadd.f32 %v1399, %v1577
      %v1648 = vadd.f32 %v1400, %v1580
      %v1649 = vadd.f32 %v1401, %v1582
      %v1650 = vadd.f32 %v1402, %v1585
      %v1651 = vadd.f32 %v1403, %v1587
      %v1652 = vadd.f32 %v1404, %v1590
      %v1653 = vadd.f32 %v1405, %v1592
      %v1654 = vadd.f32 %v1406, %v1595
      %v1655 = vadd.f32 %v1407, %v1597
      %v1656 = vadd.f32 %v1408, %v1600
      %v1657 = vadd.f32 %v1409, %v1602
      %v1658 = vadd.f32 %v1410, %v1605
      %v1659 = vadd.f32 %v1411, %v1607
      %v1660 = vadd.f32 %v1412, %v1610
      %v1661 = vadd.f32 %v1413, %v1612
      %v1662 = vadd.f32 %v1414, %v1615
      %v1663 = vadd.f32 %v1415, %v1617
      %v1664 = vadd.f32 %v1416, %v1620
      %v1665 = vadd.f32 %v1417, %v1622
      %v1666 = vadd.f32 %v1418, %v1625
      %v1667 = vadd.f32 %v1419, %v1627
      %v1668 = vadd.f32 %v1420, %v1630
      %v1669 = vadd.f32 %v1421, %v1632
      %v1670 = vld [vmem:[%s246 + $0x24] sm:$0xff]
      %v1671 = vld [vmem:[%s246 + $0x2c] sm:$0xff]
      %v1672 = vld [vmem:[%s246 + $0x34] sm:$0xff]
      %v1673 = vld [vmem:[%s246 + $0x3c] sm:$0xff]
      %v1674 = vld [vmem:[%s246 + $0x44] sm:$0xff]
      %v1675 = vld [vmem:[%s246 + $0x4c] sm:$0xff]
      %v1676 = vld [vmem:[%s246 + $0x54] sm:$0xff]
      %v1677 = vld [vmem:[%s246 + $0x5c] sm:$0xff]
      %v1678 = vld [vmem:[%s246 + $0x64] sm:$0xff]
      %v1679 = vld [vmem:[%s246 + $0x6c] sm:$0xff]
      %v1680 = vld [vmem:[%s246 + $0x74] sm:$0xff]
      %v1681 = vld [vmem:[%s246 + $0x7c] sm:$0xff]
      %v1682 = vld [vmem:[%s246 + $0x84] sm:$0xff]
      %v1683 = vld [vmem:[%s246 + $0x8c] sm:$0xff]
      %v1684 = vld [vmem:[%s246 + $0x94] sm:$0xff]
      %v1685 = vld [vmem:[%s246 + $0x9c] sm:$0xff]
      %v1686 = vld [vmem:[%s246 + $0xa4] sm:$0xff]
      %v1687 = vld [vmem:[%s246 + $0xac] sm:$0xff]
      %v1688 = vld [vmem:[%s246 + $0xb4] sm:$0xff]
      %v1689 = vld [vmem:[%s246 + $0xbc] sm:$0xff]
      %v1690 = vld [vmem:[%s246 + $0xc4] sm:$0xff]
      %v1691 = vld [vmem:[%s246 + $0xcc] sm:$0xff]
      %v1692 = vld [vmem:[%s246 + $0xd4] sm:$0xff]
      %v1693 = vld [vmem:[%s246 + $0xdc] sm:$0xff]
      %v1694 = vld [vmem:[%s246 + $0xe4] sm:$0xff]
      %v1695 = vld [vmem:[%s246 + $0xec] sm:$0xff]
      %v1696 = vld [vmem:[%s246 + $0xf4] sm:$0xff]
      %v1697 = vld [vmem:[%s246 + $0xfc] sm:$0xff]
      %v1698 = vld [vmem:[%s246 + $0x104] sm:$0xff]
      %v1699 = vld [vmem:[%s246 + $0x10c] sm:$0xff]
      %v1700 = vld [vmem:[%s246 + $0x114] sm:$0xff]
      %v1701 = vld [vmem:[%s246 + $0x11c] sm:$0xff]
      %v1702 = vld [vmem:[%s246 + $0x124] sm:$0xff]
      %v1703 = vld [vmem:[%s246 + $0x12c] sm:$0xff]
      %v1704 = vld [vmem:[%s246 + $0x134] sm:$0xff]
      %v1705 = vld [vmem:[%s246 + $0x13c] sm:$0xff]
      %v1706 = vpack.c.bf16 %v1671, %v1670
      %v1707 = vpack.c.bf16 %v1673, %v1672
      %v1708 = vpack.c.bf16 %v1675, %v1674
      %v1709 = vpack.c.bf16 %v1677, %v1676
      %v1710 = vpack.c.bf16 %v1679, %v1678
      %v1711 = vpack.c.bf16 %v1681, %v1680
      %v1712 = vpack.c.bf16 %v1683, %v1682
      %v1713 = vpack.c.bf16 %v1685, %v1684
      %v1714 = vpack.c.bf16 %v1687, %v1686
      %v1715 = vpack.c.bf16 %v1689, %v1688
      %v1716 = vpack.c.bf16 %v1691, %v1690
      %v1717 = vpack.c.bf16 %v1693, %v1692
      %v1718 = vpack.c.bf16 %v1695, %v1694
      %v1719 = vpack.c.bf16 %v1697, %v1696
      %v1720 = vpack.c.bf16 %v1699, %v1698
      %v1721 = vpack.c.bf16 %v1701, %v1700
      %v1722 = vpack.c.bf16 %v1703, %v1702
      %v1723 = vpack.c.bf16 %v1705, %v1704
      %s1724 = scalar_lea.vmem %s1, 12
      %v1725 = vld [vmem:[%s1724] sm:$0x3]
      %v1727 = vsel %vm364, %v1706, 0
      %v1730 = vsel %vm364, %v1707, 0
      %v1733 = vsel %vm364, %v1708, 0
      %v1736 = vsel %vm364, %v1709, 0
      %v1739 = vsel %vm364, %v1710, 0
      %v1742 = vsel %vm364, %v1711, 0
      %v1745 = vsel %vm364, %v1712, 0
      %v1748 = vsel %vm364, %v1713, 0
      %v1751 = vsel %vm364, %v1714, 0
      %v1754 = vsel %vm364, %v1715, 0
      %v1757 = vsel %vm364, %v1716, 0
      %v1760 = vsel %vm364, %v1717, 0
      %v1763 = vsel %vm364, %v1718, 0
      %v1766 = vsel %vm364, %v1719, 0
      %v1769 = vsel %vm364, %v1720, 0
      %v1772 = vsel %vm364, %v1721, 0
      %v1775 = vsel %vm364, %v1722, 0
      %v1778 = vsel %vm364, %v1723, 0
      %v1781 = vsel %vm419, %v1725, 0
      %1783 = vmatpush.bf16.msra.mxu0 0
      %1784 = vmatpush.bf16.msra.mxu0 0
      %1785 = vmatpush.bf16.msra.mxu0 0
      %1786 = vmatpush.bf16.msra.mxu0 0
      %1787 = vmatpush.bf16.msra.mxu0 0
      %1788 = vmatpush.bf16.msra.mxu0 0
      %1789 = vmatpush.bf16.msra.mxu0 0
      %1790 = vmatpush.bf16.msra.mxu0 %v1781
      %1791 = vmatmul.bf16.gmra.mxu0 %v1727
      %v1792 = vpop.f32.mrf.mxu0
      %v1793 = vadd.f32 0.0, %v1792
      %v1794 = vpop.f32.mrf.mxu0
      %v1795 = vadd.f32 0.0, %v1794
      %1796 = vmatmul.bf16.gmra.mxu0 %v1730
      %v1797 = vpop.f32.mrf.mxu0
      %v1798 = vadd.f32 0.0, %v1797
      %v1799 = vpop.f32.mrf.mxu0
      %v1800 = vadd.f32 0.0, %v1799
      %1801 = vmatmul.bf16.gmra.mxu0 %v1733
      %v1802 = vpop.f32.mrf.mxu0
      %v1803 = vadd.f32 0.0, %v1802
      %v1804 = vpop.f32.mrf.mxu0
      %v1805 = vadd.f32 0.0, %v1804
      %1806 = vmatmul.bf16.gmra.mxu0 %v1736
      %v1807 = vpop.f32.mrf.mxu0
      %v1808 = vadd.f32 0.0, %v1807
      %v1809 = vpop.f32.mrf.mxu0
      %v1810 = vadd.f32 0.0, %v1809
      %1811 = vmatmul.bf16.gmra.mxu0 %v1739
      %v1812 = vpop.f32.mrf.mxu0
      %v1813 = vadd.f32 0.0, %v1812
      %v1814 = vpop.f32.mrf.mxu0
      %v1815 = vadd.f32 0.0, %v1814
      %1816 = vmatmul.bf16.gmra.mxu0 %v1742
      %v1817 = vpop.f32.mrf.mxu0
      %v1818 = vadd.f32 0.0, %v1817
      %v1819 = vpop.f32.mrf.mxu0
      %v1820 = vadd.f32 0.0, %v1819
      %1821 = vmatmul.bf16.gmra.mxu0 %v1745
      %v1822 = vpop.f32.mrf.mxu0
      %v1823 = vadd.f32 0.0, %v1822
      %v1824 = vpop.f32.mrf.mxu0
      %v1825 = vadd.f32 0.0, %v1824
      %1826 = vmatmul.bf16.gmra.mxu0 %v1748
      %v1827 = vpop.f32.mrf.mxu0
      %v1828 = vadd.f32 0.0, %v1827
      %v1829 = vpop.f32.mrf.mxu0
      %v1830 = vadd.f32 0.0, %v1829
      %1831 = vmatmul.bf16.gmra.mxu0 %v1751
      %v1832 = vpop.f32.mrf.mxu0
      %v1833 = vadd.f32 0.0, %v1832
      %v1834 = vpop.f32.mrf.mxu0
      %v1835 = vadd.f32 0.0, %v1834
      %1836 = vmatmul.bf16.gmra.mxu0 %v1754
      %v1837 = vpop.f32.mrf.mxu0
      %v1838 = vadd.f32 0.0, %v1837
      %v1839 = vpop.f32.mrf.mxu0
      %v1840 = vadd.f32 0.0, %v1839
      %1841 = vmatmul.bf16.gmra.mxu0 %v1757
      %v1842 = vpop.f32.mrf.mxu0
      %v1843 = vadd.f32 0.0, %v1842
      %v1844 = vpop.f32.mrf.mxu0
      %v1845 = vadd.f32 0.0, %v1844
      %1846 = vmatmul.bf16.gmra.mxu0 %v1760
      %v1847 = vpop.f32.mrf.mxu0
      %v1848 = vadd.f32 0.0, %v1847
      %v1849 = vpop.f32.mrf.mxu0
      %v1850 = vadd.f32 0.0, %v1849
      %1851 = vmatmul.bf16.gmra.mxu0 %v1763
      %v1852 = vpop.f32.mrf.mxu0
      %v1853 = vadd.f32 0.0, %v1852
      %v1854 = vpop.f32.mrf.mxu0
      %v1855 = vadd.f32 0.0, %v1854
      %1856 = vmatmul.bf16.gmra.mxu0 %v1766
      %v1857 = vpop.f32.mrf.mxu0
      %v1858 = vadd.f32 0.0, %v1857
      %v1859 = vpop.f32.mrf.mxu0
      %v1860 = vadd.f32 0.0, %v1859
      %1861 = vmatmul.bf16.gmra.mxu0 %v1769
      %v1862 = vpop.f32.mrf.mxu0
      %v1863 = vadd.f32 0.0, %v1862
      %v1864 = vpop.f32.mrf.mxu0
      %v1865 = vadd.f32 0.0, %v1864
      %1866 = vmatmul.bf16.gmra.mxu0 %v1772
      %v1867 = vpop.f32.mrf.mxu0
      %v1868 = vadd.f32 0.0, %v1867
      %v1869 = vpop.f32.mrf.mxu0
      %v1870 = vadd.f32 0.0, %v1869
      %1871 = vmatmul.bf16.gmra.mxu0 %v1775
      %v1872 = vpop.f32.mrf.mxu0
      %v1873 = vadd.f32 0.0, %v1872
      %v1874 = vpop.f32.mrf.mxu0
      %v1875 = vadd.f32 0.0, %v1874
      %1876 = vmatmul.bf16.gmra.mxu0 %v1778
      %v1877 = vpop.f32.mrf.mxu0
      %v1878 = vadd.f32 0.0, %v1877
      %v1879 = vpop.f32.mrf.mxu0
      %v1880 = vadd.f32 0.0, %v1879
      %1881 = vdwg.mxu0
      %v1882 = vadd.f32 %v1634, %v1793
      %v1883 = vadd.f32 %v1635, %v1795
      %v1884 = vadd.f32 %v1636, %v1798
      %v1885 = vadd.f32 %v1637, %v1800
      %v1886 = vadd.f32 %v1638, %v1803
      %v1887 = vadd.f32 %v1639, %v1805
      %v1888 = vadd.f32 %v1640, %v1808
      %v1889 = vadd.f32 %v1641, %v1810
      %v1890 = vadd.f32 %v1642, %v1813
      %v1891 = vadd.f32 %v1643, %v1815
      %v1892 = vadd.f32 %v1644, %v1818
      %v1893 = vadd.f32 %v1645, %v1820
      %v1894 = vadd.f32 %v1646, %v1823
      %v1895 = vadd.f32 %v1647, %v1825
      %v1896 = vadd.f32 %v1648, %v1828
      %v1897 = vadd.f32 %v1649, %v1830
      %v1898 = vadd.f32 %v1650, %v1833
      %v1899 = vadd.f32 %v1651, %v1835
      %v1900 = vadd.f32 %v1652, %v1838
      %v1901 = vadd.f32 %v1653, %v1840
      %v1902 = vadd.f32 %v1654, %v1843
      %v1903 = vadd.f32 %v1655, %v1845
      %v1904 = vadd.f32 %v1656, %v1848
      %v1905 = vadd.f32 %v1657, %v1850
      %v1906 = vadd.f32 %v1658, %v1853
      %v1907 = vadd.f32 %v1659, %v1855
      %v1908 = vadd.f32 %v1660, %v1858
      %v1909 = vadd.f32 %v1661, %v1860
      %v1910 = vadd.f32 %v1662, %v1863
      %v1911 = vadd.f32 %v1663, %v1865
      %v1912 = vadd.f32 %v1664, %v1868
      %v1913 = vadd.f32 %v1665, %v1870
      %v1914 = vadd.f32 %v1666, %v1873
      %v1915 = vadd.f32 %v1667, %v1875
      %v1916 = vadd.f32 %v1668, %v1878
      %v1917 = vadd.f32 %v1669, %v1880
      %v1918 = vld [vmem:[%s246 + $0x25] sm:$0xff]
      %v1919 = vld [vmem:[%s246 + $0x2d] sm:$0xff]
      %v1920 = vld [vmem:[%s246 + $0x35] sm:$0xff]
      %v1921 = vld [vmem:[%s246 + $0x3d] sm:$0xff]
      %v1922 = vld [vmem:[%s246 + $0x45] sm:$0xff]
      %v1923 = vld [vmem:[%s246 + $0x4d] sm:$0xff]
      %v1924 = vld [vmem:[%s246 + $0x55] sm:$0xff]
      %v1925 = vld [vmem:[%s246 + $0x5d] sm:$0xff]
      %v1926 = vld [vmem:[%s246 + $0x65] sm:$0xff]
      %v1927 = vld [vmem:[%s246 + $0x6d] sm:$0xff]
      %v1928 = vld [vmem:[%s246 + $0x75] sm:$0xff]
      %v1929 = vld [vmem:[%s246 + $0x7d] sm:$0xff]
      %v1930 = vld [vmem:[%s246 + $0x85] sm:$0xff]
      %v1931 = vld [vmem:[%s246 + $0x8d] sm:$0xff]
      %v1932 = vld [vmem:[%s246 + $0x95] sm:$0xff]
      %v1933 = vld [vmem:[%s246 + $0x9d] sm:$0xff]
      %v1934 = vld [vmem:[%s246 + $0xa5] sm:$0xff]
      %v1935 = vld [vmem:[%s246 + $0xad] sm:$0xff]
      %v1936 = vld [vmem:[%s246 + $0xb5] sm:$0xff]
      %v1937 = vld [vmem:[%s246 + $0xbd] sm:$0xff]
      %v1938 = vld [vmem:[%s246 + $0xc5] sm:$0xff]
      %v1939 = vld [vmem:[%s246 + $0xcd] sm:$0xff]
      %v1940 = vld [vmem:[%s246 + $0xd5] sm:$0xff]
      %v1941 = vld [vmem:[%s246 + $0xdd] sm:$0xff]
      %v1942 = vld [vmem:[%s246 + $0xe5] sm:$0xff]
      %v1943 = vld [vmem:[%s246 + $0xed] sm:$0xff]
      %v1944 = vld [vmem:[%s246 + $0xf5] sm:$0xff]
      %v1945 = vld [vmem:[%s246 + $0xfd] sm:$0xff]
      %v1946 = vld [vmem:[%s246 + $0x105] sm:$0xff]
      %v1947 = vld [vmem:[%s246 + $0x10d] sm:$0xff]
      %v1948 = vld [vmem:[%s246 + $0x115] sm:$0xff]
      %v1949 = vld [vmem:[%s246 + $0x11d] sm:$0xff]
      %v1950 = vld [vmem:[%s246 + $0x125] sm:$0xff]
      %v1951 = vld [vmem:[%s246 + $0x12d] sm:$0xff]
      %v1952 = vld [vmem:[%s246 + $0x135] sm:$0xff]
      %v1953 = vld [vmem:[%s246 + $0x13d] sm:$0xff]
      %v1954 = vpack.c.bf16 %v1919, %v1918
      %v1955 = vpack.c.bf16 %v1921, %v1920
      %v1956 = vpack.c.bf16 %v1923, %v1922
      %v1957 = vpack.c.bf16 %v1925, %v1924
      %v1958 = vpack.c.bf16 %v1927, %v1926
      %v1959 = vpack.c.bf16 %v1929, %v1928
      %v1960 = vpack.c.bf16 %v1931, %v1930
      %v1961 = vpack.c.bf16 %v1933, %v1932
      %v1962 = vpack.c.bf16 %v1935, %v1934
      %v1963 = vpack.c.bf16 %v1937, %v1936
      %v1964 = vpack.c.bf16 %v1939, %v1938
      %v1965 = vpack.c.bf16 %v1941, %v1940
      %v1966 = vpack.c.bf16 %v1943, %v1942
      %v1967 = vpack.c.bf16 %v1945, %v1944
      %v1968 = vpack.c.bf16 %v1947, %v1946
      %v1969 = vpack.c.bf16 %v1949, %v1948
      %v1970 = vpack.c.bf16 %v1951, %v1950
      %v1971 = vpack.c.bf16 %v1953, %v1952
      %s1972 = scalar_lea.vmem %s1, 14
      %v1973 = vld [vmem:[%s1972] sm:$0x3]
      %v1975 = vsel %vm364, %v1954, 0
      %v1978 = vsel %vm364, %v1955, 0
      %v1981 = vsel %vm364, %v1956, 0
      %v1984 = vsel %vm364, %v1957, 0
      %v1987 = vsel %vm364, %v1958, 0
      %v1990 = vsel %vm364, %v1959, 0
      %v1993 = vsel %vm364, %v1960, 0
      %v1996 = vsel %vm364, %v1961, 0
      %v1999 = vsel %vm364, %v1962, 0
      %v2002 = vsel %vm364, %v1963, 0
      %v2005 = vsel %vm364, %v1964, 0
      %v2008 = vsel %vm364, %v1965, 0
      %v2011 = vsel %vm364, %v1966, 0
      %v2014 = vsel %vm364, %v1967, 0
      %v2017 = vsel %vm364, %v1968, 0
      %v2020 = vsel %vm364, %v1969, 0
      %v2023 = vsel %vm364, %v1970, 0
      %v2026 = vsel %vm364, %v1971, 0
      %v2029 = vsel %vm419, %v1973, 0
      %2031 = vmatpush.bf16.msra.mxu0 0
      %2032 = vmatpush.bf16.msra.mxu0 0
      %2033 = vmatpush.bf16.msra.mxu0 0
      %2034 = vmatpush.bf16.msra.mxu0 0
      %2035 = vmatpush.bf16.msra.mxu0 0
      %2036 = vmatpush.bf16.msra.mxu0 0
      %2037 = vmatpush.bf16.msra.mxu0 0
      %2038 = vmatpush.bf16.msra.mxu0 %v2029
      %2039 = vmatmul.bf16.gmra.mxu0 %v1975
      %v2040 = vpop.f32.mrf.mxu0
      %v2041 = vadd.f32 0.0, %v2040
      %v2042 = vpop.f32.mrf.mxu0
      %v2043 = vadd.f32 0.0, %v2042
      %2044 = vmatmul.bf16.gmra.mxu0 %v1978
      %v2045 = vpop.f32.mrf.mxu0
      %v2046 = vadd.f32 0.0, %v2045
      %v2047 = vpop.f32.mrf.mxu0
      %v2048 = vadd.f32 0.0, %v2047
      %2049 = vmatmul.bf16.gmra.mxu0 %v1981
      %v2050 = vpop.f32.mrf.mxu0
      %v2051 = vadd.f32 0.0, %v2050
      %v2052 = vpop.f32.mrf.mxu0
      %v2053 = vadd.f32 0.0, %v2052
      %2054 = vmatmul.bf16.gmra.mxu0 %v1984
      %v2055 = vpop.f32.mrf.mxu0
      %v2056 = vadd.f32 0.0, %v2055
      %v2057 = vpop.f32.mrf.mxu0
      %v2058 = vadd.f32 0.0, %v2057
      %2059 = vmatmul.bf16.gmra.mxu0 %v1987
      %v2060 = vpop.f32.mrf.mxu0
      %v2061 = vadd.f32 0.0, %v2060
      %v2062 = vpop.f32.mrf.mxu0
      %v2063 = vadd.f32 0.0, %v2062
      %2064 = vmatmul.bf16.gmra.mxu0 %v1990
      %v2065 = vpop.f32.mrf.mxu0
      %v2066 = vadd.f32 0.0, %v2065
      %v2067 = vpop.f32.mrf.mxu0
      %v2068 = vadd.f32 0.0, %v2067
      %2069 = vmatmul.bf16.gmra.mxu0 %v1993
      %v2070 = vpop.f32.mrf.mxu0
      %v2071 = vadd.f32 0.0, %v2070
      %v2072 = vpop.f32.mrf.mxu0
      %v2073 = vadd.f32 0.0, %v2072
      %2074 = vmatmul.bf16.gmra.mxu0 %v1996
      %v2075 = vpop.f32.mrf.mxu0
      %v2076 = vadd.f32 0.0, %v2075
      %v2077 = vpop.f32.mrf.mxu0
      %v2078 = vadd.f32 0.0, %v2077
      %2079 = vmatmul.bf16.gmra.mxu0 %v1999
      %v2080 = vpop.f32.mrf.mxu0
      %v2081 = vadd.f32 0.0, %v2080
      %v2082 = vpop.f32.mrf.mxu0
      %v2083 = vadd.f32 0.0, %v2082
      %2084 = vmatmul.bf16.gmra.mxu0 %v2002
      %v2085 = vpop.f32.mrf.mxu0
      %v2086 = vadd.f32 0.0, %v2085
      %v2087 = vpop.f32.mrf.mxu0
      %v2088 = vadd.f32 0.0, %v2087
      %2089 = vmatmul.bf16.gmra.mxu0 %v2005
      %v2090 = vpop.f32.mrf.mxu0
      %v2091 = vadd.f32 0.0, %v2090
      %v2092 = vpop.f32.mrf.mxu0
      %v2093 = vadd.f32 0.0, %v2092
      %2094 = vmatmul.bf16.gmra.mxu0 %v2008
      %v2095 = vpop.f32.mrf.mxu0
      %v2096 = vadd.f32 0.0, %v2095
      %v2097 = vpop.f32.mrf.mxu0
      %v2098 = vadd.f32 0.0, %v2097
      %2099 = vmatmul.bf16.gmra.mxu0 %v2011
      %v2100 = vpop.f32.mrf.mxu0
      %v2101 = vadd.f32 0.0, %v2100
      %v2102 = vpop.f32.mrf.mxu0
      %v2103 = vadd.f32 0.0, %v2102
      %2104 = vmatmul.bf16.gmra.mxu0 %v2014
      %v2105 = vpop.f32.mrf.mxu0
      %v2106 = vadd.f32 0.0, %v2105
      %v2107 = vpop.f32.mrf.mxu0
      %v2108 = vadd.f32 0.0, %v2107
      %2109 = vmatmul.bf16.gmra.mxu0 %v2017
      %v2110 = vpop.f32.mrf.mxu0
      %v2111 = vadd.f32 0.0, %v2110
      %v2112 = vpop.f32.mrf.mxu0
      %v2113 = vadd.f32 0.0, %v2112
      %2114 = vmatmul.bf16.gmra.mxu0 %v2020
      %v2115 = vpop.f32.mrf.mxu0
      %v2116 = vadd.f32 0.0, %v2115
      %v2117 = vpop.f32.mrf.mxu0
      %v2118 = vadd.f32 0.0, %v2117
      %2119 = vmatmul.bf16.gmra.mxu0 %v2023
      %v2120 = vpop.f32.mrf.mxu0
      %v2121 = vadd.f32 0.0, %v2120
      %v2122 = vpop.f32.mrf.mxu0
      %v2123 = vadd.f32 0.0, %v2122
      %2124 = vmatmul.bf16.gmra.mxu0 %v2026
      %v2125 = vpop.f32.mrf.mxu0
      %v2126 = vadd.f32 0.0, %v2125
      %v2127 = vpop.f32.mrf.mxu0
      %v2128 = vadd.f32 0.0, %v2127
      %2129 = vdwg.mxu0
      %v2130 = vadd.f32 %v1882, %v2041
      %v2131 = vadd.f32 %v1883, %v2043
      %v2132 = vadd.f32 %v1884, %v2046
      %v2133 = vadd.f32 %v1885, %v2048
      %v2134 = vadd.f32 %v1886, %v2051
      %v2135 = vadd.f32 %v1887, %v2053
      %v2136 = vadd.f32 %v1888, %v2056
      %v2137 = vadd.f32 %v1889, %v2058
      %v2138 = vadd.f32 %v1890, %v2061
      %v2139 = vadd.f32 %v1891, %v2063
      %v2140 = vadd.f32 %v1892, %v2066
      %v2141 = vadd.f32 %v1893, %v2068
      %v2142 = vadd.f32 %v1894, %v2071
      %v2143 = vadd.f32 %v1895, %v2073
      %v2144 = vadd.f32 %v1896, %v2076
      %v2145 = vadd.f32 %v1897, %v2078
      %v2146 = vadd.f32 %v1898, %v2081
      %v2147 = vadd.f32 %v1899, %v2083
      %v2148 = vadd.f32 %v1900, %v2086
      %v2149 = vadd.f32 %v1901, %v2088
      %v2150 = vadd.f32 %v1902, %v2091
      %v2151 = vadd.f32 %v1903, %v2093
      %v2152 = vadd.f32 %v1904, %v2096
      %v2153 = vadd.f32 %v1905, %v2098
      %v2154 = vadd.f32 %v1906, %v2101
      %v2155 = vadd.f32 %v1907, %v2103
      %v2156 = vadd.f32 %v1908, %v2106
      %v2157 = vadd.f32 %v1909, %v2108
      %v2158 = vadd.f32 %v1910, %v2111
      %v2159 = vadd.f32 %v1911, %v2113
      %v2160 = vadd.f32 %v1912, %v2116
      %v2161 = vadd.f32 %v1913, %v2118
      %v2162 = vadd.f32 %v1914, %v2121
      %v2163 = vadd.f32 %v1915, %v2123
      %v2164 = vadd.f32 %v1916, %v2126
      %v2165 = vadd.f32 %v1917, %v2128
      %v2166 = vld [vmem:[%s246 + $0x26] sm:$0xff]
      %v2167 = vld [vmem:[%s246 + $0x2e] sm:$0xff]
      %v2168 = vld [vmem:[%s246 + $0x36] sm:$0xff]
      %v2169 = vld [vmem:[%s246 + $0x3e] sm:$0xff]
      %v2170 = vld [vmem:[%s246 + $0x46] sm:$0xff]
      %v2171 = vld [vmem:[%s246 + $0x4e] sm:$0xff]
      %v2172 = vld [vmem:[%s246 + $0x56] sm:$0xff]
      %v2173 = vld [vmem:[%s246 + $0x5e] sm:$0xff]
      %v2174 = vld [vmem:[%s246 + $0x66] sm:$0xff]
      %v2175 = vld [vmem:[%s246 + $0x6e] sm:$0xff]
      %v2176 = vld [vmem:[%s246 + $0x76] sm:$0xff]
      %v2177 = vld [vmem:[%s246 + $0x7e] sm:$0xff]
      %v2178 = vld [vmem:[%s246 + $0x86] sm:$0xff]
      %v2179 = vld [vmem:[%s246 + $0x8e] sm:$0xff]
      %v2180 = vld [vmem:[%s246 + $0x96] sm:$0xff]
      %v2181 = vld [vmem:[%s246 + $0x9e] sm:$0xff]
      %v2182 = vld [vmem:[%s246 + $0xa6] sm:$0xff]
      %v2183 = vld [vmem:[%s246 + $0xae] sm:$0xff]
      %v2184 = vld [vmem:[%s246 + $0xb6] sm:$0xff]
      %v2185 = vld [vmem:[%s246 + $0xbe] sm:$0xff]
      %v2186 = vld [vmem:[%s246 + $0xc6] sm:$0xff]
      %v2187 = vld [vmem:[%s246 + $0xce] sm:$0xff]
      %v2188 = vld [vmem:[%s246 + $0xd6] sm:$0xff]
      %v2189 = vld [vmem:[%s246 + $0xde] sm:$0xff]
      %v2190 = vld [vmem:[%s246 + $0xe6] sm:$0xff]
      %v2191 = vld [vmem:[%s246 + $0xee] sm:$0xff]
      %v2192 = vld [vmem:[%s246 + $0xf6] sm:$0xff]
      %v2193 = vld [vmem:[%s246 + $0xfe] sm:$0xff]
      %v2194 = vld [vmem:[%s246 + $0x106] sm:$0xff]
      %v2195 = vld [vmem:[%s246 + $0x10e] sm:$0xff]
      %v2196 = vld [vmem:[%s246 + $0x116] sm:$0xff]
      %v2197 = vld [vmem:[%s246 + $0x11e] sm:$0xff]
      %v2198 = vld [vmem:[%s246 + $0x126] sm:$0xff]
      %v2199 = vld [vmem:[%s246 + $0x12e] sm:$0xff]
      %v2200 = vld [vmem:[%s246 + $0x136] sm:$0xff]
      %v2201 = vld [vmem:[%s246 + $0x13e] sm:$0xff]
      %v2202 = vpack.c.bf16 %v2167, %v2166
      %v2203 = vpack.c.bf16 %v2169, %v2168
      %v2204 = vpack.c.bf16 %v2171, %v2170
      %v2205 = vpack.c.bf16 %v2173, %v2172
      %v2206 = vpack.c.bf16 %v2175, %v2174
      %v2207 = vpack.c.bf16 %v2177, %v2176
      %v2208 = vpack.c.bf16 %v2179, %v2178
      %v2209 = vpack.c.bf16 %v2181, %v2180
      %v2210 = vpack.c.bf16 %v2183, %v2182
      %v2211 = vpack.c.bf16 %v2185, %v2184
      %v2212 = vpack.c.bf16 %v2187, %v2186
      %v2213 = vpack.c.bf16 %v2189, %v2188
      %v2214 = vpack.c.bf16 %v2191, %v2190
      %v2215 = vpack.c.bf16 %v2193, %v2192
      %v2216 = vpack.c.bf16 %v2195, %v2194
      %v2217 = vpack.c.bf16 %v2197, %v2196
      %v2218 = vpack.c.bf16 %v2199, %v2198
      %v2219 = vpack.c.bf16 %v2201, %v2200
      %s2220 = scalar_lea.vmem %s1, 16
      %v2221 = vld [vmem:[%s2220] sm:$0x3]
      %v2223 = vsel %vm364, %v2202, 0
      %v2226 = vsel %vm364, %v2203, 0
      %v2229 = vsel %vm364, %v2204, 0
      %v2232 = vsel %vm364, %v2205, 0
      %v2235 = vsel %vm364, %v2206, 0
      %v2238 = vsel %vm364, %v2207, 0
      %v2241 = vsel %vm364, %v2208, 0
      %v2244 = vsel %vm364, %v2209, 0
      %v2247 = vsel %vm364, %v2210, 0
      %v2250 = vsel %vm364, %v2211, 0
      %v2253 = vsel %vm364, %v2212, 0
      %v2256 = vsel %vm364, %v2213, 0
      %v2259 = vsel %vm364, %v2214, 0
      %v2262 = vsel %vm364, %v2215, 0
      %v2265 = vsel %vm364, %v2216, 0
      %v2268 = vsel %vm364, %v2217, 0
      %v2271 = vsel %vm364, %v2218, 0
      %v2274 = vsel %vm364, %v2219, 0
      %v2277 = vsel %vm419, %v2221, 0
      %2279 = vmatpush.bf16.msra.mxu0 0
      %2280 = vmatpush.bf16.msra.mxu0 0
      %2281 = vmatpush.bf16.msra.mxu0 0
      %2282 = vmatpush.bf16.msra.mxu0 0
      %2283 = vmatpush.bf16.msra.mxu0 0
      %2284 = vmatpush.bf16.msra.mxu0 0
      %2285 = vmatpush.bf16.msra.mxu0 0
      %2286 = vmatpush.bf16.msra.mxu0 %v2277
      %2287 = vmatmul.bf16.gmra.mxu0 %v2223
      %v2288 = vpop.f32.mrf.mxu0
      %v2289 = vadd.f32 0.0, %v2288
      %v2290 = vpop.f32.mrf.mxu0
      %v2291 = vadd.f32 0.0, %v2290
      %2292 = vmatmul.bf16.gmra.mxu0 %v2226
      %v2293 = vpop.f32.mrf.mxu0
      %v2294 = vadd.f32 0.0, %v2293
      %v2295 = vpop.f32.mrf.mxu0
      %v2296 = vadd.f32 0.0, %v2295
      %2297 = vmatmul.bf16.gmra.mxu0 %v2229
      %v2298 = vpop.f32.mrf.mxu0
      %v2299 = vadd.f32 0.0, %v2298
      %v2300 = vpop.f32.mrf.mxu0
      %v2301 = vadd.f32 0.0, %v2300
      %2302 = vmatmul.bf16.gmra.mxu0 %v2232
      %v2303 = vpop.f32.mrf.mxu0
      %v2304 = vadd.f32 0.0, %v2303
      %v2305 = vpop.f32.mrf.mxu0
      %v2306 = vadd.f32 0.0, %v2305
      %2307 = vmatmul.bf16.gmra.mxu0 %v2235
      %v2308 = vpop.f32.mrf.mxu0
      %v2309 = vadd.f32 0.0, %v2308
      %v2310 = vpop.f32.mrf.mxu0
      %v2311 = vadd.f32 0.0, %v2310
      %2312 = vmatmul.bf16.gmra.mxu0 %v2238
      %v2313 = vpop.f32.mrf.mxu0
      %v2314 = vadd.f32 0.0, %v2313
      %v2315 = vpop.f32.mrf.mxu0
      %v2316 = vadd.f32 0.0, %v2315
      %2317 = vmatmul.bf16.gmra.mxu0 %v2241
      %v2318 = vpop.f32.mrf.mxu0
      %v2319 = vadd.f32 0.0, %v2318
      %v2320 = vpop.f32.mrf.mxu0
      %v2321 = vadd.f32 0.0, %v2320
      %2322 = vmatmul.bf16.gmra.mxu0 %v2244
      %v2323 = vpop.f32.mrf.mxu0
      %v2324 = vadd.f32 0.0, %v2323
      %v2325 = vpop.f32.mrf.mxu0
      %v2326 = vadd.f32 0.0, %v2325
      %2327 = vmatmul.bf16.gmra.mxu0 %v2247
      %v2328 = vpop.f32.mrf.mxu0
      %v2329 = vadd.f32 0.0, %v2328
      %v2330 = vpop.f32.mrf.mxu0
      %v2331 = vadd.f32 0.0, %v2330
      %2332 = vmatmul.bf16.gmra.mxu0 %v2250
      %v2333 = vpop.f32.mrf.mxu0
      %v2334 = vadd.f32 0.0, %v2333
      %v2335 = vpop.f32.mrf.mxu0
      %v2336 = vadd.f32 0.0, %v2335
      %2337 = vmatmul.bf16.gmra.mxu0 %v2253
      %v2338 = vpop.f32.mrf.mxu0
      %v2339 = vadd.f32 0.0, %v2338
      %v2340 = vpop.f32.mrf.mxu0
      %v2341 = vadd.f32 0.0, %v2340
      %2342 = vmatmul.bf16.gmra.mxu0 %v2256
      %v2343 = vpop.f32.mrf.mxu0
      %v2344 = vadd.f32 0.0, %v2343
      %v2345 = vpop.f32.mrf.mxu0
      %v2346 = vadd.f32 0.0, %v2345
      %2347 = vmatmul.bf16.gmra.mxu0 %v2259
      %v2348 = vpop.f32.mrf.mxu0
      %v2349 = vadd.f32 0.0, %v2348
      %v2350 = vpop.f32.mrf.mxu0
      %v2351 = vadd.f32 0.0, %v2350
      %2352 = vmatmul.bf16.gmra.mxu0 %v2262
      %v2353 = vpop.f32.mrf.mxu0
      %v2354 = vadd.f32 0.0, %v2353
      %v2355 = vpop.f32.mrf.mxu0
      %v2356 = vadd.f32 0.0, %v2355
      %2357 = vmatmul.bf16.gmra.mxu0 %v2265
      %v2358 = vpop.f32.mrf.mxu0
      %v2359 = vadd.f32 0.0, %v2358
      %v2360 = vpop.f32.mrf.mxu0
      %v2361 = vadd.f32 0.0, %v2360
      %2362 = vmatmul.bf16.gmra.mxu0 %v2268
      %v2363 = vpop.f32.mrf.mxu0
      %v2364 = vadd.f32 0.0, %v2363
      %v2365 = vpop.f32.mrf.mxu0
      %v2366 = vadd.f32 0.0, %v2365
      %2367 = vmatmul.bf16.gmra.mxu0 %v2271
      %v2368 = vpop.f32.mrf.mxu0
      %v2369 = vadd.f32 0.0, %v2368
      %v2370 = vpop.f32.mrf.mxu0
      %v2371 = vadd.f32 0.0, %v2370
      %2372 = vmatmul.bf16.gmra.mxu0 %v2274
      %v2373 = vpop.f32.mrf.mxu0
      %v2374 = vadd.f32 0.0, %v2373
      %v2375 = vpop.f32.mrf.mxu0
      %v2376 = vadd.f32 0.0, %v2375
      %2377 = vdwg.mxu0
      %v2378 = vadd.f32 %v2130, %v2289
      %v2379 = vadd.f32 %v2131, %v2291
      %v2380 = vadd.f32 %v2132, %v2294
      %v2381 = vadd.f32 %v2133, %v2296
      %v2382 = vadd.f32 %v2134, %v2299
      %v2383 = vadd.f32 %v2135, %v2301
      %v2384 = vadd.f32 %v2136, %v2304
      %v2385 = vadd.f32 %v2137, %v2306
      %v2386 = vadd.f32 %v2138, %v2309
      %v2387 = vadd.f32 %v2139, %v2311
      %v2388 = vadd.f32 %v2140, %v2314
      %v2389 = vadd.f32 %v2141, %v2316
      %v2390 = vadd.f32 %v2142, %v2319
      %v2391 = vadd.f32 %v2143, %v2321
      %v2392 = vadd.f32 %v2144, %v2324
      %v2393 = vadd.f32 %v2145, %v2326
      %v2394 = vadd.f32 %v2146, %v2329
      %v2395 = vadd.f32 %v2147, %v2331
      %v2396 = vadd.f32 %v2148, %v2334
      %v2397 = vadd.f32 %v2149, %v2336
      %v2398 = vadd.f32 %v2150, %v2339
      %v2399 = vadd.f32 %v2151, %v2341
      %v2400 = vadd.f32 %v2152, %v2344
      %v2401 = vadd.f32 %v2153, %v2346
      %v2402 = vadd.f32 %v2154, %v2349
      %v2403 = vadd.f32 %v2155, %v2351
      %v2404 = vadd.f32 %v2156, %v2354
      %v2405 = vadd.f32 %v2157, %v2356
      %v2406 = vadd.f32 %v2158, %v2359
      %v2407 = vadd.f32 %v2159, %v2361
      %v2408 = vadd.f32 %v2160, %v2364
      %v2409 = vadd.f32 %v2161, %v2366
      %v2410 = vadd.f32 %v2162, %v2369
      %v2411 = vadd.f32 %v2163, %v2371
      %v2412 = vadd.f32 %v2164, %v2374
      %v2413 = vadd.f32 %v2165, %v2376
      %v2414 = vld [vmem:[%s2] sm:$0x1]
      %v2416 = vperm.slane %v2414, 0
      %v2418 = vadd.f32 %v2378, %v2416
      %v2419 = vadd.f32 %v2379, %v2416
      %v2420 = vadd.f32 %v2380, %v2416
      %v2421 = vadd.f32 %v2381, %v2416
      %v2422 = vadd.f32 %v2382, %v2416
      %v2423 = vadd.f32 %v2383, %v2416
      %v2424 = vadd.f32 %v2384, %v2416
      %v2425 = vadd.f32 %v2385, %v2416
      %v2426 = vadd.f32 %v2386, %v2416
      %v2427 = vadd.f32 %v2387, %v2416
      %v2428 = vadd.f32 %v2388, %v2416
      %v2429 = vadd.f32 %v2389, %v2416
      %v2430 = vadd.f32 %v2390, %v2416
      %v2431 = vadd.f32 %v2391, %v2416
      %v2432 = vadd.f32 %v2392, %v2416
      %v2433 = vadd.f32 %v2393, %v2416
      %v2434 = vadd.f32 %v2394, %v2416
      %v2435 = vadd.f32 %v2395, %v2416
      %v2436 = vadd.f32 %v2396, %v2416
      %v2437 = vadd.f32 %v2397, %v2416
      %v2438 = vadd.f32 %v2398, %v2416
      %v2439 = vadd.f32 %v2399, %v2416
      %v2440 = vadd.f32 %v2400, %v2416
      %v2441 = vadd.f32 %v2401, %v2416
      %v2442 = vadd.f32 %v2402, %v2416
      %v2443 = vadd.f32 %v2403, %v2416
      %v2444 = vadd.f32 %v2404, %v2416
      %v2445 = vadd.f32 %v2405, %v2416
      %v2446 = vadd.f32 %v2406, %v2416
      %v2447 = vadd.f32 %v2407, %v2416
      %v2448 = vadd.f32 %v2408, %v2416
      %v2449 = vadd.f32 %v2409, %v2416
      %v2450 = vadd.f32 %v2410, %v2416
      %v2451 = vadd.f32 %v2411, %v2416
      %v2452 = vadd.f32 %v2412, %v2416
      %v2453 = vadd.f32 %v2413, %v2416
      %v2454 = vmax.f32 %v2418, 0.0
      %v2455 = vmax.f32 %v2419, 0.0
      %v2456 = vmax.f32 %v2420, 0.0
      %v2457 = vmax.f32 %v2421, 0.0
      %v2458 = vmax.f32 %v2422, 0.0
      %v2459 = vmax.f32 %v2423, 0.0
      %v2460 = vmax.f32 %v2424, 0.0
      %v2461 = vmax.f32 %v2425, 0.0
      %v2462 = vmax.f32 %v2426, 0.0
      %v2463 = vmax.f32 %v2427, 0.0
      %v2464 = vmax.f32 %v2428, 0.0
      %v2465 = vmax.f32 %v2429, 0.0
      %v2466 = vmax.f32 %v2430, 0.0
      %v2467 = vmax.f32 %v2431, 0.0
      %v2468 = vmax.f32 %v2432, 0.0
      %v2469 = vmax.f32 %v2433, 0.0
      %v2470 = vmax.f32 %v2434, 0.0
      %v2471 = vmax.f32 %v2435, 0.0
      %v2472 = vmax.f32 %v2436, 0.0
      %v2473 = vmax.f32 %v2437, 0.0
      %v2474 = vmax.f32 %v2438, 0.0
      %v2475 = vmax.f32 %v2439, 0.0
      %v2476 = vmax.f32 %v2440, 0.0
      %v2477 = vmax.f32 %v2441, 0.0
      %v2478 = vmax.f32 %v2442, 0.0
      %v2479 = vmax.f32 %v2443, 0.0
      %v2480 = vmax.f32 %v2444, 0.0
      %v2481 = vmax.f32 %v2445, 0.0
      %v2482 = vmax.f32 %v2446, 0.0
      %v2483 = vmax.f32 %v2447, 0.0
      %v2484 = vmax.f32 %v2448, 0.0
      %v2485 = vmax.f32 %v2449, 0.0
      %v2486 = vmax.f32 %v2450, 0.0
      %v2487 = vmax.f32 %v2451, 0.0
      %v2488 = vmax.f32 %v2452, 0.0
      %v2489 = vmax.f32 %v2453, 0.0
      %v2490 = vld [vmem:[%s5] sm:$0xff]
      %v2491 = vld [vmem:[%s5 + $0x8] sm:$0xff]
      %v2492 = vld [vmem:[%s5 + $0x10] sm:$0xff]
      %v2493 = vld [vmem:[%s5 + $0x18] sm:$0xff]
      %v2494 = vld [vmem:[%s5 + $0x20] sm:$0xff]
      %v2495 = vld [vmem:[%s5 + $0x28] sm:$0xff]
      %v2496 = vld [vmem:[%s5 + $0x30] sm:$0xff]
      %v2497 = vld [vmem:[%s5 + $0x38] sm:$0xff]
      %v2498 = vld [vmem:[%s5 + $0x40] sm:$0xff]
      %v2499 = vld [vmem:[%s5 + $0x48] sm:$0xff]
      %v2500 = vld [vmem:[%s5 + $0x50] sm:$0xff]
      %v2501 = vld [vmem:[%s5 + $0x58] sm:$0xff]
      %v2502 = vld [vmem:[%s5 + $0x60] sm:$0xff]
      %v2503 = vld [vmem:[%s5 + $0x68] sm:$0xff]
      %v2504 = vld [vmem:[%s5 + $0x70] sm:$0xff]
      %v2505 = vld [vmem:[%s5 + $0x78] sm:$0xff]
      %v2506 = vld [vmem:[%s5 + $0x80] sm:$0xff]
      %v2507 = vld [vmem:[%s5 + $0x88] sm:$0xff]
      %v2508 = vld [vmem:[%s5 + $0x90] sm:$0xff]
      %v2509 = vld [vmem:[%s5 + $0x98] sm:$0xff]
      %v2510 = vld [vmem:[%s5 + $0xa0] sm:$0xff]
      %v2511 = vld [vmem:[%s5 + $0xa8] sm:$0xff]
      %v2512 = vld [vmem:[%s5 + $0xb0] sm:$0xff]
      %v2513 = vld [vmem:[%s5 + $0xb8] sm:$0xff]
      %v2514 = vld [vmem:[%s5 + $0xc0] sm:$0xff]
      %v2515 = vld [vmem:[%s5 + $0xc8] sm:$0xff]
      %v2516 = vld [vmem:[%s5 + $0xd0] sm:$0xff]
      %v2517 = vld [vmem:[%s5 + $0xd8] sm:$0xff]
      %v2518 = vld [vmem:[%s5 + $0xe0] sm:$0xff]
      %v2519 = vld [vmem:[%s5 + $0xe8] sm:$0xff]
      %v2520 = vld [vmem:[%s5 + $0xf0] sm:$0xff]
      %v2521 = vld [vmem:[%s5 + $0xf8] sm:$0xff]
      %v2522 = vld [vmem:[%s5 + $0x100] sm:$0xff]
      %v2523 = vld [vmem:[%s5 + $0x108] sm:$0xff]
      %v2524 = vld [vmem:[%s5 + $0x110] sm:$0xff]
      %v2525 = vld [vmem:[%s5 + $0x118] sm:$0xff]
      %2527 = vset.pattern.permute.xlu0 0
      %2528 = vperm.xlu0 %2527, %v2490
      %v2529 = vpop.permute.xlu0 %2528
      %2532 = vset.pattern.permute.xlu0 0
      %2533 = vperm.xlu0 %2532, %v2491
      %v2534 = vpop.permute.xlu0 %2533
      %2537 = vset.pattern.permute.xlu0 0
      %2538 = vperm.xlu0 %2537, %v2492
      %v2539 = vpop.permute.xlu0 %2538
      %2542 = vset.pattern.permute.xlu0 0
      %2543 = vperm.xlu0 %2542, %v2493
      %v2544 = vpop.permute.xlu0 %2543
      %2547 = vset.pattern.permute.xlu0 0
      %2548 = vperm.xlu0 %2547, %v2494
      %v2549 = vpop.permute.xlu0 %2548
      %2552 = vset.pattern.permute.xlu0 0
      %2553 = vperm.xlu0 %2552, %v2495
      %v2554 = vpop.permute.xlu0 %2553
      %2557 = vset.pattern.permute.xlu0 0
      %2558 = vperm.xlu0 %2557, %v2496
      %v2559 = vpop.permute.xlu0 %2558
      %2562 = vset.pattern.permute.xlu0 0
      %2563 = vperm.xlu0 %2562, %v2497
      %v2564 = vpop.permute.xlu0 %2563
      %2567 = vset.pattern.permute.xlu0 0
      %2568 = vperm.xlu0 %2567, %v2498
      %v2569 = vpop.permute.xlu0 %2568
      %2572 = vset.pattern.permute.xlu0 0
      %2573 = vperm.xlu0 %2572, %v2499
      %v2574 = vpop.permute.xlu0 %2573
      %2577 = vset.pattern.permute.xlu0 0
      %2578 = vperm.xlu0 %2577, %v2500
      %v2579 = vpop.permute.xlu0 %2578
      %2582 = vset.pattern.permute.xlu0 0
      %2583 = vperm.xlu0 %2582, %v2501
      %v2584 = vpop.permute.xlu0 %2583
      %2587 = vset.pattern.permute.xlu0 0
      %2588 = vperm.xlu0 %2587, %v2502
      %v2589 = vpop.permute.xlu0 %2588
      %2592 = vset.pattern.permute.xlu0 0
      %2593 = vperm.xlu0 %2592, %v2503
      %v2594 = vpop.permute.xlu0 %2593
      %2597 = vset.pattern.permute.xlu0 0
      %2598 = vperm.xlu0 %2597, %v2504
      %v2599 = vpop.permute.xlu0 %2598
      %2602 = vset.pattern.permute.xlu0 0
      %2603 = vperm.xlu0 %2602, %v2505
      %v2604 = vpop.permute.xlu0 %2603
      %2607 = vset.pattern.permute.xlu0 0
      %2608 = vperm.xlu0 %2607, %v2506
      %v2609 = vpop.permute.xlu0 %2608
      %2612 = vset.pattern.permute.xlu0 0
      %2613 = vperm.xlu0 %2612, %v2507
      %v2614 = vpop.permute.xlu0 %2613
      %2617 = vset.pattern.permute.xlu0 0
      %2618 = vperm.xlu0 %2617, %v2508
      %v2619 = vpop.permute.xlu0 %2618
      %2622 = vset.pattern.permute.xlu0 0
      %2623 = vperm.xlu0 %2622, %v2509
      %v2624 = vpop.permute.xlu0 %2623
      %2627 = vset.pattern.permute.xlu0 0
      %2628 = vperm.xlu0 %2627, %v2510
      %v2629 = vpop.permute.xlu0 %2628
      %2632 = vset.pattern.permute.xlu0 0
      %2633 = vperm.xlu0 %2632, %v2511
      %v2634 = vpop.permute.xlu0 %2633
      %2637 = vset.pattern.permute.xlu0 0
      %2638 = vperm.xlu0 %2637, %v2512
      %v2639 = vpop.permute.xlu0 %2638
      %2642 = vset.pattern.permute.xlu0 0
      %2643 = vperm.xlu0 %2642, %v2513
      %v2644 = vpop.permute.xlu0 %2643
      %2647 = vset.pattern.permute.xlu0 0
      %2648 = vperm.xlu0 %2647, %v2514
      %v2649 = vpop.permute.xlu0 %2648
      %2652 = vset.pattern.permute.xlu0 0
      %2653 = vperm.xlu0 %2652, %v2515
      %v2654 = vpop.permute.xlu0 %2653
      %2657 = vset.pattern.permute.xlu0 0
      %2658 = vperm.xlu0 %2657, %v2516
      %v2659 = vpop.permute.xlu0 %2658
      %2662 = vset.pattern.permute.xlu0 0
      %2663 = vperm.xlu0 %2662, %v2517
      %v2664 = vpop.permute.xlu0 %2663
      %2667 = vset.pattern.permute.xlu0 0
      %2668 = vperm.xlu0 %2667, %v2518
      %v2669 = vpop.permute.xlu0 %2668
      %2672 = vset.pattern.permute.xlu0 0
      %2673 = vperm.xlu0 %2672, %v2519
      %v2674 = vpop.permute.xlu0 %2673
      %2677 = vset.pattern.permute.xlu0 0
      %2678 = vperm.xlu0 %2677, %v2520
      %v2679 = vpop.permute.xlu0 %2678
      %2682 = vset.pattern.permute.xlu0 0
      %2683 = vperm.xlu0 %2682, %v2521
      %v2684 = vpop.permute.xlu0 %2683
      %2687 = vset.pattern.permute.xlu0 0
      %2688 = vperm.xlu0 %2687, %v2522
      %v2689 = vpop.permute.xlu0 %2688
      %2692 = vset.pattern.permute.xlu0 0
      %2693 = vperm.xlu0 %2692, %v2523
      %v2694 = vpop.permute.xlu0 %2693
      %2697 = vset.pattern.permute.xlu0 0
      %2698 = vperm.xlu0 %2697, %v2524
      %v2699 = vpop.permute.xlu0 %2698
      %2702 = vset.pattern.permute.xlu0 0
      %2703 = vperm.xlu0 %2702, %v2525
      %v2704 = vpop.permute.xlu0 %2703
      %v2706 = vmul.f32 %v2454, %v2529
      %v2707 = vmul.f32 %v2455, %v2534
      %v2708 = vmul.f32 %v2456, %v2539
      %v2709 = vmul.f32 %v2457, %v2544
      %v2710 = vmul.f32 %v2458, %v2549
      %v2711 = vmul.f32 %v2459, %v2554
      %v2712 = vmul.f32 %v2460, %v2559
      %v2713 = vmul.f32 %v2461, %v2564
      %v2714 = vmul.f32 %v2462, %v2569
      %v2715 = vmul.f32 %v2463, %v2574
      %v2716 = vmul.f32 %v2464, %v2579
      %v2717 = vmul.f32 %v2465, %v2584
      %v2718 = vmul.f32 %v2466, %v2589
      %v2719 = vmul.f32 %v2467, %v2594
      %v2720 = vmul.f32 %v2468, %v2599
      %v2721 = vmul.f32 %v2469, %v2604
      %v2722 = vmul.f32 %v2470, %v2609
      %v2723 = vmul.f32 %v2471, %v2614
      %v2724 = vmul.f32 %v2472, %v2619
      %v2725 = vmul.f32 %v2473, %v2624
      %v2726 = vmul.f32 %v2474, %v2629
      %v2727 = vmul.f32 %v2475, %v2634
      %v2728 = vmul.f32 %v2476, %v2639
      %v2729 = vmul.f32 %v2477, %v2644
      %v2730 = vmul.f32 %v2478, %v2649
      %v2731 = vmul.f32 %v2479, %v2654
      %v2732 = vmul.f32 %v2480, %v2659
      %v2733 = vmul.f32 %v2481, %v2664
      %v2734 = vmul.f32 %v2482, %v2669
      %v2735 = vmul.f32 %v2483, %v2674
      %v2736 = vmul.f32 %v2484, %v2679
      %v2737 = vmul.f32 %v2485, %v2684
      %v2738 = vmul.f32 %v2486, %v2689
      %v2739 = vmul.f32 %v2487, %v2694
      %v2740 = vmul.f32 %v2488, %v2699
      %v2741 = vmul.f32 %v2489, %v2704
      %vm2742 = vcmask 261120
      %2743 = vst.msk [vmem:[#allocation2] sm:$0xff] %vm2742, 0.0
      %2744 = vst.msk [vmem:[#allocation2 + $0x8] sm:$0xff] %vm2742, 0.0
      %2745 = vst.msk [vmem:[#allocation2 + $0x10] sm:$0xff] %vm2742, 0.0
      %2746 = vst.msk [vmem:[#allocation2 + $0x18] sm:$0xff] %vm2742, 0.0
      %2747 = vst.msk [vmem:[#allocation2 + $0x20] sm:$0xff] %vm2742, 0.0
      %2748 = vst.msk [vmem:[#allocation2 + $0x28] sm:$0xff] %vm2742, 0.0
      %2749 = vst.msk [vmem:[#allocation2 + $0x30] sm:$0xff] %vm2742, 0.0
      %2750 = vst.msk [vmem:[#allocation2 + $0x38] sm:$0xff] %vm2742, 0.0
      %2751 = vst.msk [vmem:[#allocation2 + $0x40] sm:$0xff] %vm2742, 0.0
      %2752 = vst.msk [vmem:[#allocation2 + $0x48] sm:$0xff] %vm2742, 0.0
      %2753 = vst.msk [vmem:[#allocation2 + $0x50] sm:$0xff] %vm2742, 0.0
      %2754 = vst.msk [vmem:[#allocation2 + $0x58] sm:$0xff] %vm2742, 0.0
      %2755 = vst.msk [vmem:[#allocation2 + $0x60] sm:$0xff] %vm2742, 0.0
      %2756 = vst.msk [vmem:[#allocation2 + $0x68] sm:$0xff] %vm2742, 0.0
      %2757 = vst.msk [vmem:[#allocation2 + $0x70] sm:$0xff] %vm2742, 0.0
      %2758 = vst.msk [vmem:[#allocation2 + $0x78] sm:$0xff] %vm2742, 0.0
      %2759 = vst.msk [vmem:[#allocation2 + $0x80] sm:$0xff] %vm2742, 0.0
      %2760 = vst.msk [vmem:[#allocation2 + $0x88] sm:$0xff] %vm2742, 0.0
      %2761 = vst.msk [vmem:[#allocation2 + $0x90] sm:$0xff] %vm2742, 0.0
      %2762 = vst.msk [vmem:[#allocation2 + $0x98] sm:$0xff] %vm2742, 0.0
      %2763 = vst.msk [vmem:[#allocation2 + $0xa0] sm:$0xff] %vm2742, 0.0
      %2764 = vst.msk [vmem:[#allocation2 + $0xa8] sm:$0xff] %vm2742, 0.0
      %2765 = vst.msk [vmem:[#allocation2 + $0xb0] sm:$0xff] %vm2742, 0.0
      %2766 = vst.msk [vmem:[#allocation2 + $0xb8] sm:$0xff] %vm2742, 0.0
      %2767 = vst.msk [vmem:[#allocation2 + $0xc0] sm:$0xff] %vm2742, 0.0
      %2768 = vst.msk [vmem:[#allocation2 + $0xc8] sm:$0xff] %vm2742, 0.0
      %2769 = vst.msk [vmem:[#allocation2 + $0xd0] sm:$0xff] %vm2742, 0.0
      %2770 = vst.msk [vmem:[#allocation2 + $0xd8] sm:$0xff] %vm2742, 0.0
      %2771 = vst.msk [vmem:[#allocation2 + $0xe0] sm:$0xff] %vm2742, 0.0
      %2772 = vst.msk [vmem:[#allocation2 + $0xe8] sm:$0xff] %vm2742, 0.0
      %2773 = vst.msk [vmem:[#allocation2 + $0xf0] sm:$0xff] %vm2742, 0.0
      %2774 = vst.msk [vmem:[#allocation2 + $0xf8] sm:$0xff] %vm2742, 0.0
      %2775 = vst.msk [vmem:[#allocation2 + $0x100] sm:$0xff] %vm2742, 0.0
      %2776 = vst.msk [vmem:[#allocation2 + $0x108] sm:$0xff] %vm2742, 0.0
      %2777 = vst.msk [vmem:[#allocation2 + $0x110] sm:$0xff] %vm2742, 0.0
      %2778 = vst.msk [vmem:[#allocation2 + $0x118] sm:$0xff] %vm2742, 0.0
      %2779 = vst.msk [vmem:[#allocation2 + $0x120] sm:$0xff] %vm2742, 0.0
      %2780 = vst.msk [vmem:[#allocation2 + $0x128] sm:$0xff] %vm2742, 0.0
      %2781 = vst.msk [vmem:[#allocation2 + $0x130] sm:$0xff] %vm2742, 0.0
      %2782 = vst.msk [vmem:[#allocation2 + $0x138] sm:$0xff] %vm2742, 0.0
      %2783 = vst.msk [vmem:[#allocation2 + $0x140] sm:$0xff] %vm2742, 0.0
      %2784 = vst.msk [vmem:[#allocation2 + $0x148] sm:$0xff] %vm2742, 0.0
      %2785 = vst.msk [vmem:[#allocation2 + $0x18] sm:$0xff] %vm2742, %v2706
      %2786 = vst.msk [vmem:[#allocation2 + $0x20] sm:$0xff] %vm2742, %v2707
      %2787 = vst.msk [vmem:[#allocation2 + $0x28] sm:$0xff] %vm2742, %v2708
      %2788 = vst.msk [vmem:[#allocation2 + $0x30] sm:$0xff] %vm2742, %v2709
      %2789 = vst.msk [vmem:[#allocation2 + $0x38] sm:$0xff] %vm2742, %v2710
      %2790 = vst.msk [vmem:[#allocation2 + $0x40] sm:$0xff] %vm2742, %v2711
      %2791 = vst.msk [vmem:[#allocation2 + $0x48] sm:$0xff] %vm2742, %v2712
      %2792 = vst.msk [vmem:[#allocation2 + $0x50] sm:$0xff] %vm2742, %v2713
      %2793 = vst.msk [vmem:[#allocation2 + $0x58] sm:$0xff] %vm2742, %v2714
      %2794 = vst.msk [vmem:[#allocation2 + $0x60] sm:$0xff] %vm2742, %v2715
      %2795 = vst.msk [vmem:[#allocation2 + $0x68] sm:$0xff] %vm2742, %v2716
      %2796 = vst.msk [vmem:[#allocation2 + $0x70] sm:$0xff] %vm2742, %v2717
      %2797 = vst.msk [vmem:[#allocation2 + $0x78] sm:$0xff] %vm2742, %v2718
      %2798 = vst.msk [vmem:[#allocation2 + $0x80] sm:$0xff] %vm2742, %v2719
      %2799 = vst.msk [vmem:[#allocation2 + $0x88] sm:$0xff] %vm2742, %v2720
      %2800 = vst.msk [vmem:[#allocation2 + $0x90] sm:$0xff] %vm2742, %v2721
      %2801 = vst.msk [vmem:[#allocation2 + $0x98] sm:$0xff] %vm2742, %v2722
      %2802 = vst.msk [vmem:[#allocation2 + $0xa0] sm:$0xff] %vm2742, %v2723
      %2803 = vst.msk [vmem:[#allocation2 + $0xa8] sm:$0xff] %vm2742, %v2724
      %2804 = vst.msk [vmem:[#allocation2 + $0xb0] sm:$0xff] %vm2742, %v2725
      %2805 = vst.msk [vmem:[#allocation2 + $0xb8] sm:$0xff] %vm2742, %v2726
      %2806 = vst.msk [vmem:[#allocation2 + $0xc0] sm:$0xff] %vm2742, %v2727
      %2807 = vst.msk [vmem:[#allocation2 + $0xc8] sm:$0xff] %vm2742, %v2728
      %2808 = vst.msk [vmem:[#allocation2 + $0xd0] sm:$0xff] %vm2742, %v2729
      %2809 = vst.msk [vmem:[#allocation2 + $0xd8] sm:$0xff] %vm2742, %v2730
      %2810 = vst.msk [vmem:[#allocation2 + $0xe0] sm:$0xff] %vm2742, %v2731
      %2811 = vst.msk [vmem:[#allocation2 + $0xe8] sm:$0xff] %vm2742, %v2732
      %2812 = vst.msk [vmem:[#allocation2 + $0xf0] sm:$0xff] %vm2742, %v2733
      %2813 = vst.msk [vmem:[#allocation2 + $0xf8] sm:$0xff] %vm2742, %v2734
      %2814 = vst.msk [vmem:[#allocation2 + $0x100] sm:$0xff] %vm2742, %v2735
      %2815 = vst.msk [vmem:[#allocation2 + $0x108] sm:$0xff] %vm2742, %v2736
      %2816 = vst.msk [vmem:[#allocation2 + $0x110] sm:$0xff] %vm2742, %v2737
      %2817 = vst.msk [vmem:[#allocation2 + $0x118] sm:$0xff] %vm2742, %v2738
      %2818 = vst.msk [vmem:[#allocation2 + $0x120] sm:$0xff] %vm2742, %v2739
      %2819 = vst.msk [vmem:[#allocation2 + $0x128] sm:$0xff] %vm2742, %v2740
      %2820 = vst.msk [vmem:[#allocation2 + $0x130] sm:$0xff] %vm2742, %v2741
      %v2821 = vld [vmem:[#allocation2 + $0x5] sm:$0xff]
      %v2822 = vld [vmem:[#allocation2 + $0xd] sm:$0xff]
      %v2823 = vld [vmem:[#allocation2 + $0x15] sm:$0xff]
      %v2824 = vld [vmem:[#allocation2 + $0x1d] sm:$0xff]
      %v2825 = vld [vmem:[#allocation2 + $0x25] sm:$0xff]
      %v2826 = vld [vmem:[#allocation2 + $0x2d] sm:$0xff]
      %v2827 = vld [vmem:[#allocation2 + $0x35] sm:$0xff]
      %v2828 = vld [vmem:[#allocation2 + $0x3d] sm:$0xff]
      %v2829 = vld [vmem:[#allocation2 + $0x45] sm:$0xff]
      %v2830 = vld [vmem:[#allocation2 + $0x4d] sm:$0xff]
      %v2831 = vld [vmem:[#allocation2 + $0x55] sm:$0xff]
      %v2832 = vld [vmem:[#allocation2 + $0x5d] sm:$0xff]
      %v2833 = vld [vmem:[#allocation2 + $0x65] sm:$0xff]
      %v2834 = vld [vmem:[#allocation2 + $0x6d] sm:$0xff]
      %v2835 = vld [vmem:[#allocation2 + $0x75] sm:$0xff]
      %v2836 = vld [vmem:[#allocation2 + $0x7d] sm:$0xff]
      %v2837 = vld [vmem:[#allocation2 + $0x85] sm:$0xff]
      %v2838 = vld [vmem:[#allocation2 + $0x8d] sm:$0xff]
      %v2839 = vld [vmem:[#allocation2 + $0x95] sm:$0xff]
      %v2840 = vld [vmem:[#allocation2 + $0x9d] sm:$0xff]
      %v2841 = vld [vmem:[#allocation2 + $0xa5] sm:$0xff]
      %v2842 = vld [vmem:[#allocation2 + $0xad] sm:$0xff]
      %v2843 = vld [vmem:[#allocation2 + $0xb5] sm:$0xff]
      %v2844 = vld [vmem:[#allocation2 + $0xbd] sm:$0xff]
      %v2845 = vld [vmem:[#allocation2 + $0xc5] sm:$0xff]
      %v2846 = vld [vmem:[#allocation2 + $0xcd] sm:$0xff]
      %v2847 = vld [vmem:[#allocation2 + $0xd5] sm:$0xff]
      %v2848 = vld [vmem:[#allocation2 + $0xdd] sm:$0xff]
      %v2849 = vld [vmem:[#allocation2 + $0xe5] sm:$0xff]
      %v2850 = vld [vmem:[#allocation2 + $0xed] sm:$0xff]
      %v2851 = vld [vmem:[#allocation2 + $0xf5] sm:$0xff]
      %v2852 = vld [vmem:[#allocation2 + $0xfd] sm:$0xff]
      %v2853 = vld [vmem:[#allocation2 + $0x105] sm:$0xff]
      %v2854 = vld [vmem:[#allocation2 + $0x10d] sm:$0xff]
      %v2855 = vld [vmem:[#allocation2 + $0x115] sm:$0xff]
      %v2856 = vld [vmem:[#allocation2 + $0x11d] sm:$0xff]
      %v2857 = vpack.c.bf16 %v2822, %v2821
      %v2858 = vpack.c.bf16 %v2824, %v2823
      %v2859 = vpack.c.bf16 %v2826, %v2825
      %v2860 = vpack.c.bf16 %v2828, %v2827
      %v2861 = vpack.c.bf16 %v2830, %v2829
      %v2862 = vpack.c.bf16 %v2832, %v2831
      %v2863 = vpack.c.bf16 %v2834, %v2833
      %v2864 = vpack.c.bf16 %v2836, %v2835
      %v2865 = vpack.c.bf16 %v2838, %v2837
      %v2866 = vpack.c.bf16 %v2840, %v2839
      %v2867 = vpack.c.bf16 %v2842, %v2841
      %v2868 = vpack.c.bf16 %v2844, %v2843
      %v2869 = vpack.c.bf16 %v2846, %v2845
      %v2870 = vpack.c.bf16 %v2848, %v2847
      %v2871 = vpack.c.bf16 %v2850, %v2849
      %v2872 = vpack.c.bf16 %v2852, %v2851
      %v2873 = vpack.c.bf16 %v2854, %v2853
      %v2874 = vpack.c.bf16 %v2856, %v2855
      %v2875 = vld [vmem:[%s3] sm:$0xf]
      %v2876 = vld [vmem:[%s3 + $0x4] sm:$0xf]
      %v2877 = vld [vmem:[%s3 + $0x8] sm:$0xf]
      %v2878 = vld [vmem:[%s3 + $0xc] sm:$0xf]
      %v2879 = vld [vmem:[#allocation2 + $0x6] sm:$0xff]
      %v2880 = vld [vmem:[#allocation2 + $0xe] sm:$0xff]
      %v2881 = vld [vmem:[#allocation2 + $0x16] sm:$0xff]
      %v2882 = vld [vmem:[#allocation2 + $0x1e] sm:$0xff]
      %v2883 = vld [vmem:[#allocation2 + $0x26] sm:$0xff]
      %v2884 = vld [vmem:[#allocation2 + $0x2e] sm:$0xff]
      %v2885 = vld [vmem:[#allocation2 + $0x36] sm:$0xff]
      %v2886 = vld [vmem:[#allocation2 + $0x3e] sm:$0xff]
      %v2887 = vld [vmem:[#allocation2 + $0x46] sm:$0xff]
      %v2888 = vld [vmem:[#allocation2 + $0x4e] sm:$0xff]
      %v2889 = vld [vmem:[#allocation2 + $0x56] sm:$0xff]
      %v2890 = vld [vmem:[#allocation2 + $0x5e] sm:$0xff]
      %v2891 = vld [vmem:[#allocation2 + $0x66] sm:$0xff]
      %v2892 = vld [vmem:[#allocation2 + $0x6e] sm:$0xff]
      %v2893 = vld [vmem:[#allocation2 + $0x76] sm:$0xff]
      %v2894 = vld [vmem:[#allocation2 + $0x7e] sm:$0xff]
      %v2895 = vld [vmem:[#allocation2 + $0x86] sm:$0xff]
      %v2896 = vld [vmem:[#allocation2 + $0x8e] sm:$0xff]
      %v2897 = vld [vmem:[#allocation2 + $0x96] sm:$0xff]
      %v2898 = vld [vmem:[#allocation2 + $0x9e] sm:$0xff]
      %v2899 = vld [vmem:[#allocation2 + $0xa6] sm:$0xff]
      %v2900 = vld [vmem:[#allocation2 + $0xae] sm:$0xff]
      %v2901 = vld [vmem:[#allocation2 + $0xb6] sm:$0xff]
      %v2902 = vld [vmem:[#allocation2 + $0xbe] sm:$0xff]
      %v2903 = vld [vmem:[#allocation2 + $0xc6] sm:$0xff]
      %v2904 = vld [vmem:[#allocation2 + $0xce] sm:$0xff]
      %v2905 = vld [vmem:[#allocation2 + $0xd6] sm:$0xff]
      %v2906 = vld [vmem:[#allocation2 + $0xde] sm:$0xff]
      %v2907 = vld [vmem:[#allocation2 + $0xe6] sm:$0xff]
      %v2908 = vld [vmem:[#allocation2 + $0xee] sm:$0xff]
      %v2909 = vld [vmem:[#allocation2 + $0xf6] sm:$0xff]
      %v2910 = vld [vmem:[#allocation2 + $0xfe] sm:$0xff]
      %v2911 = vld [vmem:[#allocation2 + $0x106] sm:$0xff]
      %v2912 = vld [vmem:[#allocation2 + $0x10e] sm:$0xff]
      %v2913 = vld [vmem:[#allocation2 + $0x116] sm:$0xff]
      %v2914 = vld [vmem:[#allocation2 + $0x11e] sm:$0xff]
      %v2915 = vpack.c.bf16 %v2880, %v2879
      %v2916 = vpack.c.bf16 %v2882, %v2881
      %v2917 = vpack.c.bf16 %v2884, %v2883
      %v2918 = vpack.c.bf16 %v2886, %v2885
      %v2919 = vpack.c.bf16 %v2888, %v2887
      %v2920 = vpack.c.bf16 %v2890, %v2889
      %v2921 = vpack.c.bf16 %v2892, %v2891
      %v2922 = vpack.c.bf16 %v2894, %v2893
      %v2923 = vpack.c.bf16 %v2896, %v2895
      %v2924 = vpack.c.bf16 %v2898, %v2897
      %v2925 = vpack.c.bf16 %v2900, %v2899
      %v2926 = vpack.c.bf16 %v2902, %v2901
      %v2927 = vpack.c.bf16 %v2904, %v2903
      %v2928 = vpack.c.bf16 %v2906, %v2905
      %v2929 = vpack.c.bf16 %v2908, %v2907
      %v2930 = vpack.c.bf16 %v2910, %v2909
      %v2931 = vpack.c.bf16 %v2912, %v2911
      %v2932 = vpack.c.bf16 %v2914, %v2913
      %s2933 = scalar_lea.vmem %s3, 16
      %v2934 = vld [vmem:[%s2933] sm:$0xf]
      %v2935 = vld [vmem:[%s2933 + $0x4] sm:$0xf]
      %v2936 = vld [vmem:[%s2933 + $0x8] sm:$0xf]
      %v2937 = vld [vmem:[%s2933 + $0xc] sm:$0xf]
      %v2942 = vunpack.c.l.b16 %v2934
      %v2943 = vunpack.c.l.b16 %v2935
      %v2944 = vunpack.c.l.b16 %v2936
      %v2945 = vunpack.c.l.b16 %v2937
      %v2946 = vpack.c.b16 %v2943, %v2942
      %v2947 = vpack.c.b16 %v2945, %v2944
      %v2951 = vsel %vm2742, %v2915, 0
      %v2954 = vsel %vm2742, %v2916, 0
      %v2957 = vsel %vm2742, %v2917, 0
      %v2960 = vsel %vm2742, %v2918, 0
      %v2963 = vsel %vm2742, %v2919, 0
      %v2966 = vsel %vm2742, %v2920, 0
      %v2969 = vsel %vm2742, %v2921, 0
      %v2972 = vsel %vm2742, %v2922, 0
      %v2975 = vsel %vm2742, %v2923, 0
      %v2978 = vsel %vm2742, %v2924, 0
      %v2981 = vsel %vm2742, %v2925, 0
      %v2984 = vsel %vm2742, %v2926, 0
      %v2987 = vsel %vm2742, %v2927, 0
      %v2990 = vsel %vm2742, %v2928, 0
      %v2993 = vsel %vm2742, %v2929, 0
      %v2996 = vsel %vm2742, %v2930, 0
      %v2999 = vsel %vm2742, %v2931, 0
      %v3002 = vsel %vm2742, %v2932, 0
      %3004 = vmatpush.bf16.msra.mxu0 0
      %3005 = vmatpush.bf16.msra.mxu0 0
      %3006 = vmatpush.bf16.msra.mxu0 0
      %3007 = vmatpush.bf16.msra.mxu0 0
      %3008 = vmatpush.bf16.msra.mxu0 0
      %3009 = vmatpush.bf16.msra.mxu0 0
      %3010 = vmatpush.bf16.msra.mxu0 %v2947
      %3011 = vmatpush.bf16.msra.mxu0 %v2946
      %3012 = vmatmul.bf16.gmra.mxu0 %v2951
      %v3013 = vpop.f32.mrf.mxu0
      %v3014 = vadd.f32 0.0, %v3013
      %v3015 = vpop.f32.mrf.mxu0
      %v3016 = vadd.f32 0.0, %v3015
      %3017 = vmatmul.bf16.gmra.mxu0 %v2954
      %v3018 = vpop.f32.mrf.mxu0
      %v3019 = vadd.f32 0.0, %v3018
      %v3020 = vpop.f32.mrf.mxu0
      %v3021 = vadd.f32 0.0, %v3020
      %3022 = vmatmul.bf16.gmra.mxu0 %v2957
      %v3023 = vpop.f32.mrf.mxu0
      %v3024 = vadd.f32 0.0, %v3023
      %v3025 = vpop.f32.mrf.mxu0
      %v3026 = vadd.f32 0.0, %v3025
      %3027 = vmatmul.bf16.gmra.mxu0 %v2960
      %v3028 = vpop.f32.mrf.mxu0
      %v3029 = vadd.f32 0.0, %v3028
      %v3030 = vpop.f32.mrf.mxu0
      %v3031 = vadd.f32 0.0, %v3030
      %3032 = vmatmul.bf16.gmra.mxu0 %v2963
      %v3033 = vpop.f32.mrf.mxu0
      %v3034 = vadd.f32 0.0, %v3033
      %v3035 = vpop.f32.mrf.mxu0
      %v3036 = vadd.f32 0.0, %v3035
      %3037 = vmatmul.bf16.gmra.mxu0 %v2966
      %v3038 = vpop.f32.mrf.mxu0
      %v3039 = vadd.f32 0.0, %v3038
      %v3040 = vpop.f32.mrf.mxu0
      %v3041 = vadd.f32 0.0, %v3040
      %3042 = vmatmul.bf16.gmra.mxu0 %v2969
      %v3043 = vpop.f32.mrf.mxu0
      %v3044 = vadd.f32 0.0, %v3043
      %v3045 = vpop.f32.mrf.mxu0
      %v3046 = vadd.f32 0.0, %v3045
      %3047 = vmatmul.bf16.gmra.mxu0 %v2972
      %v3048 = vpop.f32.mrf.mxu0
      %v3049 = vadd.f32 0.0, %v3048
      %v3050 = vpop.f32.mrf.mxu0
      %v3051 = vadd.f32 0.0, %v3050
      %3052 = vmatmul.bf16.gmra.mxu0 %v2975
      %v3053 = vpop.f32.mrf.mxu0
      %v3054 = vadd.f32 0.0, %v3053
      %v3055 = vpop.f32.mrf.mxu0
      %v3056 = vadd.f32 0.0, %v3055
      %3057 = vmatmul.bf16.gmra.mxu0 %v2978
      %v3058 = vpop.f32.mrf.mxu0
      %v3059 = vadd.f32 0.0, %v3058
      %v3060 = vpop.f32.mrf.mxu0
      %v3061 = vadd.f32 0.0, %v3060
      %3062 = vmatmul.bf16.gmra.mxu0 %v2981
      %v3063 = vpop.f32.mrf.mxu0
      %v3064 = vadd.f32 0.0, %v3063
      %v3065 = vpop.f32.mrf.mxu0
      %v3066 = vadd.f32 0.0, %v3065
      %3067 = vmatmul.bf16.gmra.mxu0 %v2984
      %v3068 = vpop.f32.mrf.mxu0
      %v3069 = vadd.f32 0.0, %v3068
      %v3070 = vpop.f32.mrf.mxu0
      %v3071 = vadd.f32 0.0, %v3070
      %3072 = vmatmul.bf16.gmra.mxu0 %v2987
      %v3073 = vpop.f32.mrf.mxu0
      %v3074 = vadd.f32 0.0, %v3073
      %v3075 = vpop.f32.mrf.mxu0
      %v3076 = vadd.f32 0.0, %v3075
      %3077 = vmatmul.bf16.gmra.mxu0 %v2990
      %v3078 = vpop.f32.mrf.mxu0
      %v3079 = vadd.f32 0.0, %v3078
      %v3080 = vpop.f32.mrf.mxu0
      %v3081 = vadd.f32 0.0, %v3080
      %3082 = vmatmul.bf16.gmra.mxu0 %v2993
      %v3083 = vpop.f32.mrf.mxu0
      %v3084 = vadd.f32 0.0, %v3083
      %v3085 = vpop.f32.mrf.mxu0
      %v3086 = vadd.f32 0.0, %v3085
      %3087 = vmatmul.bf16.gmra.mxu0 %v2996
      %v3088 = vpop.f32.mrf.mxu0
      %v3089 = vadd.f32 0.0, %v3088
      %v3090 = vpop.f32.mrf.mxu0
      %v3091 = vadd.f32 0.0, %v3090
      %3092 = vmatmul.bf16.gmra.mxu0 %v2999
      %v3093 = vpop.f32.mrf.mxu0
      %v3094 = vadd.f32 0.0, %v3093
      %v3095 = vpop.f32.mrf.mxu0
      %v3096 = vadd.f32 0.0, %v3095
      %3097 = vmatmul.bf16.gmra.mxu0 %v3002
      %v3098 = vpop.f32.mrf.mxu0
      %v3099 = vadd.f32 0.0, %v3098
      %v3100 = vpop.f32.mrf.mxu0
      %v3101 = vadd.f32 0.0, %v3100
      %3102 = vdwg.mxu0
      %v3107 = vunpack.c.l.b16 %v2875
      %v3108 = vunpack.c.l.b16 %v2876
      %v3109 = vunpack.c.l.b16 %v2877
      %v3110 = vunpack.c.l.b16 %v2878
      %v3111 = vpack.c.b16 %v3108, %v3107
      %v3112 = vpack.c.b16 %v3110, %v3109
      %v3116 = vsel %vm2742, %v2857, 0
      %v3119 = vsel %vm2742, %v2858, 0
      %v3122 = vsel %vm2742, %v2859, 0
      %v3125 = vsel %vm2742, %v2860, 0
      %v3128 = vsel %vm2742, %v2861, 0
      %v3131 = vsel %vm2742, %v2862, 0
      %v3134 = vsel %vm2742, %v2863, 0
      %v3137 = vsel %vm2742, %v2864, 0
      %v3140 = vsel %vm2742, %v2865, 0
      %v3143 = vsel %vm2742, %v2866, 0
      %v3146 = vsel %vm2742, %v2867, 0
      %v3149 = vsel %vm2742, %v2868, 0
      %v3152 = vsel %vm2742, %v2869, 0
      %v3155 = vsel %vm2742, %v2870, 0
      %v3158 = vsel %vm2742, %v2871, 0
      %v3161 = vsel %vm2742, %v2872, 0
      %v3164 = vsel %vm2742, %v2873, 0
      %v3167 = vsel %vm2742, %v2874, 0
      %3169 = vmatpush.bf16.msra.mxu0 0
      %3170 = vmatpush.bf16.msra.mxu0 0
      %3171 = vmatpush.bf16.msra.mxu0 0
      %3172 = vmatpush.bf16.msra.mxu0 0
      %3173 = vmatpush.bf16.msra.mxu0 0
      %3174 = vmatpush.bf16.msra.mxu0 0
      %3175 = vmatpush.bf16.msra.mxu0 %v3112
      %3176 = vmatpush.bf16.msra.mxu0 %v3111
      %3177 = vmatmul.bf16.gmra.mxu0 %v3116
      %v3178 = vpop.f32.mrf.mxu0
      %v3179 = vadd.f32 %v3014, %v3178
      %v3180 = vpop.f32.mrf.mxu0
      %v3181 = vadd.f32 %v3016, %v3180
      %3182 = vmatmul.bf16.gmra.mxu0 %v3119
      %v3183 = vpop.f32.mrf.mxu0
      %v3184 = vadd.f32 %v3019, %v3183
      %v3185 = vpop.f32.mrf.mxu0
      %v3186 = vadd.f32 %v3021, %v3185
      %3187 = vmatmul.bf16.gmra.mxu0 %v3122
      %v3188 = vpop.f32.mrf.mxu0
      %v3189 = vadd.f32 %v3024, %v3188
      %v3190 = vpop.f32.mrf.mxu0
      %v3191 = vadd.f32 %v3026, %v3190
      %3192 = vmatmul.bf16.gmra.mxu0 %v3125
      %v3193 = vpop.f32.mrf.mxu0
      %v3194 = vadd.f32 %v3029, %v3193
      %v3195 = vpop.f32.mrf.mxu0
      %v3196 = vadd.f32 %v3031, %v3195
      %3197 = vmatmul.bf16.gmra.mxu0 %v3128
      %v3198 = vpop.f32.mrf.mxu0
      %v3199 = vadd.f32 %v3034, %v3198
      %v3200 = vpop.f32.mrf.mxu0
      %v3201 = vadd.f32 %v3036, %v3200
      %3202 = vmatmul.bf16.gmra.mxu0 %v3131
      %v3203 = vpop.f32.mrf.mxu0
      %v3204 = vadd.f32 %v3039, %v3203
      %v3205 = vpop.f32.mrf.mxu0
      %v3206 = vadd.f32 %v3041, %v3205
      %3207 = vmatmul.bf16.gmra.mxu0 %v3134
      %v3208 = vpop.f32.mrf.mxu0
      %v3209 = vadd.f32 %v3044, %v3208
      %v3210 = vpop.f32.mrf.mxu0
      %v3211 = vadd.f32 %v3046, %v3210
      %3212 = vmatmul.bf16.gmra.mxu0 %v3137
      %v3213 = vpop.f32.mrf.mxu0
      %v3214 = vadd.f32 %v3049, %v3213
      %v3215 = vpop.f32.mrf.mxu0
      %v3216 = vadd.f32 %v3051, %v3215
      %3217 = vmatmul.bf16.gmra.mxu0 %v3140
      %v3218 = vpop.f32.mrf.mxu0
      %v3219 = vadd.f32 %v3054, %v3218
      %v3220 = vpop.f32.mrf.mxu0
      %v3221 = vadd.f32 %v3056, %v3220
      %3222 = vmatmul.bf16.gmra.mxu0 %v3143
      %v3223 = vpop.f32.mrf.mxu0
      %v3224 = vadd.f32 %v3059, %v3223
      %v3225 = vpop.f32.mrf.mxu0
      %v3226 = vadd.f32 %v3061, %v3225
      %3227 = vmatmul.bf16.gmra.mxu0 %v3146
      %v3228 = vpop.f32.mrf.mxu0
      %v3229 = vadd.f32 %v3064, %v3228
      %v3230 = vpop.f32.mrf.mxu0
      %v3231 = vadd.f32 %v3066, %v3230
      %3232 = vmatmul.bf16.gmra.mxu0 %v3149
      %v3233 = vpop.f32.mrf.mxu0
      %v3234 = vadd.f32 %v3069, %v3233
      %v3235 = vpop.f32.mrf.mxu0
      %v3236 = vadd.f32 %v3071, %v3235
      %3237 = vmatmul.bf16.gmra.mxu0 %v3152
      %v3238 = vpop.f32.mrf.mxu0
      %v3239 = vadd.f32 %v3074, %v3238
      %v3240 = vpop.f32.mrf.mxu0
      %v3241 = vadd.f32 %v3076, %v3240
      %3242 = vmatmul.bf16.gmra.mxu0 %v3155
      %v3243 = vpop.f32.mrf.mxu0
      %v3244 = vadd.f32 %v3079, %v3243
      %v3245 = vpop.f32.mrf.mxu0
      %v3246 = vadd.f32 %v3081, %v3245
      %3247 = vmatmul.bf16.gmra.mxu0 %v3158
      %v3248 = vpop.f32.mrf.mxu0
      %v3249 = vadd.f32 %v3084, %v3248
      %v3250 = vpop.f32.mrf.mxu0
      %v3251 = vadd.f32 %v3086, %v3250
      %3252 = vmatmul.bf16.gmra.mxu0 %v3161
      %v3253 = vpop.f32.mrf.mxu0
      %v3254 = vadd.f32 %v3089, %v3253
      %v3255 = vpop.f32.mrf.mxu0
      %v3256 = vadd.f32 %v3091, %v3255
      %3257 = vmatmul.bf16.gmra.mxu0 %v3164
      %v3258 = vpop.f32.mrf.mxu0
      %v3259 = vadd.f32 %v3094, %v3258
      %v3260 = vpop.f32.mrf.mxu0
      %v3261 = vadd.f32 %v3096, %v3260
      %3262 = vmatmul.bf16.gmra.mxu0 %v3167
      %v3263 = vpop.f32.mrf.mxu0
      %v3264 = vadd.f32 %v3099, %v3263
      %v3265 = vpop.f32.mrf.mxu0
      %v3266 = vadd.f32 %v3101, %v3265
      %3267 = vdwg.mxu0
      %v3268 = vld [vmem:[#allocation2 + $0x7] sm:$0xff]
      %v3269 = vld [vmem:[#allocation2 + $0xf] sm:$0xff]
      %v3270 = vld [vmem:[#allocation2 + $0x17] sm:$0xff]
      %v3271 = vld [vmem:[#allocation2 + $0x1f] sm:$0xff]
      %v3272 = vld [vmem:[#allocation2 + $0x27] sm:$0xff]
      %v3273 = vld [vmem:[#allocation2 + $0x2f] sm:$0xff]
      %v3274 = vld [vmem:[#allocation2 + $0x37] sm:$0xff]
      %v3275 = vld [vmem:[#allocation2 + $0x3f] sm:$0xff]
      %v3276 = vld [vmem:[#allocation2 + $0x47] sm:$0xff]
      %v3277 = vld [vmem:[#allocation2 + $0x4f] sm:$0xff]
      %v3278 = vld [vmem:[#allocation2 + $0x57] sm:$0xff]
      %v3279 = vld [vmem:[#allocation2 + $0x5f] sm:$0xff]
      %v3280 = vld [vmem:[#allocation2 + $0x67] sm:$0xff]
      %v3281 = vld [vmem:[#allocation2 + $0x6f] sm:$0xff]
      %v3282 = vld [vmem:[#allocation2 + $0x77] sm:$0xff]
      %v3283 = vld [vmem:[#allocation2 + $0x7f] sm:$0xff]
      %v3284 = vld [vmem:[#allocation2 + $0x87] sm:$0xff]
      %v3285 = vld [vmem:[#allocation2 + $0x8f] sm:$0xff]
      %v3286 = vld [vmem:[#allocation2 + $0x97] sm:$0xff]
      %v3287 = vld [vmem:[#allocation2 + $0x9f] sm:$0xff]
      %v3288 = vld [vmem:[#allocation2 + $0xa7] sm:$0xff]
      %v3289 = vld [vmem:[#allocation2 + $0xaf] sm:$0xff]
      %v3290 = vld [vmem:[#allocation2 + $0xb7] sm:$0xff]
      %v3291 = vld [vmem:[#allocation2 + $0xbf] sm:$0xff]
      %v3292 = vld [vmem:[#allocation2 + $0xc7] sm:$0xff]
      %v3293 = vld [vmem:[#allocation2 + $0xcf] sm:$0xff]
      %v3294 = vld [vmem:[#allocation2 + $0xd7] sm:$0xff]
      %v3295 = vld [vmem:[#allocation2 + $0xdf] sm:$0xff]
      %v3296 = vld [vmem:[#allocation2 + $0xe7] sm:$0xff]
      %v3297 = vld [vmem:[#allocation2 + $0xef] sm:$0xff]
      %v3298 = vld [vmem:[#allocation2 + $0xf7] sm:$0xff]
      %v3299 = vld [vmem:[#allocation2 + $0xff] sm:$0xff]
      %v3300 = vld [vmem:[#allocation2 + $0x107] sm:$0xff]
      %v3301 = vld [vmem:[#allocation2 + $0x10f] sm:$0xff]
      %v3302 = vld [vmem:[#allocation2 + $0x117] sm:$0xff]
      %v3303 = vld [vmem:[#allocation2 + $0x11f] sm:$0xff]
      %v3304 = vpack.c.bf16 %v3269, %v3268
      %v3305 = vpack.c.bf16 %v3271, %v3270
      %v3306 = vpack.c.bf16 %v3273, %v3272
      %v3307 = vpack.c.bf16 %v3275, %v3274
      %v3308 = vpack.c.bf16 %v3277, %v3276
      %v3309 = vpack.c.bf16 %v3279, %v3278
      %v3310 = vpack.c.bf16 %v3281, %v3280
      %v3311 = vpack.c.bf16 %v3283, %v3282
      %v3312 = vpack.c.bf16 %v3285, %v3284
      %v3313 = vpack.c.bf16 %v3287, %v3286
      %v3314 = vpack.c.bf16 %v3289, %v3288
      %v3315 = vpack.c.bf16 %v3291, %v3290
      %v3316 = vpack.c.bf16 %v3293, %v3292
      %v3317 = vpack.c.bf16 %v3295, %v3294
      %v3318 = vpack.c.bf16 %v3297, %v3296
      %v3319 = vpack.c.bf16 %v3299, %v3298
      %v3320 = vpack.c.bf16 %v3301, %v3300
      %v3321 = vpack.c.bf16 %v3303, %v3302
      %s3322 = scalar_lea.vmem %s3, 32
      %v3323 = vld [vmem:[%s3322] sm:$0xf]
      %v3324 = vld [vmem:[%s3322 + $0x4] sm:$0xf]
      %v3325 = vld [vmem:[%s3322 + $0x8] sm:$0xf]
      %v3326 = vld [vmem:[%s3322 + $0xc] sm:$0xf]
      %v3331 = vunpack.c.l.b16 %v3323
      %v3332 = vunpack.c.l.b16 %v3324
      %v3333 = vunpack.c.l.b16 %v3325
      %v3334 = vunpack.c.l.b16 %v3326
      %v3335 = vpack.c.b16 %v3332, %v3331
      %v3336 = vpack.c.b16 %v3334, %v3333
      %v3340 = vsel %vm2742, %v3304, 0
      %v3343 = vsel %vm2742, %v3305, 0
      %v3346 = vsel %vm2742, %v3306, 0
      %v3349 = vsel %vm2742, %v3307, 0
      %v3352 = vsel %vm2742, %v3308, 0
      %v3355 = vsel %vm2742, %v3309, 0
      %v3358 = vsel %vm2742, %v3310, 0
      %v3361 = vsel %vm2742, %v3311, 0
      %v3364 = vsel %vm2742, %v3312, 0
      %v3367 = vsel %vm2742, %v3313, 0
      %v3370 = vsel %vm2742, %v3314, 0
      %v3373 = vsel %vm2742, %v3315, 0
      %v3376 = vsel %vm2742, %v3316, 0
      %v3379 = vsel %vm2742, %v3317, 0
      %v3382 = vsel %vm2742, %v3318, 0
      %v3385 = vsel %vm2742, %v3319, 0
      %v3388 = vsel %vm2742, %v3320, 0
      %v3391 = vsel %vm2742, %v3321, 0
      %3393 = vmatpush.bf16.msra.mxu0 0
      %3394 = vmatpush.bf16.msra.mxu0 0
      %3395 = vmatpush.bf16.msra.mxu0 0
      %3396 = vmatpush.bf16.msra.mxu0 0
      %3397 = vmatpush.bf16.msra.mxu0 0
      %3398 = vmatpush.bf16.msra.mxu0 0
      %3399 = vmatpush.bf16.msra.mxu0 %v3336
      %3400 = vmatpush.bf16.msra.mxu0 %v3335
      %3401 = vmatmul.bf16.gmra.mxu0 %v3340
      %v3402 = vpop.f32.mrf.mxu0
      %v3403 = vadd.f32 0.0, %v3402
      %v3404 = vpop.f32.mrf.mxu0
      %v3405 = vadd.f32 0.0, %v3404
      %3406 = vmatmul.bf16.gmra.mxu0 %v3343
      %v3407 = vpop.f32.mrf.mxu0
      %v3408 = vadd.f32 0.0, %v3407
      %v3409 = vpop.f32.mrf.mxu0
      %v3410 = vadd.f32 0.0, %v3409
      %3411 = vmatmul.bf16.gmra.mxu0 %v3346
      %v3412 = vpop.f32.mrf.mxu0
      %v3413 = vadd.f32 0.0, %v3412
      %v3414 = vpop.f32.mrf.mxu0
      %v3415 = vadd.f32 0.0, %v3414
      %3416 = vmatmul.bf16.gmra.mxu0 %v3349
      %v3417 = vpop.f32.mrf.mxu0
      %v3418 = vadd.f32 0.0, %v3417
      %v3419 = vpop.f32.mrf.mxu0
      %v3420 = vadd.f32 0.0, %v3419
      %3421 = vmatmul.bf16.gmra.mxu0 %v3352
      %v3422 = vpop.f32.mrf.mxu0
      %v3423 = vadd.f32 0.0, %v3422
      %v3424 = vpop.f32.mrf.mxu0
      %v3425 = vadd.f32 0.0, %v3424
      %3426 = vmatmul.bf16.gmra.mxu0 %v3355
      %v3427 = vpop.f32.mrf.mxu0
      %v3428 = vadd.f32 0.0, %v3427
      %v3429 = vpop.f32.mrf.mxu0
      %v3430 = vadd.f32 0.0, %v3429
      %3431 = vmatmul.bf16.gmra.mxu0 %v3358
      %v3432 = vpop.f32.mrf.mxu0
      %v3433 = vadd.f32 0.0, %v3432
      %v3434 = vpop.f32.mrf.mxu0
      %v3435 = vadd.f32 0.0, %v3434
      %3436 = vmatmul.bf16.gmra.mxu0 %v3361
      %v3437 = vpop.f32.mrf.mxu0
      %v3438 = vadd.f32 0.0, %v3437
      %v3439 = vpop.f32.mrf.mxu0
      %v3440 = vadd.f32 0.0, %v3439
      %3441 = vmatmul.bf16.gmra.mxu0 %v3364
      %v3442 = vpop.f32.mrf.mxu0
      %v3443 = vadd.f32 0.0, %v3442
      %v3444 = vpop.f32.mrf.mxu0
      %v3445 = vadd.f32 0.0, %v3444
      %3446 = vmatmul.bf16.gmra.mxu0 %v3367
      %v3447 = vpop.f32.mrf.mxu0
      %v3448 = vadd.f32 0.0, %v3447
      %v3449 = vpop.f32.mrf.mxu0
      %v3450 = vadd.f32 0.0, %v3449
      %3451 = vmatmul.bf16.gmra.mxu0 %v3370
      %v3452 = vpop.f32.mrf.mxu0
      %v3453 = vadd.f32 0.0, %v3452
      %v3454 = vpop.f32.mrf.mxu0
      %v3455 = vadd.f32 0.0, %v3454
      %3456 = vmatmul.bf16.gmra.mxu0 %v3373
      %v3457 = vpop.f32.mrf.mxu0
      %v3458 = vadd.f32 0.0, %v3457
      %v3459 = vpop.f32.mrf.mxu0
      %v3460 = vadd.f32 0.0, %v3459
      %3461 = vmatmul.bf16.gmra.mxu0 %v3376
      %v3462 = vpop.f32.mrf.mxu0
      %v3463 = vadd.f32 0.0, %v3462
      %v3464 = vpop.f32.mrf.mxu0
      %v3465 = vadd.f32 0.0, %v3464
      %3466 = vmatmul.bf16.gmra.mxu0 %v3379
      %v3467 = vpop.f32.mrf.mxu0
      %v3468 = vadd.f32 0.0, %v3467
      %v3469 = vpop.f32.mrf.mxu0
      %v3470 = vadd.f32 0.0, %v3469
      %3471 = vmatmul.bf16.gmra.mxu0 %v3382
      %v3472 = vpop.f32.mrf.mxu0
      %v3473 = vadd.f32 0.0, %v3472
      %v3474 = vpop.f32.mrf.mxu0
      %v3475 = vadd.f32 0.0, %v3474
      %3476 = vmatmul.bf16.gmra.mxu0 %v3385
      %v3477 = vpop.f32.mrf.mxu0
      %v3478 = vadd.f32 0.0, %v3477
      %v3479 = vpop.f32.mrf.mxu0
      %v3480 = vadd.f32 0.0, %v3479
      %3481 = vmatmul.bf16.gmra.mxu0 %v3388
      %v3482 = vpop.f32.mrf.mxu0
      %v3483 = vadd.f32 0.0, %v3482
      %v3484 = vpop.f32.mrf.mxu0
      %v3485 = vadd.f32 0.0, %v3484
      %3486 = vmatmul.bf16.gmra.mxu0 %v3391
      %v3487 = vpop.f32.mrf.mxu0
      %v3488 = vadd.f32 0.0, %v3487
      %v3489 = vpop.f32.mrf.mxu0
      %v3490 = vadd.f32 0.0, %v3489
      %3491 = vdwg.mxu0
      %v3492 = vadd.f32 %v3179, %v3403
      %v3493 = vadd.f32 %v3181, %v3405
      %v3494 = vadd.f32 %v3184, %v3408
      %v3495 = vadd.f32 %v3186, %v3410
      %v3496 = vadd.f32 %v3189, %v3413
      %v3497 = vadd.f32 %v3191, %v3415
      %v3498 = vadd.f32 %v3194, %v3418
      %v3499 = vadd.f32 %v3196, %v3420
      %v3500 = vadd.f32 %v3199, %v3423
      %v3501 = vadd.f32 %v3201, %v3425
      %v3502 = vadd.f32 %v3204, %v3428
      %v3503 = vadd.f32 %v3206, %v3430
      %v3504 = vadd.f32 %v3209, %v3433
      %v3505 = vadd.f32 %v3211, %v3435
      %v3506 = vadd.f32 %v3214, %v3438
      %v3507 = vadd.f32 %v3216, %v3440
      %v3508 = vadd.f32 %v3219, %v3443
      %v3509 = vadd.f32 %v3221, %v3445
      %v3510 = vadd.f32 %v3224, %v3448
      %v3511 = vadd.f32 %v3226, %v3450
      %v3512 = vadd.f32 %v3229, %v3453
      %v3513 = vadd.f32 %v3231, %v3455
      %v3514 = vadd.f32 %v3234, %v3458
      %v3515 = vadd.f32 %v3236, %v3460
      %v3516 = vadd.f32 %v3239, %v3463
      %v3517 = vadd.f32 %v3241, %v3465
      %v3518 = vadd.f32 %v3244, %v3468
      %v3519 = vadd.f32 %v3246, %v3470
      %v3520 = vadd.f32 %v3249, %v3473
      %v3521 = vadd.f32 %v3251, %v3475
      %v3522 = vadd.f32 %v3254, %v3478
      %v3523 = vadd.f32 %v3256, %v3480
      %v3524 = vadd.f32 %v3259, %v3483
      %v3525 = vadd.f32 %v3261, %v3485
      %v3526 = vadd.f32 %v3264, %v3488
      %v3527 = vadd.f32 %v3266, %v3490
      %v3528 = vld [vmem:[#allocation2 + $0x17] sm:$0xff]
      %v3529 = vld [vmem:[#allocation2 + $0x1f] sm:$0xff]
      %v3530 = vld [vmem:[#allocation2 + $0x27] sm:$0xff]
      %v3531 = vld [vmem:[#allocation2 + $0x2f] sm:$0xff]
      %v3532 = vld [vmem:[#allocation2 + $0x37] sm:$0xff]
      %v3533 = vld [vmem:[#allocation2 + $0x3f] sm:$0xff]
      %v3534 = vld [vmem:[#allocation2 + $0x47] sm:$0xff]
      %v3535 = vld [vmem:[#allocation2 + $0x4f] sm:$0xff]
      %v3536 = vld [vmem:[#allocation2 + $0x57] sm:$0xff]
      %v3537 = vld [vmem:[#allocation2 + $0x5f] sm:$0xff]
      %v3538 = vld [vmem:[#allocation2 + $0x67] sm:$0xff]
      %v3539 = vld [vmem:[#allocation2 + $0x6f] sm:$0xff]
      %v3540 = vld [vmem:[#allocation2 + $0x77] sm:$0xff]
      %v3541 = vld [vmem:[#allocation2 + $0x7f] sm:$0xff]
      %v3542 = vld [vmem:[#allocation2 + $0x87] sm:$0xff]
      %v3543 = vld [vmem:[#allocation2 + $0x8f] sm:$0xff]
      %v3544 = vld [vmem:[#allocation2 + $0x97] sm:$0xff]
      %v3545 = vld [vmem:[#allocation2 + $0x9f] sm:$0xff]
      %v3546 = vld [vmem:[#allocation2 + $0xa7] sm:$0xff]
      %v3547 = vld [vmem:[#allocation2 + $0xaf] sm:$0xff]
      %v3548 = vld [vmem:[#allocation2 + $0xb7] sm:$0xff]
      %v3549 = vld [vmem:[#allocation2 + $0xbf] sm:$0xff]
      %v3550 = vld [vmem:[#allocation2 + $0xc7] sm:$0xff]
      %v3551 = vld [vmem:[#allocation2 + $0xcf] sm:$0xff]
      %v3552 = vld [vmem:[#allocation2 + $0xd7] sm:$0xff]
      %v3553 = vld [vmem:[#allocation2 + $0xdf] sm:$0xff]
      %v3554 = vld [vmem:[#allocation2 + $0xe7] sm:$0xff]
      %v3555 = vld [vmem:[#allocation2 + $0xef] sm:$0xff]
      %v3556 = vld [vmem:[#allocation2 + $0xf7] sm:$0xff]
      %v3557 = vld [vmem:[#allocation2 + $0xff] sm:$0xff]
      %v3558 = vld [vmem:[#allocation2 + $0x107] sm:$0xff]
      %v3559 = vld [vmem:[#allocation2 + $0x10f] sm:$0xff]
      %v3560 = vld [vmem:[#allocation2 + $0x117] sm:$0xff]
      %v3561 = vld [vmem:[#allocation2 + $0x11f] sm:$0xff]
      %v3562 = vld [vmem:[#allocation2 + $0x127] sm:$0xff]
      %v3563 = vld [vmem:[#allocation2 + $0x12f] sm:$0xff]
      %v3564 = vpack.c.bf16 %v3529, %v3528
      %v3565 = vpack.c.bf16 %v3531, %v3530
      %v3566 = vpack.c.bf16 %v3533, %v3532
      %v3567 = vpack.c.bf16 %v3535, %v3534
      %v3568 = vpack.c.bf16 %v3537, %v3536
      %v3569 = vpack.c.bf16 %v3539, %v3538
      %v3570 = vpack.c.bf16 %v3541, %v3540
      %v3571 = vpack.c.bf16 %v3543, %v3542
      %v3572 = vpack.c.bf16 %v3545, %v3544
      %v3573 = vpack.c.bf16 %v3547, %v3546
      %v3574 = vpack.c.bf16 %v3549, %v3548
      %v3575 = vpack.c.bf16 %v3551, %v3550
      %v3576 = vpack.c.bf16 %v3553, %v3552
      %v3577 = vpack.c.bf16 %v3555, %v3554
      %v3578 = vpack.c.bf16 %v3557, %v3556
      %v3579 = vpack.c.bf16 %v3559, %v3558
      %v3580 = vpack.c.bf16 %v3561, %v3560
      %v3581 = vpack.c.bf16 %v3563, %v3562
      %s3582 = scalar_lea.vmem %s3, 48
      %v3583 = vld [vmem:[%s3582] sm:$0xf]
      %v3584 = vld [vmem:[%s3582 + $0x4] sm:$0xf]
      %v3585 = vld [vmem:[%s3582 + $0x8] sm:$0xf]
      %v3586 = vld [vmem:[%s3582 + $0xc] sm:$0xf]
      %v3591 = vunpack.c.l.b16 %v3583
      %v3592 = vunpack.c.l.b16 %v3584
      %v3593 = vunpack.c.l.b16 %v3585
      %v3594 = vunpack.c.l.b16 %v3586
      %v3595 = vpack.c.b16 %v3592, %v3591
      %v3596 = vpack.c.b16 %v3594, %v3593
      %v3600 = vsel %vm2742, %v3564, 0
      %v3603 = vsel %vm2742, %v3565, 0
      %v3606 = vsel %vm2742, %v3566, 0
      %v3609 = vsel %vm2742, %v3567, 0
      %v3612 = vsel %vm2742, %v3568, 0
      %v3615 = vsel %vm2742, %v3569, 0
      %v3618 = vsel %vm2742, %v3570, 0
      %v3621 = vsel %vm2742, %v3571, 0
      %v3624 = vsel %vm2742, %v3572, 0
      %v3627 = vsel %vm2742, %v3573, 0
      %v3630 = vsel %vm2742, %v3574, 0
      %v3633 = vsel %vm2742, %v3575, 0
      %v3636 = vsel %vm2742, %v3576, 0
      %v3639 = vsel %vm2742, %v3577, 0
      %v3642 = vsel %vm2742, %v3578, 0
      %v3645 = vsel %vm2742, %v3579, 0
      %v3648 = vsel %vm2742, %v3580, 0
      %v3651 = vsel %vm2742, %v3581, 0
      %3653 = vmatpush.bf16.msra.mxu0 0
      %3654 = vmatpush.bf16.msra.mxu0 0
      %3655 = vmatpush.bf16.msra.mxu0 0
      %3656 = vmatpush.bf16.msra.mxu0 0
      %3657 = vmatpush.bf16.msra.mxu0 0
      %3658 = vmatpush.bf16.msra.mxu0 0
      %3659 = vmatpush.bf16.msra.mxu0 %v3596
      %3660 = vmatpush.bf16.msra.mxu0 %v3595
      %3661 = vmatmul.bf16.gmra.mxu0 %v3600
      %v3662 = vpop.f32.mrf.mxu0
      %v3663 = vadd.f32 0.0, %v3662
      %v3664 = vpop.f32.mrf.mxu0
      %v3665 = vadd.f32 0.0, %v3664
      %3666 = vmatmul.bf16.gmra.mxu0 %v3603
      %v3667 = vpop.f32.mrf.mxu0
      %v3668 = vadd.f32 0.0, %v3667
      %v3669 = vpop.f32.mrf.mxu0
      %v3670 = vadd.f32 0.0, %v3669
      %3671 = vmatmul.bf16.gmra.mxu0 %v3606
      %v3672 = vpop.f32.mrf.mxu0
      %v3673 = vadd.f32 0.0, %v3672
      %v3674 = vpop.f32.mrf.mxu0
      %v3675 = vadd.f32 0.0, %v3674
      %3676 = vmatmul.bf16.gmra.mxu0 %v3609
      %v3677 = vpop.f32.mrf.mxu0
      %v3678 = vadd.f32 0.0, %v3677
      %v3679 = vpop.f32.mrf.mxu0
      %v3680 = vadd.f32 0.0, %v3679
      %3681 = vmatmul.bf16.gmra.mxu0 %v3612
      %v3682 = vpop.f32.mrf.mxu0
      %v3683 = vadd.f32 0.0, %v3682
      %v3684 = vpop.f32.mrf.mxu0
      %v3685 = vadd.f32 0.0, %v3684
      %3686 = vmatmul.bf16.gmra.mxu0 %v3615
      %v3687 = vpop.f32.mrf.mxu0
      %v3688 = vadd.f32 0.0, %v3687
      %v3689 = vpop.f32.mrf.mxu0
      %v3690 = vadd.f32 0.0, %v3689
      %3691 = vmatmul.bf16.gmra.mxu0 %v3618
      %v3692 = vpop.f32.mrf.mxu0
      %v3693 = vadd.f32 0.0, %v3692
      %v3694 = vpop.f32.mrf.mxu0
      %v3695 = vadd.f32 0.0, %v3694
      %3696 = vmatmul.bf16.gmra.mxu0 %v3621
      %v3697 = vpop.f32.mrf.mxu0
      %v3698 = vadd.f32 0.0, %v3697
      %v3699 = vpop.f32.mrf.mxu0
      %v3700 = vadd.f32 0.0, %v3699
      %3701 = vmatmul.bf16.gmra.mxu0 %v3624
      %v3702 = vpop.f32.mrf.mxu0
      %v3703 = vadd.f32 0.0, %v3702
      %v3704 = vpop.f32.mrf.mxu0
      %v3705 = vadd.f32 0.0, %v3704
      %3706 = vmatmul.bf16.gmra.mxu0 %v3627
      %v3707 = vpop.f32.mrf.mxu0
      %v3708 = vadd.f32 0.0, %v3707
      %v3709 = vpop.f32.mrf.mxu0
      %v3710 = vadd.f32 0.0, %v3709
      %3711 = vmatmul.bf16.gmra.mxu0 %v3630
      %v3712 = vpop.f32.mrf.mxu0
      %v3713 = vadd.f32 0.0, %v3712
      %v3714 = vpop.f32.mrf.mxu0
      %v3715 = vadd.f32 0.0, %v3714
      %3716 = vmatmul.bf16.gmra.mxu0 %v3633
      %v3717 = vpop.f32.mrf.mxu0
      %v3718 = vadd.f32 0.0, %v3717
      %v3719 = vpop.f32.mrf.mxu0
      %v3720 = vadd.f32 0.0, %v3719
      %3721 = vmatmul.bf16.gmra.mxu0 %v3636
      %v3722 = vpop.f32.mrf.mxu0
      %v3723 = vadd.f32 0.0, %v3722
      %v3724 = vpop.f32.mrf.mxu0
      %v3725 = vadd.f32 0.0, %v3724
      %3726 = vmatmul.bf16.gmra.mxu0 %v3639
      %v3727 = vpop.f32.mrf.mxu0
      %v3728 = vadd.f32 0.0, %v3727
      %v3729 = vpop.f32.mrf.mxu0
      %v3730 = vadd.f32 0.0, %v3729
      %3731 = vmatmul.bf16.gmra.mxu0 %v3642
      %v3732 = vpop.f32.mrf.mxu0
      %v3733 = vadd.f32 0.0, %v3732
      %v3734 = vpop.f32.mrf.mxu0
      %v3735 = vadd.f32 0.0, %v3734
      %3736 = vmatmul.bf16.gmra.mxu0 %v3645
      %v3737 = vpop.f32.mrf.mxu0
      %v3738 = vadd.f32 0.0, %v3737
      %v3739 = vpop.f32.mrf.mxu0
      %v3740 = vadd.f32 0.0, %v3739
      %3741 = vmatmul.bf16.gmra.mxu0 %v3648
      %v3742 = vpop.f32.mrf.mxu0
      %v3743 = vadd.f32 0.0, %v3742
      %v3744 = vpop.f32.mrf.mxu0
      %v3745 = vadd.f32 0.0, %v3744
      %3746 = vmatmul.bf16.gmra.mxu0 %v3651
      %v3747 = vpop.f32.mrf.mxu0
      %v3748 = vadd.f32 0.0, %v3747
      %v3749 = vpop.f32.mrf.mxu0
      %v3750 = vadd.f32 0.0, %v3749
      %3751 = vdwg.mxu0
      %v3752 = vadd.f32 %v3492, %v3663
      %v3753 = vadd.f32 %v3493, %v3665
      %v3754 = vadd.f32 %v3494, %v3668
      %v3755 = vadd.f32 %v3495, %v3670
      %v3756 = vadd.f32 %v3496, %v3673
      %v3757 = vadd.f32 %v3497, %v3675
      %v3758 = vadd.f32 %v3498, %v3678
      %v3759 = vadd.f32 %v3499, %v3680
      %v3760 = vadd.f32 %v3500, %v3683
      %v3761 = vadd.f32 %v3501, %v3685
      %v3762 = vadd.f32 %v3502, %v3688
      %v3763 = vadd.f32 %v3503, %v3690
      %v3764 = vadd.f32 %v3504, %v3693
      %v3765 = vadd.f32 %v3505, %v3695
      %v3766 = vadd.f32 %v3506, %v3698
      %v3767 = vadd.f32 %v3507, %v3700
      %v3768 = vadd.f32 %v3508, %v3703
      %v3769 = vadd.f32 %v3509, %v3705
      %v3770 = vadd.f32 %v3510, %v3708
      %v3771 = vadd.f32 %v3511, %v3710
      %v3772 = vadd.f32 %v3512, %v3713
      %v3773 = vadd.f32 %v3513, %v3715
      %v3774 = vadd.f32 %v3514, %v3718
      %v3775 = vadd.f32 %v3515, %v3720
      %v3776 = vadd.f32 %v3516, %v3723
      %v3777 = vadd.f32 %v3517, %v3725
      %v3778 = vadd.f32 %v3518, %v3728
      %v3779 = vadd.f32 %v3519, %v3730
      %v3780 = vadd.f32 %v3520, %v3733
      %v3781 = vadd.f32 %v3521, %v3735
      %v3782 = vadd.f32 %v3522, %v3738
      %v3783 = vadd.f32 %v3523, %v3740
      %v3784 = vadd.f32 %v3524, %v3743
      %v3785 = vadd.f32 %v3525, %v3745
      %v3786 = vadd.f32 %v3526, %v3748
      %v3787 = vadd.f32 %v3527, %v3750
      %v3788 = vld [vmem:[#allocation2 + $0x18] sm:$0xff]
      %v3789 = vld [vmem:[#allocation2 + $0x20] sm:$0xff]
      %v3790 = vld [vmem:[#allocation2 + $0x28] sm:$0xff]
      %v3791 = vld [vmem:[#allocation2 + $0x30] sm:$0xff]
      %v3792 = vld [vmem:[#allocation2 + $0x38] sm:$0xff]
      %v3793 = vld [vmem:[#allocation2 + $0x40] sm:$0xff]
      %v3794 = vld [vmem:[#allocation2 + $0x48] sm:$0xff]
      %v3795 = vld [vmem:[#allocation2 + $0x50] sm:$0xff]
      %v3796 = vld [vmem:[#allocation2 + $0x58] sm:$0xff]
      %v3797 = vld [vmem:[#allocation2 + $0x60] sm:$0xff]
      %v3798 = vld [vmem:[#allocation2 + $0x68] sm:$0xff]
      %v3799 = vld [vmem:[#allocation2 + $0x70] sm:$0xff]
      %v3800 = vld [vmem:[#allocation2 + $0x78] sm:$0xff]
      %v3801 = vld [vmem:[#allocation2 + $0x80] sm:$0xff]
      %v3802 = vld [vmem:[#allocation2 + $0x88] sm:$0xff]
      %v3803 = vld [vmem:[#allocation2 + $0x90] sm:$0xff]
      %v3804 = vld [vmem:[#allocation2 + $0x98] sm:$0xff]
      %v3805 = vld [vmem:[#allocation2 + $0xa0] sm:$0xff]
      %v3806 = vld [vmem:[#allocation2 + $0xa8] sm:$0xff]
      %v3807 = vld [vmem:[#allocation2 + $0xb0] sm:$0xff]
      %v3808 = vld [vmem:[#allocation2 + $0xb8] sm:$0xff]
      %v3809 = vld [vmem:[#allocation2 + $0xc0] sm:$0xff]
      %v3810 = vld [vmem:[#allocation2 + $0xc8] sm:$0xff]
      %v3811 = vld [vmem:[#allocation2 + $0xd0] sm:$0xff]
      %v3812 = vld [vmem:[#allocation2 + $0xd8] sm:$0xff]
      %v3813 = vld [vmem:[#allocation2 + $0xe0] sm:$0xff]
      %v3814 = vld [vmem:[#allocation2 + $0xe8] sm:$0xff]
      %v3815 = vld [vmem:[#allocation2 + $0xf0] sm:$0xff]
      %v3816 = vld [vmem:[#allocation2 + $0xf8] sm:$0xff]
      %v3817 = vld [vmem:[#allocation2 + $0x100] sm:$0xff]
      %v3818 = vld [vmem:[#allocation2 + $0x108] sm:$0xff]
      %v3819 = vld [vmem:[#allocation2 + $0x110] sm:$0xff]
      %v3820 = vld [vmem:[#allocation2 + $0x118] sm:$0xff]
      %v3821 = vld [vmem:[#allocation2 + $0x120] sm:$0xff]
      %v3822 = vld [vmem:[#allocation2 + $0x128] sm:$0xff]
      %v3823 = vld [vmem:[#allocation2 + $0x130] sm:$0xff]
      %v3824 = vpack.c.bf16 %v3789, %v3788
      %v3825 = vpack.c.bf16 %v3791, %v3790
      %v3826 = vpack.c.bf16 %v3793, %v3792
      %v3827 = vpack.c.bf16 %v3795, %v3794
      %v3828 = vpack.c.bf16 %v3797, %v3796
      %v3829 = vpack.c.bf16 %v3799, %v3798
      %v3830 = vpack.c.bf16 %v3801, %v3800
      %v3831 = vpack.c.bf16 %v3803, %v3802
      %v3832 = vpack.c.bf16 %v3805, %v3804
      %v3833 = vpack.c.bf16 %v3807, %v3806
      %v3834 = vpack.c.bf16 %v3809, %v3808
      %v3835 = vpack.c.bf16 %v3811, %v3810
      %v3836 = vpack.c.bf16 %v3813, %v3812
      %v3837 = vpack.c.bf16 %v3815, %v3814
      %v3838 = vpack.c.bf16 %v3817, %v3816
      %v3839 = vpack.c.bf16 %v3819, %v3818
      %v3840 = vpack.c.bf16 %v3821, %v3820
      %v3841 = vpack.c.bf16 %v3823, %v3822
      %s3842 = scalar_lea.vmem %s3, 64
      %v3843 = vld [vmem:[%s3842] sm:$0xf]
      %v3844 = vld [vmem:[%s3842 + $0x4] sm:$0xf]
      %v3845 = vld [vmem:[%s3842 + $0x8] sm:$0xf]
      %v3846 = vld [vmem:[%s3842 + $0xc] sm:$0xf]
      %v3851 = vunpack.c.l.b16 %v3843
      %v3852 = vunpack.c.l.b16 %v3844
      %v3853 = vunpack.c.l.b16 %v3845
      %v3854 = vunpack.c.l.b16 %v3846
      %v3855 = vpack.c.b16 %v3852, %v3851
      %v3856 = vpack.c.b16 %v3854, %v3853
      %v3860 = vsel %vm2742, %v3824, 0
      %v3863 = vsel %vm2742, %v3825, 0
      %v3866 = vsel %vm2742, %v3826, 0
      %v3869 = vsel %vm2742, %v3827, 0
      %v3872 = vsel %vm2742, %v3828, 0
      %v3875 = vsel %vm2742, %v3829, 0
      %v3878 = vsel %vm2742, %v3830, 0
      %v3881 = vsel %vm2742, %v3831, 0
      %v3884 = vsel %vm2742, %v3832, 0
      %v3887 = vsel %vm2742, %v3833, 0
      %v3890 = vsel %vm2742, %v3834, 0
      %v3893 = vsel %vm2742, %v3835, 0
      %v3896 = vsel %vm2742, %v3836, 0
      %v3899 = vsel %vm2742, %v3837, 0
      %v3902 = vsel %vm2742, %v3838, 0
      %v3905 = vsel %vm2742, %v3839, 0
      %v3908 = vsel %vm2742, %v3840, 0
      %v3911 = vsel %vm2742, %v3841, 0
      %3913 = vmatpush.bf16.msra.mxu0 0
      %3914 = vmatpush.bf16.msra.mxu0 0
      %3915 = vmatpush.bf16.msra.mxu0 0
      %3916 = vmatpush.bf16.msra.mxu0 0
      %3917 = vmatpush.bf16.msra.mxu0 0
      %3918 = vmatpush.bf16.msra.mxu0 0
      %3919 = vmatpush.bf16.msra.mxu0 %v3856
      %3920 = vmatpush.bf16.msra.mxu0 %v3855
      %3921 = vmatmul.bf16.gmra.mxu0 %v3860
      %v3922 = vpop.f32.mrf.mxu0
      %v3923 = vadd.f32 0.0, %v3922
      %v3924 = vpop.f32.mrf.mxu0
      %v3925 = vadd.f32 0.0, %v3924
      %3926 = vmatmul.bf16.gmra.mxu0 %v3863
      %v3927 = vpop.f32.mrf.mxu0
      %v3928 = vadd.f32 0.0, %v3927
      %v3929 = vpop.f32.mrf.mxu0
      %v3930 = vadd.f32 0.0, %v3929
      %3931 = vmatmul.bf16.gmra.mxu0 %v3866
      %v3932 = vpop.f32.mrf.mxu0
      %v3933 = vadd.f32 0.0, %v3932
      %v3934 = vpop.f32.mrf.mxu0
      %v3935 = vadd.f32 0.0, %v3934
      %3936 = vmatmul.bf16.gmra.mxu0 %v3869
      %v3937 = vpop.f32.mrf.mxu0
      %v3938 = vadd.f32 0.0, %v3937
      %v3939 = vpop.f32.mrf.mxu0
      %v3940 = vadd.f32 0.0, %v3939
      %3941 = vmatmul.bf16.gmra.mxu0 %v3872
      %v3942 = vpop.f32.mrf.mxu0
      %v3943 = vadd.f32 0.0, %v3942
      %v3944 = vpop.f32.mrf.mxu0
      %v3945 = vadd.f32 0.0, %v3944
      %3946 = vmatmul.bf16.gmra.mxu0 %v3875
      %v3947 = vpop.f32.mrf.mxu0
      %v3948 = vadd.f32 0.0, %v3947
      %v3949 = vpop.f32.mrf.mxu0
      %v3950 = vadd.f32 0.0, %v3949
      %3951 = vmatmul.bf16.gmra.mxu0 %v3878
      %v3952 = vpop.f32.mrf.mxu0
      %v3953 = vadd.f32 0.0, %v3952
      %v3954 = vpop.f32.mrf.mxu0
      %v3955 = vadd.f32 0.0, %v3954
      %3956 = vmatmul.bf16.gmra.mxu0 %v3881
      %v3957 = vpop.f32.mrf.mxu0
      %v3958 = vadd.f32 0.0, %v3957
      %v3959 = vpop.f32.mrf.mxu0
      %v3960 = vadd.f32 0.0, %v3959
      %3961 = vmatmul.bf16.gmra.mxu0 %v3884
      %v3962 = vpop.f32.mrf.mxu0
      %v3963 = vadd.f32 0.0, %v3962
      %v3964 = vpop.f32.mrf.mxu0
      %v3965 = vadd.f32 0.0, %v3964
      %3966 = vmatmul.bf16.gmra.mxu0 %v3887
      %v3967 = vpop.f32.mrf.mxu0
      %v3968 = vadd.f32 0.0, %v3967
      %v3969 = vpop.f32.mrf.mxu0
      %v3970 = vadd.f32 0.0, %v3969
      %3971 = vmatmul.bf16.gmra.mxu0 %v3890
      %v3972 = vpop.f32.mrf.mxu0
      %v3973 = vadd.f32 0.0, %v3972
      %v3974 = vpop.f32.mrf.mxu0
      %v3975 = vadd.f32 0.0, %v3974
      %3976 = vmatmul.bf16.gmra.mxu0 %v3893
      %v3977 = vpop.f32.mrf.mxu0
      %v3978 = vadd.f32 0.0, %v3977
      %v3979 = vpop.f32.mrf.mxu0
      %v3980 = vadd.f32 0.0, %v3979
      %3981 = vmatmul.bf16.gmra.mxu0 %v3896
      %v3982 = vpop.f32.mrf.mxu0
      %v3983 = vadd.f32 0.0, %v3982
      %v3984 = vpop.f32.mrf.mxu0
      %v3985 = vadd.f32 0.0, %v3984
      %3986 = vmatmul.bf16.gmra.mxu0 %v3899
      %v3987 = vpop.f32.mrf.mxu0
      %v3988 = vadd.f32 0.0, %v3987
      %v3989 = vpop.f32.mrf.mxu0
      %v3990 = vadd.f32 0.0, %v3989
      %3991 = vmatmul.bf16.gmra.mxu0 %v3902
      %v3992 = vpop.f32.mrf.mxu0
      %v3993 = vadd.f32 0.0, %v3992
      %v3994 = vpop.f32.mrf.mxu0
      %v3995 = vadd.f32 0.0, %v3994
      %3996 = vmatmul.bf16.gmra.mxu0 %v3905
      %v3997 = vpop.f32.mrf.mxu0
      %v3998 = vadd.f32 0.0, %v3997
      %v3999 = vpop.f32.mrf.mxu0
      %v4000 = vadd.f32 0.0, %v3999
      %4001 = vmatmul.bf16.gmra.mxu0 %v3908
      %v4002 = vpop.f32.mrf.mxu0
      %v4003 = vadd.f32 0.0, %v4002
      %v4004 = vpop.f32.mrf.mxu0
      %v4005 = vadd.f32 0.0, %v4004
      %4006 = vmatmul.bf16.gmra.mxu0 %v3911
      %v4007 = vpop.f32.mrf.mxu0
      %v4008 = vadd.f32 0.0, %v4007
      %v4009 = vpop.f32.mrf.mxu0
      %v4010 = vadd.f32 0.0, %v4009
      %4011 = vdwg.mxu0
      %v4012 = vadd.f32 %v3752, %v3923
      %v4013 = vadd.f32 %v3753, %v3925
      %v4014 = vadd.f32 %v3754, %v3928
      %v4015 = vadd.f32 %v3755, %v3930
      %v4016 = vadd.f32 %v3756, %v3933
      %v4017 = vadd.f32 %v3757, %v3935
      %v4018 = vadd.f32 %v3758, %v3938
      %v4019 = vadd.f32 %v3759, %v3940
      %v4020 = vadd.f32 %v3760, %v3943
      %v4021 = vadd.f32 %v3761, %v3945
      %v4022 = vadd.f32 %v3762, %v3948
      %v4023 = vadd.f32 %v3763, %v3950
      %v4024 = vadd.f32 %v3764, %v3953
      %v4025 = vadd.f32 %v3765, %v3955
      %v4026 = vadd.f32 %v3766, %v3958
      %v4027 = vadd.f32 %v3767, %v3960
      %v4028 = vadd.f32 %v3768, %v3963
      %v4029 = vadd.f32 %v3769, %v3965
      %v4030 = vadd.f32 %v3770, %v3968
      %v4031 = vadd.f32 %v3771, %v3970
      %v4032 = vadd.f32 %v3772, %v3973
      %v4033 = vadd.f32 %v3773, %v3975
      %v4034 = vadd.f32 %v3774, %v3978
      %v4035 = vadd.f32 %v3775, %v3980
      %v4036 = vadd.f32 %v3776, %v3983
      %v4037 = vadd.f32 %v3777, %v3985
      %v4038 = vadd.f32 %v3778, %v3988
      %v4039 = vadd.f32 %v3779, %v3990
      %v4040 = vadd.f32 %v3780, %v3993
      %v4041 = vadd.f32 %v3781, %v3995
      %v4042 = vadd.f32 %v3782, %v3998
      %v4043 = vadd.f32 %v3783, %v4000
      %v4044 = vadd.f32 %v3784, %v4003
      %v4045 = vadd.f32 %v3785, %v4005
      %v4046 = vadd.f32 %v3786, %v4008
      %v4047 = vadd.f32 %v3787, %v4010
      %v4048 = vld [vmem:[#allocation2 + $0x19] sm:$0xff]
      %v4049 = vld [vmem:[#allocation2 + $0x21] sm:$0xff]
      %v4050 = vld [vmem:[#allocation2 + $0x29] sm:$0xff]
      %v4051 = vld [vmem:[#allocation2 + $0x31] sm:$0xff]
      %v4052 = vld [vmem:[#allocation2 + $0x39] sm:$0xff]
      %v4053 = vld [vmem:[#allocation2 + $0x41] sm:$0xff]
      %v4054 = vld [vmem:[#allocation2 + $0x49] sm:$0xff]
      %v4055 = vld [vmem:[#allocation2 + $0x51] sm:$0xff]
      %v4056 = vld [vmem:[#allocation2 + $0x59] sm:$0xff]
      %v4057 = vld [vmem:[#allocation2 + $0x61] sm:$0xff]
      %v4058 = vld [vmem:[#allocation2 + $0x69] sm:$0xff]
      %v4059 = vld [vmem:[#allocation2 + $0x71] sm:$0xff]
      %v4060 = vld [vmem:[#allocation2 + $0x79] sm:$0xff]
      %v4061 = vld [vmem:[#allocation2 + $0x81] sm:$0xff]
      %v4062 = vld [vmem:[#allocation2 + $0x89] sm:$0xff]
      %v4063 = vld [vmem:[#allocation2 + $0x91] sm:$0xff]
      %v4064 = vld [vmem:[#allocation2 + $0x99] sm:$0xff]
      %v4065 = vld [vmem:[#allocation2 + $0xa1] sm:$0xff]
      %v4066 = vld [vmem:[#allocation2 + $0xa9] sm:$0xff]
      %v4067 = vld [vmem:[#allocation2 + $0xb1] sm:$0xff]
      %v4068 = vld [vmem:[#allocation2 + $0xb9] sm:$0xff]
      %v4069 = vld [vmem:[#allocation2 + $0xc1] sm:$0xff]
      %v4070 = vld [vmem:[#allocation2 + $0xc9] sm:$0xff]
      %v4071 = vld [vmem:[#allocation2 + $0xd1] sm:$0xff]
      %v4072 = vld [vmem:[#allocation2 + $0xd9] sm:$0xff]
      %v4073 = vld [vmem:[#allocation2 + $0xe1] sm:$0xff]
      %v4074 = vld [vmem:[#allocation2 + $0xe9] sm:$0xff]
      %v4075 = vld [vmem:[#allocation2 + $0xf1] sm:$0xff]
      %v4076 = vld [vmem:[#allocation2 + $0xf9] sm:$0xff]
      %v4077 = vld [vmem:[#allocation2 + $0x101] sm:$0xff]
      %v4078 = vld [vmem:[#allocation2 + $0x109] sm:$0xff]
      %v4079 = vld [vmem:[#allocation2 + $0x111] sm:$0xff]
      %v4080 = vld [vmem:[#allocation2 + $0x119] sm:$0xff]
      %v4081 = vld [vmem:[#allocation2 + $0x121] sm:$0xff]
      %v4082 = vld [vmem:[#allocation2 + $0x129] sm:$0xff]
      %v4083 = vld [vmem:[#allocation2 + $0x131] sm:$0xff]
      %v4084 = vpack.c.bf16 %v4049, %v4048
      %v4085 = vpack.c.bf16 %v4051, %v4050
      %v4086 = vpack.c.bf16 %v4053, %v4052
      %v4087 = vpack.c.bf16 %v4055, %v4054
      %v4088 = vpack.c.bf16 %v4057, %v4056
      %v4089 = vpack.c.bf16 %v4059, %v4058
      %v4090 = vpack.c.bf16 %v4061, %v4060
      %v4091 = vpack.c.bf16 %v4063, %v4062
      %v4092 = vpack.c.bf16 %v4065, %v4064
      %v4093 = vpack.c.bf16 %v4067, %v4066
      %v4094 = vpack.c.bf16 %v4069, %v4068
      %v4095 = vpack.c.bf16 %v4071, %v4070
      %v4096 = vpack.c.bf16 %v4073, %v4072
      %v4097 = vpack.c.bf16 %v4075, %v4074
      %v4098 = vpack.c.bf16 %v4077, %v4076
      %v4099 = vpack.c.bf16 %v4079, %v4078
      %v4100 = vpack.c.bf16 %v4081, %v4080
      %v4101 = vpack.c.bf16 %v4083, %v4082
      %s4102 = scalar_lea.vmem %s3, 80
      %v4103 = vld [vmem:[%s4102] sm:$0xf]
      %v4104 = vld [vmem:[%s4102 + $0x4] sm:$0xf]
      %v4105 = vld [vmem:[%s4102 + $0x8] sm:$0xf]
      %v4106 = vld [vmem:[%s4102 + $0xc] sm:$0xf]
      %v4111 = vunpack.c.l.b16 %v4103
      %v4112 = vunpack.c.l.b16 %v4104
      %v4113 = vunpack.c.l.b16 %v4105
      %v4114 = vunpack.c.l.b16 %v4106
      %v4115 = vpack.c.b16 %v4112, %v4111
      %v4116 = vpack.c.b16 %v4114, %v4113
      %v4120 = vsel %vm2742, %v4084, 0
      %v4123 = vsel %vm2742, %v4085, 0
      %v4126 = vsel %vm2742, %v4086, 0
      %v4129 = vsel %vm2742, %v4087, 0
      %v4132 = vsel %vm2742, %v4088, 0
      %v4135 = vsel %vm2742, %v4089, 0
      %v4138 = vsel %vm2742, %v4090, 0
      %v4141 = vsel %vm2742, %v4091, 0
      %v4144 = vsel %vm2742, %v4092, 0
      %v4147 = vsel %vm2742, %v4093, 0
      %v4150 = vsel %vm2742, %v4094, 0
      %v4153 = vsel %vm2742, %v4095, 0
      %v4156 = vsel %vm2742, %v4096, 0
      %v4159 = vsel %vm2742, %v4097, 0
      %v4162 = vsel %vm2742, %v4098, 0
      %v4165 = vsel %vm2742, %v4099, 0
      %v4168 = vsel %vm2742, %v4100, 0
      %v4171 = vsel %vm2742, %v4101, 0
      %4173 = vmatpush.bf16.msra.mxu0 0
      %4174 = vmatpush.bf16.msra.mxu0 0
      %4175 = vmatpush.bf16.msra.mxu0 0
      %4176 = vmatpush.bf16.msra.mxu0 0
      %4177 = vmatpush.bf16.msra.mxu0 0
      %4178 = vmatpush.bf16.msra.mxu0 0
      %4179 = vmatpush.bf16.msra.mxu0 %v4116
      %4180 = vmatpush.bf16.msra.mxu0 %v4115
      %4181 = vmatmul.bf16.gmra.mxu0 %v4120
      %v4182 = vpop.f32.mrf.mxu0
      %v4183 = vadd.f32 0.0, %v4182
      %v4184 = vpop.f32.mrf.mxu0
      %v4185 = vadd.f32 0.0, %v4184
      %4186 = vmatmul.bf16.gmra.mxu0 %v4123
      %v4187 = vpop.f32.mrf.mxu0
      %v4188 = vadd.f32 0.0, %v4187
      %v4189 = vpop.f32.mrf.mxu0
      %v4190 = vadd.f32 0.0, %v4189
      %4191 = vmatmul.bf16.gmra.mxu0 %v4126
      %v4192 = vpop.f32.mrf.mxu0
      %v4193 = vadd.f32 0.0, %v4192
      %v4194 = vpop.f32.mrf.mxu0
      %v4195 = vadd.f32 0.0, %v4194
      %4196 = vmatmul.bf16.gmra.mxu0 %v4129
      %v4197 = vpop.f32.mrf.mxu0
      %v4198 = vadd.f32 0.0, %v4197
      %v4199 = vpop.f32.mrf.mxu0
      %v4200 = vadd.f32 0.0, %v4199
      %4201 = vmatmul.bf16.gmra.mxu0 %v4132
      %v4202 = vpop.f32.mrf.mxu0
      %v4203 = vadd.f32 0.0, %v4202
      %v4204 = vpop.f32.mrf.mxu0
      %v4205 = vadd.f32 0.0, %v4204
      %4206 = vmatmul.bf16.gmra.mxu0 %v4135
      %v4207 = vpop.f32.mrf.mxu0
      %v4208 = vadd.f32 0.0, %v4207
      %v4209 = vpop.f32.mrf.mxu0
      %v4210 = vadd.f32 0.0, %v4209
      %4211 = vmatmul.bf16.gmra.mxu0 %v4138
      %v4212 = vpop.f32.mrf.mxu0
      %v4213 = vadd.f32 0.0, %v4212
      %v4214 = vpop.f32.mrf.mxu0
      %v4215 = vadd.f32 0.0, %v4214
      %4216 = vmatmul.bf16.gmra.mxu0 %v4141
      %v4217 = vpop.f32.mrf.mxu0
      %v4218 = vadd.f32 0.0, %v4217
      %v4219 = vpop.f32.mrf.mxu0
      %v4220 = vadd.f32 0.0, %v4219
      %4221 = vmatmul.bf16.gmra.mxu0 %v4144
      %v4222 = vpop.f32.mrf.mxu0
      %v4223 = vadd.f32 0.0, %v4222
      %v4224 = vpop.f32.mrf.mxu0
      %v4225 = vadd.f32 0.0, %v4224
      %4226 = vmatmul.bf16.gmra.mxu0 %v4147
      %v4227 = vpop.f32.mrf.mxu0
      %v4228 = vadd.f32 0.0, %v4227
      %v4229 = vpop.f32.mrf.mxu0
      %v4230 = vadd.f32 0.0, %v4229
      %4231 = vmatmul.bf16.gmra.mxu0 %v4150
      %v4232 = vpop.f32.mrf.mxu0
      %v4233 = vadd.f32 0.0, %v4232
      %v4234 = vpop.f32.mrf.mxu0
      %v4235 = vadd.f32 0.0, %v4234
      %4236 = vmatmul.bf16.gmra.mxu0 %v4153
      %v4237 = vpop.f32.mrf.mxu0
      %v4238 = vadd.f32 0.0, %v4237
      %v4239 = vpop.f32.mrf.mxu0
      %v4240 = vadd.f32 0.0, %v4239
      %4241 = vmatmul.bf16.gmra.mxu0 %v4156
      %v4242 = vpop.f32.mrf.mxu0
      %v4243 = vadd.f32 0.0, %v4242
      %v4244 = vpop.f32.mrf.mxu0
      %v4245 = vadd.f32 0.0, %v4244
      %4246 = vmatmul.bf16.gmra.mxu0 %v4159
      %v4247 = vpop.f32.mrf.mxu0
      %v4248 = vadd.f32 0.0, %v4247
      %v4249 = vpop.f32.mrf.mxu0
      %v4250 = vadd.f32 0.0, %v4249
      %4251 = vmatmul.bf16.gmra.mxu0 %v4162
      %v4252 = vpop.f32.mrf.mxu0
      %v4253 = vadd.f32 0.0, %v4252
      %v4254 = vpop.f32.mrf.mxu0
      %v4255 = vadd.f32 0.0, %v4254
      %4256 = vmatmul.bf16.gmra.mxu0 %v4165
      %v4257 = vpop.f32.mrf.mxu0
      %v4258 = vadd.f32 0.0, %v4257
      %v4259 = vpop.f32.mrf.mxu0
      %v4260 = vadd.f32 0.0, %v4259
      %4261 = vmatmul.bf16.gmra.mxu0 %v4168
      %v4262 = vpop.f32.mrf.mxu0
      %v4263 = vadd.f32 0.0, %v4262
      %v4264 = vpop.f32.mrf.mxu0
      %v4265 = vadd.f32 0.0, %v4264
      %4266 = vmatmul.bf16.gmra.mxu0 %v4171
      %v4267 = vpop.f32.mrf.mxu0
      %v4268 = vadd.f32 0.0, %v4267
      %v4269 = vpop.f32.mrf.mxu0
      %v4270 = vadd.f32 0.0, %v4269
      %4271 = vdwg.mxu0
      %v4272 = vadd.f32 %v4012, %v4183
      %v4273 = vadd.f32 %v4013, %v4185
      %v4274 = vadd.f32 %v4014, %v4188
      %v4275 = vadd.f32 %v4015, %v4190
      %v4276 = vadd.f32 %v4016, %v4193
      %v4277 = vadd.f32 %v4017, %v4195
      %v4278 = vadd.f32 %v4018, %v4198
      %v4279 = vadd.f32 %v4019, %v4200
      %v4280 = vadd.f32 %v4020, %v4203
      %v4281 = vadd.f32 %v4021, %v4205
      %v4282 = vadd.f32 %v4022, %v4208
      %v4283 = vadd.f32 %v4023, %v4210
      %v4284 = vadd.f32 %v4024, %v4213
      %v4285 = vadd.f32 %v4025, %v4215
      %v4286 = vadd.f32 %v4026, %v4218
      %v4287 = vadd.f32 %v4027, %v4220
      %v4288 = vadd.f32 %v4028, %v4223
      %v4289 = vadd.f32 %v4029, %v4225
      %v4290 = vadd.f32 %v4030, %v4228
      %v4291 = vadd.f32 %v4031, %v4230
      %v4292 = vadd.f32 %v4032, %v4233
      %v4293 = vadd.f32 %v4033, %v4235
      %v4294 = vadd.f32 %v4034, %v4238
      %v4295 = vadd.f32 %v4035, %v4240
      %v4296 = vadd.f32 %v4036, %v4243
      %v4297 = vadd.f32 %v4037, %v4245
      %v4298 = vadd.f32 %v4038, %v4248
      %v4299 = vadd.f32 %v4039, %v4250
      %v4300 = vadd.f32 %v4040, %v4253
      %v4301 = vadd.f32 %v4041, %v4255
      %v4302 = vadd.f32 %v4042, %v4258
      %v4303 = vadd.f32 %v4043, %v4260
      %v4304 = vadd.f32 %v4044, %v4263
      %v4305 = vadd.f32 %v4045, %v4265
      %v4306 = vadd.f32 %v4046, %v4268
      %v4307 = vadd.f32 %v4047, %v4270
      %v4308 = vld [vmem:[#allocation2 + $0x29] sm:$0xff]
      %v4309 = vld [vmem:[#allocation2 + $0x31] sm:$0xff]
      %v4310 = vld [vmem:[#allocation2 + $0x39] sm:$0xff]
      %v4311 = vld [vmem:[#allocation2 + $0x41] sm:$0xff]
      %v4312 = vld [vmem:[#allocation2 + $0x49] sm:$0xff]
      %v4313 = vld [vmem:[#allocation2 + $0x51] sm:$0xff]
      %v4314 = vld [vmem:[#allocation2 + $0x59] sm:$0xff]
      %v4315 = vld [vmem:[#allocation2 + $0x61] sm:$0xff]
      %v4316 = vld [vmem:[#allocation2 + $0x69] sm:$0xff]
      %v4317 = vld [vmem:[#allocation2 + $0x71] sm:$0xff]
      %v4318 = vld [vmem:[#allocation2 + $0x79] sm:$0xff]
      %v4319 = vld [vmem:[#allocation2 + $0x81] sm:$0xff]
      %v4320 = vld [vmem:[#allocation2 + $0x89] sm:$0xff]
      %v4321 = vld [vmem:[#allocation2 + $0x91] sm:$0xff]
      %v4322 = vld [vmem:[#allocation2 + $0x99] sm:$0xff]
      %v4323 = vld [vmem:[#allocation2 + $0xa1] sm:$0xff]
      %v4324 = vld [vmem:[#allocation2 + $0xa9] sm:$0xff]
      %v4325 = vld [vmem:[#allocation2 + $0xb1] sm:$0xff]
      %v4326 = vld [vmem:[#allocation2 + $0xb9] sm:$0xff]
      %v4327 = vld [vmem:[#allocation2 + $0xc1] sm:$0xff]
      %v4328 = vld [vmem:[#allocation2 + $0xc9] sm:$0xff]
      %v4329 = vld [vmem:[#allocation2 + $0xd1] sm:$0xff]
      %v4330 = vld [vmem:[#allocation2 + $0xd9] sm:$0xff]
      %v4331 = vld [vmem:[#allocation2 + $0xe1] sm:$0xff]
      %v4332 = vld [vmem:[#allocation2 + $0xe9] sm:$0xff]
      %v4333 = vld [vmem:[#allocation2 + $0xf1] sm:$0xff]
      %v4334 = vld [vmem:[#allocation2 + $0xf9] sm:$0xff]
      %v4335 = vld [vmem:[#allocation2 + $0x101] sm:$0xff]
      %v4336 = vld [vmem:[#allocation2 + $0x109] sm:$0xff]
      %v4337 = vld [vmem:[#allocation2 + $0x111] sm:$0xff]
      %v4338 = vld [vmem:[#allocation2 + $0x119] sm:$0xff]
      %v4339 = vld [vmem:[#allocation2 + $0x121] sm:$0xff]
      %v4340 = vld [vmem:[#allocation2 + $0x129] sm:$0xff]
      %v4341 = vld [vmem:[#allocation2 + $0x131] sm:$0xff]
      %v4342 = vld [vmem:[#allocation2 + $0x139] sm:$0xff]
      %v4343 = vld [vmem:[#allocation2 + $0x141] sm:$0xff]
      %v4344 = vpack.c.bf16 %v4309, %v4308
      %v4345 = vpack.c.bf16 %v4311, %v4310
      %v4346 = vpack.c.bf16 %v4313, %v4312
      %v4347 = vpack.c.bf16 %v4315, %v4314
      %v4348 = vpack.c.bf16 %v4317, %v4316
      %v4349 = vpack.c.bf16 %v4319, %v4318
      %v4350 = vpack.c.bf16 %v4321, %v4320
      %v4351 = vpack.c.bf16 %v4323, %v4322
      %v4352 = vpack.c.bf16 %v4325, %v4324
      %v4353 = vpack.c.bf16 %v4327, %v4326
      %v4354 = vpack.c.bf16 %v4329, %v4328
      %v4355 = vpack.c.bf16 %v4331, %v4330
      %v4356 = vpack.c.bf16 %v4333, %v4332
      %v4357 = vpack.c.bf16 %v4335, %v4334
      %v4358 = vpack.c.bf16 %v4337, %v4336
      %v4359 = vpack.c.bf16 %v4339, %v4338
      %v4360 = vpack.c.bf16 %v4341, %v4340
      %v4361 = vpack.c.bf16 %v4343, %v4342
      %s4362 = scalar_lea.vmem %s3, 96
      %v4363 = vld [vmem:[%s4362] sm:$0xf]
      %v4364 = vld [vmem:[%s4362 + $0x4] sm:$0xf]
      %v4365 = vld [vmem:[%s4362 + $0x8] sm:$0xf]
      %v4366 = vld [vmem:[%s4362 + $0xc] sm:$0xf]
      %v4371 = vunpack.c.l.b16 %v4363
      %v4372 = vunpack.c.l.b16 %v4364
      %v4373 = vunpack.c.l.b16 %v4365
      %v4374 = vunpack.c.l.b16 %v4366
      %v4375 = vpack.c.b16 %v4372, %v4371
      %v4376 = vpack.c.b16 %v4374, %v4373
      %v4380 = vsel %vm2742, %v4344, 0
      %v4383 = vsel %vm2742, %v4345, 0
      %v4386 = vsel %vm2742, %v4346, 0
      %v4389 = vsel %vm2742, %v4347, 0
      %v4392 = vsel %vm2742, %v4348, 0
      %v4395 = vsel %vm2742, %v4349, 0
      %v4398 = vsel %vm2742, %v4350, 0
      %v4401 = vsel %vm2742, %v4351, 0
      %v4404 = vsel %vm2742, %v4352, 0
      %v4407 = vsel %vm2742, %v4353, 0
      %v4410 = vsel %vm2742, %v4354, 0
      %v4413 = vsel %vm2742, %v4355, 0
      %v4416 = vsel %vm2742, %v4356, 0
      %v4419 = vsel %vm2742, %v4357, 0
      %v4422 = vsel %vm2742, %v4358, 0
      %v4425 = vsel %vm2742, %v4359, 0
      %v4428 = vsel %vm2742, %v4360, 0
      %v4431 = vsel %vm2742, %v4361, 0
      %4433 = vmatpush.bf16.msra.mxu0 0
      %4434 = vmatpush.bf16.msra.mxu0 0
      %4435 = vmatpush.bf16.msra.mxu0 0
      %4436 = vmatpush.bf16.msra.mxu0 0
      %4437 = vmatpush.bf16.msra.mxu0 0
      %4438 = vmatpush.bf16.msra.mxu0 0
      %4439 = vmatpush.bf16.msra.mxu0 %v4376
      %4440 = vmatpush.bf16.msra.mxu0 %v4375
      %4441 = vmatmul.bf16.gmra.mxu0 %v4380
      %v4442 = vpop.f32.mrf.mxu0
      %v4443 = vadd.f32 0.0, %v4442
      %v4444 = vpop.f32.mrf.mxu0
      %v4445 = vadd.f32 0.0, %v4444
      %4446 = vmatmul.bf16.gmra.mxu0 %v4383
      %v4447 = vpop.f32.mrf.mxu0
      %v4448 = vadd.f32 0.0, %v4447
      %v4449 = vpop.f32.mrf.mxu0
      %v4450 = vadd.f32 0.0, %v4449
      %4451 = vmatmul.bf16.gmra.mxu0 %v4386
      %v4452 = vpop.f32.mrf.mxu0
      %v4453 = vadd.f32 0.0, %v4452
      %v4454 = vpop.f32.mrf.mxu0
      %v4455 = vadd.f32 0.0, %v4454
      %4456 = vmatmul.bf16.gmra.mxu0 %v4389
      %v4457 = vpop.f32.mrf.mxu0
      %v4458 = vadd.f32 0.0, %v4457
      %v4459 = vpop.f32.mrf.mxu0
      %v4460 = vadd.f32 0.0, %v4459
      %4461 = vmatmul.bf16.gmra.mxu0 %v4392
      %v4462 = vpop.f32.mrf.mxu0
      %v4463 = vadd.f32 0.0, %v4462
      %v4464 = vpop.f32.mrf.mxu0
      %v4465 = vadd.f32 0.0, %v4464
      %4466 = vmatmul.bf16.gmra.mxu0 %v4395
      %v4467 = vpop.f32.mrf.mxu0
      %v4468 = vadd.f32 0.0, %v4467
      %v4469 = vpop.f32.mrf.mxu0
      %v4470 = vadd.f32 0.0, %v4469
      %4471 = vmatmul.bf16.gmra.mxu0 %v4398
      %v4472 = vpop.f32.mrf.mxu0
      %v4473 = vadd.f32 0.0, %v4472
      %v4474 = vpop.f32.mrf.mxu0
      %v4475 = vadd.f32 0.0, %v4474
      %4476 = vmatmul.bf16.gmra.mxu0 %v4401
      %v4477 = vpop.f32.mrf.mxu0
      %v4478 = vadd.f32 0.0, %v4477
      %v4479 = vpop.f32.mrf.mxu0
      %v4480 = vadd.f32 0.0, %v4479
      %4481 = vmatmul.bf16.gmra.mxu0 %v4404
      %v4482 = vpop.f32.mrf.mxu0
      %v4483 = vadd.f32 0.0, %v4482
      %v4484 = vpop.f32.mrf.mxu0
      %v4485 = vadd.f32 0.0, %v4484
      %4486 = vmatmul.bf16.gmra.mxu0 %v4407
      %v4487 = vpop.f32.mrf.mxu0
      %v4488 = vadd.f32 0.0, %v4487
      %v4489 = vpop.f32.mrf.mxu0
      %v4490 = vadd.f32 0.0, %v4489
      %4491 = vmatmul.bf16.gmra.mxu0 %v4410
      %v4492 = vpop.f32.mrf.mxu0
      %v4493 = vadd.f32 0.0, %v4492
      %v4494 = vpop.f32.mrf.mxu0
      %v4495 = vadd.f32 0.0, %v4494
      %4496 = vmatmul.bf16.gmra.mxu0 %v4413
      %v4497 = vpop.f32.mrf.mxu0
      %v4498 = vadd.f32 0.0, %v4497
      %v4499 = vpop.f32.mrf.mxu0
      %v4500 = vadd.f32 0.0, %v4499
      %4501 = vmatmul.bf16.gmra.mxu0 %v4416
      %v4502 = vpop.f32.mrf.mxu0
      %v4503 = vadd.f32 0.0, %v4502
      %v4504 = vpop.f32.mrf.mxu0
      %v4505 = vadd.f32 0.0, %v4504
      %4506 = vmatmul.bf16.gmra.mxu0 %v4419
      %v4507 = vpop.f32.mrf.mxu0
      %v4508 = vadd.f32 0.0, %v4507
      %v4509 = vpop.f32.mrf.mxu0
      %v4510 = vadd.f32 0.0, %v4509
      %4511 = vmatmul.bf16.gmra.mxu0 %v4422
      %v4512 = vpop.f32.mrf.mxu0
      %v4513 = vadd.f32 0.0, %v4512
      %v4514 = vpop.f32.mrf.mxu0
      %v4515 = vadd.f32 0.0, %v4514
      %4516 = vmatmul.bf16.gmra.mxu0 %v4425
      %v4517 = vpop.f32.mrf.mxu0
      %v4518 = vadd.f32 0.0, %v4517
      %v4519 = vpop.f32.mrf.mxu0
      %v4520 = vadd.f32 0.0, %v4519
      %4521 = vmatmul.bf16.gmra.mxu0 %v4428
      %v4522 = vpop.f32.mrf.mxu0
      %v4523 = vadd.f32 0.0, %v4522
      %v4524 = vpop.f32.mrf.mxu0
      %v4525 = vadd.f32 0.0, %v4524
      %4526 = vmatmul.bf16.gmra.mxu0 %v4431
      %v4527 = vpop.f32.mrf.mxu0
      %v4528 = vadd.f32 0.0, %v4527
      %v4529 = vpop.f32.mrf.mxu0
      %v4530 = vadd.f32 0.0, %v4529
      %4531 = vdwg.mxu0
      %v4532 = vadd.f32 %v4272, %v4443
      %v4533 = vadd.f32 %v4273, %v4445
      %v4534 = vadd.f32 %v4274, %v4448
      %v4535 = vadd.f32 %v4275, %v4450
      %v4536 = vadd.f32 %v4276, %v4453
      %v4537 = vadd.f32 %v4277, %v4455
      %v4538 = vadd.f32 %v4278, %v4458
      %v4539 = vadd.f32 %v4279, %v4460
      %v4540 = vadd.f32 %v4280, %v4463
      %v4541 = vadd.f32 %v4281, %v4465
      %v4542 = vadd.f32 %v4282, %v4468
      %v4543 = vadd.f32 %v4283, %v4470
      %v4544 = vadd.f32 %v4284, %v4473
      %v4545 = vadd.f32 %v4285, %v4475
      %v4546 = vadd.f32 %v4286, %v4478
      %v4547 = vadd.f32 %v4287, %v4480
      %v4548 = vadd.f32 %v4288, %v4483
      %v4549 = vadd.f32 %v4289, %v4485
      %v4550 = vadd.f32 %v4290, %v4488
      %v4551 = vadd.f32 %v4291, %v4490
      %v4552 = vadd.f32 %v4292, %v4493
      %v4553 = vadd.f32 %v4293, %v4495
      %v4554 = vadd.f32 %v4294, %v4498
      %v4555 = vadd.f32 %v4295, %v4500
      %v4556 = vadd.f32 %v4296, %v4503
      %v4557 = vadd.f32 %v4297, %v4505
      %v4558 = vadd.f32 %v4298, %v4508
      %v4559 = vadd.f32 %v4299, %v4510
      %v4560 = vadd.f32 %v4300, %v4513
      %v4561 = vadd.f32 %v4301, %v4515
      %v4562 = vadd.f32 %v4302, %v4518
      %v4563 = vadd.f32 %v4303, %v4520
      %v4564 = vadd.f32 %v4304, %v4523
      %v4565 = vadd.f32 %v4305, %v4525
      %v4566 = vadd.f32 %v4306, %v4528
      %v4567 = vadd.f32 %v4307, %v4530
      %v4568 = vld [vmem:[#allocation2 + $0x2a] sm:$0xff]
      %v4569 = vld [vmem:[#allocation2 + $0x32] sm:$0xff]
      %v4570 = vld [vmem:[#allocation2 + $0x3a] sm:$0xff]
      %v4571 = vld [vmem:[#allocation2 + $0x42] sm:$0xff]
      %v4572 = vld [vmem:[#allocation2 + $0x4a] sm:$0xff]
      %v4573 = vld [vmem:[#allocation2 + $0x52] sm:$0xff]
      %v4574 = vld [vmem:[#allocation2 + $0x5a] sm:$0xff]
      %v4575 = vld [vmem:[#allocation2 + $0x62] sm:$0xff]
      %v4576 = vld [vmem:[#allocation2 + $0x6a] sm:$0xff]
      %v4577 = vld [vmem:[#allocation2 + $0x72] sm:$0xff]
      %v4578 = vld [vmem:[#allocation2 + $0x7a] sm:$0xff]
      %v4579 = vld [vmem:[#allocation2 + $0x82] sm:$0xff]
      %v4580 = vld [vmem:[#allocation2 + $0x8a] sm:$0xff]
      %v4581 = vld [vmem:[#allocation2 + $0x92] sm:$0xff]
      %v4582 = vld [vmem:[#allocation2 + $0x9a] sm:$0xff]
      %v4583 = vld [vmem:[#allocation2 + $0xa2] sm:$0xff]
      %v4584 = vld [vmem:[#allocation2 + $0xaa] sm:$0xff]
      %v4585 = vld [vmem:[#allocation2 + $0xb2] sm:$0xff]
      %v4586 = vld [vmem:[#allocation2 + $0xba] sm:$0xff]
      %v4587 = vld [vmem:[#allocation2 + $0xc2] sm:$0xff]
      %v4588 = vld [vmem:[#allocation2 + $0xca] sm:$0xff]
      %v4589 = vld [vmem:[#allocation2 + $0xd2] sm:$0xff]
      %v4590 = vld [vmem:[#allocation2 + $0xda] sm:$0xff]
      %v4591 = vld [vmem:[#allocation2 + $0xe2] sm:$0xff]
      %v4592 = vld [vmem:[#allocation2 + $0xea] sm:$0xff]
      %v4593 = vld [vmem:[#allocation2 + $0xf2] sm:$0xff]
      %v4594 = vld [vmem:[#allocation2 + $0xfa] sm:$0xff]
      %v4595 = vld [vmem:[#allocation2 + $0x102] sm:$0xff]
      %v4596 = vld [vmem:[#allocation2 + $0x10a] sm:$0xff]
      %v4597 = vld [vmem:[#allocation2 + $0x112] sm:$0xff]
      %v4598 = vld [vmem:[#allocation2 + $0x11a] sm:$0xff]
      %v4599 = vld [vmem:[#allocation2 + $0x122] sm:$0xff]
      %v4600 = vld [vmem:[#allocation2 + $0x12a] sm:$0xff]
      %v4601 = vld [vmem:[#allocation2 + $0x132] sm:$0xff]
      %v4602 = vld [vmem:[#allocation2 + $0x13a] sm:$0xff]
      %v4603 = vld [vmem:[#allocation2 + $0x142] sm:$0xff]
      %v4604 = vpack.c.bf16 %v4569, %v4568
      %v4605 = vpack.c.bf16 %v4571, %v4570
      %v4606 = vpack.c.bf16 %v4573, %v4572
      %v4607 = vpack.c.bf16 %v4575, %v4574
      %v4608 = vpack.c.bf16 %v4577, %v4576
      %v4609 = vpack.c.bf16 %v4579, %v4578
      %v4610 = vpack.c.bf16 %v4581, %v4580
      %v4611 = vpack.c.bf16 %v4583, %v4582
      %v4612 = vpack.c.bf16 %v4585, %v4584
      %v4613 = vpack.c.bf16 %v4587, %v4586
      %v4614 = vpack.c.bf16 %v4589, %v4588
      %v4615 = vpack.c.bf16 %v4591, %v4590
      %v4616 = vpack.c.bf16 %v4593, %v4592
      %v4617 = vpack.c.bf16 %v4595, %v4594
      %v4618 = vpack.c.bf16 %v4597, %v4596
      %v4619 = vpack.c.bf16 %v4599, %v4598
      %v4620 = vpack.c.bf16 %v4601, %v4600
      %v4621 = vpack.c.bf16 %v4603, %v4602
      %s4622 = scalar_lea.vmem %s3, 112
      %v4623 = vld [vmem:[%s4622] sm:$0xf]
      %v4624 = vld [vmem:[%s4622 + $0x4] sm:$0xf]
      %v4625 = vld [vmem:[%s4622 + $0x8] sm:$0xf]
      %v4626 = vld [vmem:[%s4622 + $0xc] sm:$0xf]
      %v4631 = vunpack.c.l.b16 %v4623
      %v4632 = vunpack.c.l.b16 %v4624
      %v4633 = vunpack.c.l.b16 %v4625
      %v4634 = vunpack.c.l.b16 %v4626
      %v4635 = vpack.c.b16 %v4632, %v4631
      %v4636 = vpack.c.b16 %v4634, %v4633
      %v4640 = vsel %vm2742, %v4604, 0
      %v4643 = vsel %vm2742, %v4605, 0
      %v4646 = vsel %vm2742, %v4606, 0
      %v4649 = vsel %vm2742, %v4607, 0
      %v4652 = vsel %vm2742, %v4608, 0
      %v4655 = vsel %vm2742, %v4609, 0
      %v4658 = vsel %vm2742, %v4610, 0
      %v4661 = vsel %vm2742, %v4611, 0
      %v4664 = vsel %vm2742, %v4612, 0
      %v4667 = vsel %vm2742, %v4613, 0
      %v4670 = vsel %vm2742, %v4614, 0
      %v4673 = vsel %vm2742, %v4615, 0
      %v4676 = vsel %vm2742, %v4616, 0
      %v4679 = vsel %vm2742, %v4617, 0
      %v4682 = vsel %vm2742, %v4618, 0
      %v4685 = vsel %vm2742, %v4619, 0
      %v4688 = vsel %vm2742, %v4620, 0
      %v4691 = vsel %vm2742, %v4621, 0
      %4693 = vmatpush.bf16.msra.mxu0 0
      %4694 = vmatpush.bf16.msra.mxu0 0
      %4695 = vmatpush.bf16.msra.mxu0 0
      %4696 = vmatpush.bf16.msra.mxu0 0
      %4697 = vmatpush.bf16.msra.mxu0 0
      %4698 = vmatpush.bf16.msra.mxu0 0
      %4699 = vmatpush.bf16.msra.mxu0 %v4636
      %4700 = vmatpush.bf16.msra.mxu0 %v4635
      %4701 = vmatmul.bf16.gmra.mxu0 %v4640
      %v4702 = vpop.f32.mrf.mxu0
      %v4703 = vadd.f32 0.0, %v4702
      %v4704 = vpop.f32.mrf.mxu0
      %v4705 = vadd.f32 0.0, %v4704
      %4706 = vmatmul.bf16.gmra.mxu0 %v4643
      %v4707 = vpop.f32.mrf.mxu0
      %v4708 = vadd.f32 0.0, %v4707
      %v4709 = vpop.f32.mrf.mxu0
      %v4710 = vadd.f32 0.0, %v4709
      %4711 = vmatmul.bf16.gmra.mxu0 %v4646
      %v4712 = vpop.f32.mrf.mxu0
      %v4713 = vadd.f32 0.0, %v4712
      %v4714 = vpop.f32.mrf.mxu0
      %v4715 = vadd.f32 0.0, %v4714
      %4716 = vmatmul.bf16.gmra.mxu0 %v4649
      %v4717 = vpop.f32.mrf.mxu0
      %v4718 = vadd.f32 0.0, %v4717
      %v4719 = vpop.f32.mrf.mxu0
      %v4720 = vadd.f32 0.0, %v4719
      %4721 = vmatmul.bf16.gmra.mxu0 %v4652
      %v4722 = vpop.f32.mrf.mxu0
      %v4723 = vadd.f32 0.0, %v4722
      %v4724 = vpop.f32.mrf.mxu0
      %v4725 = vadd.f32 0.0, %v4724
      %4726 = vmatmul.bf16.gmra.mxu0 %v4655
      %v4727 = vpop.f32.mrf.mxu0
      %v4728 = vadd.f32 0.0, %v4727
      %v4729 = vpop.f32.mrf.mxu0
      %v4730 = vadd.f32 0.0, %v4729
      %4731 = vmatmul.bf16.gmra.mxu0 %v4658
      %v4732 = vpop.f32.mrf.mxu0
      %v4733 = vadd.f32 0.0, %v4732
      %v4734 = vpop.f32.mrf.mxu0
      %v4735 = vadd.f32 0.0, %v4734
      %4736 = vmatmul.bf16.gmra.mxu0 %v4661
      %v4737 = vpop.f32.mrf.mxu0
      %v4738 = vadd.f32 0.0, %v4737
      %v4739 = vpop.f32.mrf.mxu0
      %v4740 = vadd.f32 0.0, %v4739
      %4741 = vmatmul.bf16.gmra.mxu0 %v4664
      %v4742 = vpop.f32.mrf.mxu0
      %v4743 = vadd.f32 0.0, %v4742
      %v4744 = vpop.f32.mrf.mxu0
      %v4745 = vadd.f32 0.0, %v4744
      %4746 = vmatmul.bf16.gmra.mxu0 %v4667
      %v4747 = vpop.f32.mrf.mxu0
      %v4748 = vadd.f32 0.0, %v4747
      %v4749 = vpop.f32.mrf.mxu0
      %v4750 = vadd.f32 0.0, %v4749
      %4751 = vmatmul.bf16.gmra.mxu0 %v4670
      %v4752 = vpop.f32.mrf.mxu0
      %v4753 = vadd.f32 0.0, %v4752
      %v4754 = vpop.f32.mrf.mxu0
      %v4755 = vadd.f32 0.0, %v4754
      %4756 = vmatmul.bf16.gmra.mxu0 %v4673
      %v4757 = vpop.f32.mrf.mxu0
      %v4758 = vadd.f32 0.0, %v4757
      %v4759 = vpop.f32.mrf.mxu0
      %v4760 = vadd.f32 0.0, %v4759
      %4761 = vmatmul.bf16.gmra.mxu0 %v4676
      %v4762 = vpop.f32.mrf.mxu0
      %v4763 = vadd.f32 0.0, %v4762
      %v4764 = vpop.f32.mrf.mxu0
      %v4765 = vadd.f32 0.0, %v4764
      %4766 = vmatmul.bf16.gmra.mxu0 %v4679
      %v4767 = vpop.f32.mrf.mxu0
      %v4768 = vadd.f32 0.0, %v4767
      %v4769 = vpop.f32.mrf.mxu0
      %v4770 = vadd.f32 0.0, %v4769
      %4771 = vmatmul.bf16.gmra.mxu0 %v4682
      %v4772 = vpop.f32.mrf.mxu0
      %v4773 = vadd.f32 0.0, %v4772
      %v4774 = vpop.f32.mrf.mxu0
      %v4775 = vadd.f32 0.0, %v4774
      %4776 = vmatmul.bf16.gmra.mxu0 %v4685
      %v4777 = vpop.f32.mrf.mxu0
      %v4778 = vadd.f32 0.0, %v4777
      %v4779 = vpop.f32.mrf.mxu0
      %v4780 = vadd.f32 0.0, %v4779
      %4781 = vmatmul.bf16.gmra.mxu0 %v4688
      %v4782 = vpop.f32.mrf.mxu0
      %v4783 = vadd.f32 0.0, %v4782
      %v4784 = vpop.f32.mrf.mxu0
      %v4785 = vadd.f32 0.0, %v4784
      %4786 = vmatmul.bf16.gmra.mxu0 %v4691
      %v4787 = vpop.f32.mrf.mxu0
      %v4788 = vadd.f32 0.0, %v4787
      %v4789 = vpop.f32.mrf.mxu0
      %v4790 = vadd.f32 0.0, %v4789
      %4791 = vdwg.mxu0
      %v4792 = vadd.f32 %v4532, %v4703
      %v4793 = vadd.f32 %v4533, %v4705
      %v4794 = vadd.f32 %v4534, %v4708
      %v4795 = vadd.f32 %v4535, %v4710
      %v4796 = vadd.f32 %v4536, %v4713
      %v4797 = vadd.f32 %v4537, %v4715
      %v4798 = vadd.f32 %v4538, %v4718
      %v4799 = vadd.f32 %v4539, %v4720
      %v4800 = vadd.f32 %v4540, %v4723
      %v4801 = vadd.f32 %v4541, %v4725
      %v4802 = vadd.f32 %v4542, %v4728
      %v4803 = vadd.f32 %v4543, %v4730
      %v4804 = vadd.f32 %v4544, %v4733
      %v4805 = vadd.f32 %v4545, %v4735
      %v4806 = vadd.f32 %v4546, %v4738
      %v4807 = vadd.f32 %v4547, %v4740
      %v4808 = vadd.f32 %v4548, %v4743
      %v4809 = vadd.f32 %v4549, %v4745
      %v4810 = vadd.f32 %v4550, %v4748
      %v4811 = vadd.f32 %v4551, %v4750
      %v4812 = vadd.f32 %v4552, %v4753
      %v4813 = vadd.f32 %v4553, %v4755
      %v4814 = vadd.f32 %v4554, %v4758
      %v4815 = vadd.f32 %v4555, %v4760
      %v4816 = vadd.f32 %v4556, %v4763
      %v4817 = vadd.f32 %v4557, %v4765
      %v4818 = vadd.f32 %v4558, %v4768
      %v4819 = vadd.f32 %v4559, %v4770
      %v4820 = vadd.f32 %v4560, %v4773
      %v4821 = vadd.f32 %v4561, %v4775
      %v4822 = vadd.f32 %v4562, %v4778
      %v4823 = vadd.f32 %v4563, %v4780
      %v4824 = vadd.f32 %v4564, %v4783
      %v4825 = vadd.f32 %v4565, %v4785
      %v4826 = vadd.f32 %v4566, %v4788
      %v4827 = vadd.f32 %v4567, %v4790
      %v4828 = vld [vmem:[#allocation2 + $0x2b] sm:$0xff]
      %v4829 = vld [vmem:[#allocation2 + $0x33] sm:$0xff]
      %v4830 = vld [vmem:[#allocation2 + $0x3b] sm:$0xff]
      %v4831 = vld [vmem:[#allocation2 + $0x43] sm:$0xff]
      %v4832 = vld [vmem:[#allocation2 + $0x4b] sm:$0xff]
      %v4833 = vld [vmem:[#allocation2 + $0x53] sm:$0xff]
      %v4834 = vld [vmem:[#allocation2 + $0x5b] sm:$0xff]
      %v4835 = vld [vmem:[#allocation2 + $0x63] sm:$0xff]
      %v4836 = vld [vmem:[#allocation2 + $0x6b] sm:$0xff]
      %v4837 = vld [vmem:[#allocation2 + $0x73] sm:$0xff]
      %v4838 = vld [vmem:[#allocation2 + $0x7b] sm:$0xff]
      %v4839 = vld [vmem:[#allocation2 + $0x83] sm:$0xff]
      %v4840 = vld [vmem:[#allocation2 + $0x8b] sm:$0xff]
      %v4841 = vld [vmem:[#allocation2 + $0x93] sm:$0xff]
      %v4842 = vld [vmem:[#allocation2 + $0x9b] sm:$0xff]
      %v4843 = vld [vmem:[#allocation2 + $0xa3] sm:$0xff]
      %v4844 = vld [vmem:[#allocation2 + $0xab] sm:$0xff]
      %v4845 = vld [vmem:[#allocation2 + $0xb3] sm:$0xff]
      %v4846 = vld [vmem:[#allocation2 + $0xbb] sm:$0xff]
      %v4847 = vld [vmem:[#allocation2 + $0xc3] sm:$0xff]
      %v4848 = vld [vmem:[#allocation2 + $0xcb] sm:$0xff]
      %v4849 = vld [vmem:[#allocation2 + $0xd3] sm:$0xff]
      %v4850 = vld [vmem:[#allocation2 + $0xdb] sm:$0xff]
      %v4851 = vld [vmem:[#allocation2 + $0xe3] sm:$0xff]
      %v4852 = vld [vmem:[#allocation2 + $0xeb] sm:$0xff]
      %v4853 = vld [vmem:[#allocation2 + $0xf3] sm:$0xff]
      %v4854 = vld [vmem:[#allocation2 + $0xfb] sm:$0xff]
      %v4855 = vld [vmem:[#allocation2 + $0x103] sm:$0xff]
      %v4856 = vld [vmem:[#allocation2 + $0x10b] sm:$0xff]
      %v4857 = vld [vmem:[#allocation2 + $0x113] sm:$0xff]
      %v4858 = vld [vmem:[#allocation2 + $0x11b] sm:$0xff]
      %v4859 = vld [vmem:[#allocation2 + $0x123] sm:$0xff]
      %v4860 = vld [vmem:[#allocation2 + $0x12b] sm:$0xff]
      %v4861 = vld [vmem:[#allocation2 + $0x133] sm:$0xff]
      %v4862 = vld [vmem:[#allocation2 + $0x13b] sm:$0xff]
      %v4863 = vld [vmem:[#allocation2 + $0x143] sm:$0xff]
      %v4864 = vpack.c.bf16 %v4829, %v4828
      %v4865 = vpack.c.bf16 %v4831, %v4830
      %v4866 = vpack.c.bf16 %v4833, %v4832
      %v4867 = vpack.c.bf16 %v4835, %v4834
      %v4868 = vpack.c.bf16 %v4837, %v4836
      %v4869 = vpack.c.bf16 %v4839, %v4838
      %v4870 = vpack.c.bf16 %v4841, %v4840
      %v4871 = vpack.c.bf16 %v4843, %v4842
      %v4872 = vpack.c.bf16 %v4845, %v4844
      %v4873 = vpack.c.bf16 %v4847, %v4846
      %v4874 = vpack.c.bf16 %v4849, %v4848
      %v4875 = vpack.c.bf16 %v4851, %v4850
      %v4876 = vpack.c.bf16 %v4853, %v4852
      %v4877 = vpack.c.bf16 %v4855, %v4854
      %v4878 = vpack.c.bf16 %v4857, %v4856
      %v4879 = vpack.c.bf16 %v4859, %v4858
      %v4880 = vpack.c.bf16 %v4861, %v4860
      %v4881 = vpack.c.bf16 %v4863, %v4862
      %s4882 = scalar_lea.vmem %s3, 128
      %v4883 = vld [vmem:[%s4882] sm:$0xf]
      %v4884 = vld [vmem:[%s4882 + $0x4] sm:$0xf]
      %v4885 = vld [vmem:[%s4882 + $0x8] sm:$0xf]
      %v4886 = vld [vmem:[%s4882 + $0xc] sm:$0xf]
      %v4891 = vunpack.c.l.b16 %v4883
      %v4892 = vunpack.c.l.b16 %v4884
      %v4893 = vunpack.c.l.b16 %v4885
      %v4894 = vunpack.c.l.b16 %v4886
      %v4895 = vpack.c.b16 %v4892, %v4891
      %v4896 = vpack.c.b16 %v4894, %v4893
      %v4900 = vsel %vm2742, %v4864, 0
      %v4903 = vsel %vm2742, %v4865, 0
      %v4906 = vsel %vm2742, %v4866, 0
      %v4909 = vsel %vm2742, %v4867, 0
      %v4912 = vsel %vm2742, %v4868, 0
      %v4915 = vsel %vm2742, %v4869, 0
      %v4918 = vsel %vm2742, %v4870, 0
      %v4921 = vsel %vm2742, %v4871, 0
      %v4924 = vsel %vm2742, %v4872, 0
      %v4927 = vsel %vm2742, %v4873, 0
      %v4930 = vsel %vm2742, %v4874, 0
      %v4933 = vsel %vm2742, %v4875, 0
      %v4936 = vsel %vm2742, %v4876, 0
      %v4939 = vsel %vm2742, %v4877, 0
      %v4942 = vsel %vm2742, %v4878, 0
      %v4945 = vsel %vm2742, %v4879, 0
      %v4948 = vsel %vm2742, %v4880, 0
      %v4951 = vsel %vm2742, %v4881, 0
      %4953 = vmatpush.bf16.msra.mxu0 0
      %4954 = vmatpush.bf16.msra.mxu0 0
      %4955 = vmatpush.bf16.msra.mxu0 0
      %4956 = vmatpush.bf16.msra.mxu0 0
      %4957 = vmatpush.bf16.msra.mxu0 0
      %4958 = vmatpush.bf16.msra.mxu0 0
      %4959 = vmatpush.bf16.msra.mxu0 %v4896
      %4960 = vmatpush.bf16.msra.mxu0 %v4895
      %4961 = vmatmul.bf16.gmra.mxu0 %v4900
      %v4962 = vpop.f32.mrf.mxu0
      %v4963 = vadd.f32 0.0, %v4962
      %v4964 = vpop.f32.mrf.mxu0
      %v4965 = vadd.f32 0.0, %v4964
      %4966 = vmatmul.bf16.gmra.mxu0 %v4903
      %v4967 = vpop.f32.mrf.mxu0
      %v4968 = vadd.f32 0.0, %v4967
      %v4969 = vpop.f32.mrf.mxu0
      %v4970 = vadd.f32 0.0, %v4969
      %4971 = vmatmul.bf16.gmra.mxu0 %v4906
      %v4972 = vpop.f32.mrf.mxu0
      %v4973 = vadd.f32 0.0, %v4972
      %v4974 = vpop.f32.mrf.mxu0
      %v4975 = vadd.f32 0.0, %v4974
      %4976 = vmatmul.bf16.gmra.mxu0 %v4909
      %v4977 = vpop.f32.mrf.mxu0
      %v4978 = vadd.f32 0.0, %v4977
      %v4979 = vpop.f32.mrf.mxu0
      %v4980 = vadd.f32 0.0, %v4979
      %4981 = vmatmul.bf16.gmra.mxu0 %v4912
      %v4982 = vpop.f32.mrf.mxu0
      %v4983 = vadd.f32 0.0, %v4982
      %v4984 = vpop.f32.mrf.mxu0
      %v4985 = vadd.f32 0.0, %v4984
      %4986 = vmatmul.bf16.gmra.mxu0 %v4915
      %v4987 = vpop.f32.mrf.mxu0
      %v4988 = vadd.f32 0.0, %v4987
      %v4989 = vpop.f32.mrf.mxu0
      %v4990 = vadd.f32 0.0, %v4989
      %4991 = vmatmul.bf16.gmra.mxu0 %v4918
      %v4992 = vpop.f32.mrf.mxu0
      %v4993 = vadd.f32 0.0, %v4992
      %v4994 = vpop.f32.mrf.mxu0
      %v4995 = vadd.f32 0.0, %v4994
      %4996 = vmatmul.bf16.gmra.mxu0 %v4921
      %v4997 = vpop.f32.mrf.mxu0
      %v4998 = vadd.f32 0.0, %v4997
      %v4999 = vpop.f32.mrf.mxu0
      %v5000 = vadd.f32 0.0, %v4999
      %5001 = vmatmul.bf16.gmra.mxu0 %v4924
      %v5002 = vpop.f32.mrf.mxu0
      %v5003 = vadd.f32 0.0, %v5002
      %v5004 = vpop.f32.mrf.mxu0
      %v5005 = vadd.f32 0.0, %v5004
      %5006 = vmatmul.bf16.gmra.mxu0 %v4927
      %v5007 = vpop.f32.mrf.mxu0
      %v5008 = vadd.f32 0.0, %v5007
      %v5009 = vpop.f32.mrf.mxu0
      %v5010 = vadd.f32 0.0, %v5009
      %5011 = vmatmul.bf16.gmra.mxu0 %v4930
      %v5012 = vpop.f32.mrf.mxu0
      %v5013 = vadd.f32 0.0, %v5012
      %v5014 = vpop.f32.mrf.mxu0
      %v5015 = vadd.f32 0.0, %v5014
      %5016 = vmatmul.bf16.gmra.mxu0 %v4933
      %v5017 = vpop.f32.mrf.mxu0
      %v5018 = vadd.f32 0.0, %v5017
      %v5019 = vpop.f32.mrf.mxu0
      %v5020 = vadd.f32 0.0, %v5019
      %5021 = vmatmul.bf16.gmra.mxu0 %v4936
      %v5022 = vpop.f32.mrf.mxu0
      %v5023 = vadd.f32 0.0, %v5022
      %v5024 = vpop.f32.mrf.mxu0
      %v5025 = vadd.f32 0.0, %v5024
      %5026 = vmatmul.bf16.gmra.mxu0 %v4939
      %v5027 = vpop.f32.mrf.mxu0
      %v5028 = vadd.f32 0.0, %v5027
      %v5029 = vpop.f32.mrf.mxu0
      %v5030 = vadd.f32 0.0, %v5029
      %5031 = vmatmul.bf16.gmra.mxu0 %v4942
      %v5032 = vpop.f32.mrf.mxu0
      %v5033 = vadd.f32 0.0, %v5032
      %v5034 = vpop.f32.mrf.mxu0
      %v5035 = vadd.f32 0.0, %v5034
      %5036 = vmatmul.bf16.gmra.mxu0 %v4945
      %v5037 = vpop.f32.mrf.mxu0
      %v5038 = vadd.f32 0.0, %v5037
      %v5039 = vpop.f32.mrf.mxu0
      %v5040 = vadd.f32 0.0, %v5039
      %5041 = vmatmul.bf16.gmra.mxu0 %v4948
      %v5042 = vpop.f32.mrf.mxu0
      %v5043 = vadd.f32 0.0, %v5042
      %v5044 = vpop.f32.mrf.mxu0
      %v5045 = vadd.f32 0.0, %v5044
      %5046 = vmatmul.bf16.gmra.mxu0 %v4951
      %v5047 = vpop.f32.mrf.mxu0
      %v5048 = vadd.f32 0.0, %v5047
      %v5049 = vpop.f32.mrf.mxu0
      %v5050 = vadd.f32 0.0, %v5049
      %5051 = vdwg.mxu0
      %v5052 = vadd.f32 %v4792, %v4963
      %v5053 = vadd.f32 %v4793, %v4965
      %v5054 = vadd.f32 %v4794, %v4968
      %v5055 = vadd.f32 %v4795, %v4970
      %v5056 = vadd.f32 %v4796, %v4973
      %v5057 = vadd.f32 %v4797, %v4975
      %v5058 = vadd.f32 %v4798, %v4978
      %v5059 = vadd.f32 %v4799, %v4980
      %v5060 = vadd.f32 %v4800, %v4983
      %v5061 = vadd.f32 %v4801, %v4985
      %v5062 = vadd.f32 %v4802, %v4988
      %v5063 = vadd.f32 %v4803, %v4990
      %v5064 = vadd.f32 %v4804, %v4993
      %v5065 = vadd.f32 %v4805, %v4995
      %v5066 = vadd.f32 %v4806, %v4998
      %v5067 = vadd.f32 %v4807, %v5000
      %v5068 = vadd.f32 %v4808, %v5003
      %v5069 = vadd.f32 %v4809, %v5005
      %v5070 = vadd.f32 %v4810, %v5008
      %v5071 = vadd.f32 %v4811, %v5010
      %v5072 = vadd.f32 %v4812, %v5013
      %v5073 = vadd.f32 %v4813, %v5015
      %v5074 = vadd.f32 %v4814, %v5018
      %v5075 = vadd.f32 %v4815, %v5020
      %v5076 = vadd.f32 %v4816, %v5023
      %v5077 = vadd.f32 %v4817, %v5025
      %v5078 = vadd.f32 %v4818, %v5028
      %v5079 = vadd.f32 %v4819, %v5030
      %v5080 = vadd.f32 %v4820, %v5033
      %v5081 = vadd.f32 %v4821, %v5035
      %v5082 = vadd.f32 %v4822, %v5038
      %v5083 = vadd.f32 %v4823, %v5040
      %v5084 = vadd.f32 %v4824, %v5043
      %v5085 = vadd.f32 %v4825, %v5045
      %v5086 = vadd.f32 %v4826, %v5048
      %v5087 = vadd.f32 %v4827, %v5050
      %v5088 = vld [vmem:[%s4] sm:$0x1]
      %v5090 = vperm.slane %v5088, 0
      %v5092 = vadd.f32 %v5052, %v5090
      %v5093 = vadd.f32 %v5053, %v5090
      %v5094 = vadd.f32 %v5054, %v5090
      %v5095 = vadd.f32 %v5055, %v5090
      %v5096 = vadd.f32 %v5056, %v5090
      %v5097 = vadd.f32 %v5057, %v5090
      %v5098 = vadd.f32 %v5058, %v5090
      %v5099 = vadd.f32 %v5059, %v5090
      %v5100 = vadd.f32 %v5060, %v5090
      %v5101 = vadd.f32 %v5061, %v5090
      %v5102 = vadd.f32 %v5062, %v5090
      %v5103 = vadd.f32 %v5063, %v5090
      %v5104 = vadd.f32 %v5064, %v5090
      %v5105 = vadd.f32 %v5065, %v5090
      %v5106 = vadd.f32 %v5066, %v5090
      %v5107 = vadd.f32 %v5067, %v5090
      %v5108 = vadd.f32 %v5068, %v5090
      %v5109 = vadd.f32 %v5069, %v5090
      %v5110 = vadd.f32 %v5070, %v5090
      %v5111 = vadd.f32 %v5071, %v5090
      %v5112 = vadd.f32 %v5072, %v5090
      %v5113 = vadd.f32 %v5073, %v5090
      %v5114 = vadd.f32 %v5074, %v5090
      %v5115 = vadd.f32 %v5075, %v5090
      %v5116 = vadd.f32 %v5076, %v5090
      %v5117 = vadd.f32 %v5077, %v5090
      %v5118 = vadd.f32 %v5078, %v5090
      %v5119 = vadd.f32 %v5079, %v5090
      %v5120 = vadd.f32 %v5080, %v5090
      %v5121 = vadd.f32 %v5081, %v5090
      %v5122 = vadd.f32 %v5082, %v5090
      %v5123 = vadd.f32 %v5083, %v5090
      %v5124 = vadd.f32 %v5084, %v5090
      %v5125 = vadd.f32 %v5085, %v5090
      %v5126 = vadd.f32 %v5086, %v5090
      %v5127 = vadd.f32 %v5087, %v5090
      %v5128 = vmax.f32 %v5092, 0.0
      %v5129 = vmax.f32 %v5093, 0.0
      %v5130 = vmax.f32 %v5094, 0.0
      %v5131 = vmax.f32 %v5095, 0.0
      %v5132 = vmax.f32 %v5096, 0.0
      %v5133 = vmax.f32 %v5097, 0.0
      %v5134 = vmax.f32 %v5098, 0.0
      %v5135 = vmax.f32 %v5099, 0.0
      %v5136 = vmax.f32 %v5100, 0.0
      %v5137 = vmax.f32 %v5101, 0.0
      %v5138 = vmax.f32 %v5102, 0.0
      %v5139 = vmax.f32 %v5103, 0.0
      %v5140 = vmax.f32 %v5104, 0.0
      %v5141 = vmax.f32 %v5105, 0.0
      %v5142 = vmax.f32 %v5106, 0.0
      %v5143 = vmax.f32 %v5107, 0.0
      %v5144 = vmax.f32 %v5108, 0.0
      %v5145 = vmax.f32 %v5109, 0.0
      %v5146 = vmax.f32 %v5110, 0.0
      %v5147 = vmax.f32 %v5111, 0.0
      %v5148 = vmax.f32 %v5112, 0.0
      %v5149 = vmax.f32 %v5113, 0.0
      %v5150 = vmax.f32 %v5114, 0.0
      %v5151 = vmax.f32 %v5115, 0.0
      %v5152 = vmax.f32 %v5116, 0.0
      %v5153 = vmax.f32 %v5117, 0.0
      %v5154 = vmax.f32 %v5118, 0.0
      %v5155 = vmax.f32 %v5119, 0.0
      %v5156 = vmax.f32 %v5120, 0.0
      %v5157 = vmax.f32 %v5121, 0.0
      %v5158 = vmax.f32 %v5122, 0.0
      %v5159 = vmax.f32 %v5123, 0.0
      %v5160 = vmax.f32 %v5124, 0.0
      %v5161 = vmax.f32 %v5125, 0.0
      %v5162 = vmax.f32 %v5126, 0.0
      %v5163 = vmax.f32 %v5127, 0.0
      %5164 = vst.msk [vmem:[%s251] sm:$0xff] %vm2742, %v5128
      %5165 = vst.msk [vmem:[%s251 + $0x8] sm:$0xff] %vm2742, %v5129
      %5166 = vst.msk [vmem:[%s251 + $0x10] sm:$0xff] %vm2742, %v5130
      %5167 = vst.msk [vmem:[%s251 + $0x18] sm:$0xff] %vm2742, %v5131
      %5168 = vst.msk [vmem:[%s251 + $0x20] sm:$0xff] %vm2742, %v5132
      %5169 = vst.msk [vmem:[%s251 + $0x28] sm:$0xff] %vm2742, %v5133
      %5170 = vst.msk [vmem:[%s251 + $0x30] sm:$0xff] %vm2742, %v5134
      %5171 = vst.msk [vmem:[%s251 + $0x38] sm:$0xff] %vm2742, %v5135
      %5172 = vst.msk [vmem:[%s251 + $0x40] sm:$0xff] %vm2742, %v5136
      %5173 = vst.msk [vmem:[%s251 + $0x48] sm:$0xff] %vm2742, %v5137
      %5174 = vst.msk [vmem:[%s251 + $0x50] sm:$0xff] %vm2742, %v5138
      %5175 = vst.msk [vmem:[%s251 + $0x58] sm:$0xff] %vm2742, %v5139
      %5176 = vst.msk [vmem:[%s251 + $0x60] sm:$0xff] %vm2742, %v5140
      %5177 = vst.msk [vmem:[%s251 + $0x68] sm:$0xff] %vm2742, %v5141
      %5178 = vst.msk [vmem:[%s251 + $0x70] sm:$0xff] %vm2742, %v5142
      %5179 = vst.msk [vmem:[%s251 + $0x78] sm:$0xff] %vm2742, %v5143
      %5180 = vst.msk [vmem:[%s251 + $0x80] sm:$0xff] %vm2742, %v5144
      %5181 = vst.msk [vmem:[%s251 + $0x88] sm:$0xff] %vm2742, %v5145
      %5182 = vst.msk [vmem:[%s251 + $0x90] sm:$0xff] %vm2742, %v5146
      %5183 = vst.msk [vmem:[%s251 + $0x98] sm:$0xff] %vm2742, %v5147
      %5184 = vst.msk [vmem:[%s251 + $0xa0] sm:$0xff] %vm2742, %v5148
      %5185 = vst.msk [vmem:[%s251 + $0xa8] sm:$0xff] %vm2742, %v5149
      %5186 = vst.msk [vmem:[%s251 + $0xb0] sm:$0xff] %vm2742, %v5150
      %5187 = vst.msk [vmem:[%s251 + $0xb8] sm:$0xff] %vm2742, %v5151
      %5188 = vst.msk [vmem:[%s251 + $0xc0] sm:$0xff] %vm2742, %v5152
      %5189 = vst.msk [vmem:[%s251 + $0xc8] sm:$0xff] %vm2742, %v5153
      %5190 = vst.msk [vmem:[%s251 + $0xd0] sm:$0xff] %vm2742, %v5154
      %5191 = vst.msk [vmem:[%s251 + $0xd8] sm:$0xff] %vm2742, %v5155
      %5192 = vst.msk [vmem:[%s251 + $0xe0] sm:$0xff] %vm2742, %v5156
      %5193 = vst.msk [vmem:[%s251 + $0xe8] sm:$0xff] %vm2742, %v5157
      %5194 = vst.msk [vmem:[%s251 + $0xf0] sm:$0xff] %vm2742, %v5158
      %5195 = vst.msk [vmem:[%s251 + $0xf8] sm:$0xff] %vm2742, %v5159
      %5196 = vst.msk [vmem:[%s251 + $0x100] sm:$0xff] %vm2742, %v5160
      %5197 = vst.msk [vmem:[%s251 + $0x108] sm:$0xff] %vm2742, %v5161
      %5198 = vst.msk [vmem:[%s251 + $0x110] sm:$0xff] %vm2742, %v5162
      %5199 = vst.msk [vmem:[%s251 + $0x118] sm:$0xff] %vm2742, %v5163
      %p5200 = scmp.lt.s32.totalorder %s17, 1
      %s5201 = scalar_select %p5200, %s17, 1
      %s5202 = smul.addr %s5201, 36
      %s5203 = smul.addr %s5202, 8
      %s5204 = scalar_lea.vmem %s6, %s5203
      // Predicated region
      $region45: #{double_conv_relu.1} parent=43 // pred_check
        %p5205 = pneg %p166
      $region46: #{double_conv_relu.1} parent=43 // pred_check_branch
        %5207 = sbr.rel (%p5205) target = $region48
      $region47: #{double_conv_relu.1} parent=43 // pred_region
        _
      $region48: #{double_conv_relu.1} parent=43 // pred_fallthru
        _
    $region44: #{double_conv_relu.1} parent=5 // pred_fallthru
      _
    %p5208 = scmp.le.s32.totalorder 2, %s12
    // Predicated region
    $region49: #{double_conv_relu.1} parent=5 // pred_check
      %p5209 = pneg %p5208
    $region50: #{double_conv_relu.1} parent=5 // pred_check_branch
      %5211 = sbr.rel (%p5209) target = $region52
    $region51: #{double_conv_relu.1} parent=5 // pred_region
      %s5212 = ssub.s32 %s12, 2
      // Predicated region
      $region53: #{double_conv_relu.1} parent=51 // pred_check
        %p5213 = pneg %p172
      $region54: #{double_conv_relu.1} parent=51 // pred_check_branch
        %5215 = sbr.rel (%p5213) target = $region56
      $region55: #{double_conv_relu.1} parent=51 // pred_region
        %p5216 = scmp.lt.s32.totalorder %s18, 1
        %s5217 = scalar_select %p5216, %s18, 1
        %s5218 = smul.addr %s5217, 36
        %s5219 = smul.addr %s5218, 8
        %s5220 = scalar_lea.vmem %s6, %s5219
      $region56: #{double_conv_relu.1} parent=51 // pred_fallthru
        _
    $region52: #{double_conv_relu.1} parent=5 // pred_fallthru
      _
  $region6: #{double_conv_relu.1} parent=0 // loop_footer
    %s16 = sadd.s32 1, %s12
  $region7: #{double_conv_relu.1} parent=0 // loop_footer_branch
    %11 = sbr.rel target = $region3
  $region8: #{double_conv_relu.1} parent=0 // loop_exit
    _

</llo_original>
